<compile_context>
chip_gen: v7x
topology: tpu7x:2x2x1
jax: 0.10.0
libtpu: 0.0.40
codegen_flags: <defaults>
</compile_context>

<pallas_src>
import functools

import jax
import jax.numpy as jnp
from jax.experimental import pallas as pl
from jax.experimental.pallas import tpu as pltpu


_CIN_PAD = 8          # pad the 3-wide xyz input to an aligned contraction dim
_MAX_TILE_N = 512     # point-tile size (multiple of 256/128; safe under v7x 64 MiB VMEM)
_C3_CHUNK = 256       # layer-3 output chunk width


def _round_up(x, m):
    return (x + m - 1) // m * m


# ----------------------------------------------------------------------------
# Kernels
# ----------------------------------------------------------------------------
def _mlp_max_kernel(relu3, n_valid, tile_n, c3_chunk,
                    x_ref, w1_ref, b1_ref, w2_ref, b2_ref, w3_ref, b3_ref,
                    out_ref, acc_ref):
    """Per-point 3-layer MLP (1x1 convs, BN folded) + running max over point tiles.

    Grid = (B, n_point_tiles).  The max accumulator lives in VMEM scratch and the
    output block index is constant along the point-tile axis (init/finalize via pl.when).
    Layer-1 weights are per-batch (the feat path folds the 3x3 STN transform into them).
    """
    nt = pl.program_id(1)

    @pl.when(nt == 0)
    def _():
        acc_ref[...] = jnp.full(acc_ref.shape, -jnp.inf, acc_ref.dtype)

    x = x_ref[0]                                               # (tile_n, 8) bf16
    h1 = jnp.dot(x, w1_ref[0], preferred_element_type=jnp.float32) + b1_ref[...]
    h1 = jnp.maximum(h1, 0.0).astype(jnp.bfloat16)             # (tile_n, 64)
    h2 = jnp.dot(h1, w2_ref[...], preferred_element_type=jnp.float32) + b2_ref[...]
    h2 = jnp.maximum(h2, 0.0).astype(jnp.bfloat16)             # (tile_n, 128)

    needs_mask = n_valid is not None
    if needs_mask:
        row = jax.lax.broadcasted_iota(jnp.int32, (tile_n, 1), 0) + nt * tile_n
        valid = row < n_valid                                  # (tile_n, 1) bool

    c3 = w3_ref.shape[1]
    # Chunk the 1024-wide layer-3 output: keeps the live f32 intermediate at
    # (tile_n, 256) and max-reduces straight into the accumulator (no big h3 spill).
    for c in range(0, c3, c3_chunk):
        h3 = (jnp.dot(h2, w3_ref[:, c:c + c3_chunk],
                      preferred_element_type=jnp.float32)
              + b3_ref[:, c:c + c3_chunk])
        if relu3:                                              # STN3d path has relu after bn3
            h3 = jnp.maximum(h3, 0.0)
        if needs_mask:
            h3 = jnp.where(valid, h3, -jnp.inf)                # drop padded rows from the max
        acc_ref[:, c:c + c3_chunk] = jnp.maximum(
            acc_ref[:, c:c + c3_chunk], jnp.max(h3, axis=0, keepdims=True))

    @pl.when(nt == pl.num_programs(1) - 1)
    def _():
        out_ref[0] = acc_ref[...]


def _stn_fc_kernel(x_ref, w1_ref, b1_ref, w2_ref, b2_ref, w3_ref, b3_ref, o_ref):
    h = jnp.dot(x_ref[...], w1_ref[...], preferred_element_type=jnp.float32) + b1_ref[...]
    h = jnp.maximum(h, 0.0)
    h = jnp.dot(h, w2_ref[...], preferred_element_type=jnp.float32) + b2_ref[...]
    h = jnp.maximum(h, 0.0)
    o_ref[...] = jnp.dot(h, w3_ref[...], preferred_element_type=jnp.float32) + b3_ref[...]


# ----------------------------------------------------------------------------
# Wrappers (pallas_call plumbing)
# ----------------------------------------------------------------------------
def pointwise_mlp_max(x_pad, w1_b, b1, w2, b2, w3, b3, *, n_valid, tile_n, relu3):
    """x_pad: (B, N_pad, 8) bf16, w1_b: (B, 8, C1) bf16 per-batch layer-1 weights.
    Returns (B, C3) f32 global-max-pooled features over the first `n_valid` points."""
    B, n_pad, cin = x_pad.shape
    C1, C2, C3 = w1_b.shape[2], w2.shape[1], w3.shape[1]
    assert n_pad % tile_n == 0
    n_tiles = n_pad // tile_n
    mask_n = None if n_valid == n_pad else n_valid             # static: mask only if padded

    kernel = functools.partial(_mlp_max_kernel, relu3, mask_n, tile_n, _C3_CHUNK)
    # TODO(synk): weights never change across the grid; pipeline_mode=pl.Buffered(1)
    # would reclaim their second buffer, but VMEM is not a constraint at tile_n<=512.
    out = pl.pallas_call(
        kernel,
        out_shape=jax.ShapeDtypeStruct((B, 1, C3), jnp.float32),
        grid_spec=pltpu.PrefetchScalarGridSpec(
            num_scalar_prefetch=0,
            grid=(B, n_tiles),
            in_specs=[
                pl.BlockSpec((1, tile_n, cin), lambda b, n: (b, n, 0)),
                pl.BlockSpec((1, cin, C1), lambda b, n: (b, 0, 0)),
                pl.BlockSpec((1, C1), lambda b, n: (0, 0)),
                pl.BlockSpec((C1, C2), lambda b, n: (0, 0)),
                pl.BlockSpec((1, C2), lambda b, n: (0, 0)),
                pl.BlockSpec((C2, C3), lambda b, n: (0, 0)),
                pl.BlockSpec((1, C3), lambda b, n: (0, 0)),
            ],
            out_specs=pl.BlockSpec((1, 1, C3), lambda b, n: (b, 0, 0)),
            scratch_shapes=[pltpu.VMEM((1, C3), jnp.float32)],
        ),
        compiler_params=pltpu.CompilerParams(
            dimension_semantics=("parallel", "arbitrary"),
            vmem_limit_bytes=48 * 1024 * 1024),
    )(x_pad, w1_b, b1, w2, b2, w3, b3)
    return out.reshape(B, C3)


def stn_fc(x, params):
    """(B, 1024) -> (B, 9) regression head of STN3d (fc1+bn4+relu, fc2+bn5+relu, fc3).
    Output channels padded 9 -> 128 for a lane-dense store; sliced back here."""
    B = x.shape[0]
    w1t, b1, w2t, b2, w3t, b3 = params
    out_dim = w3t.shape[1]                       # 9
    pad_dim = _round_up(out_dim, 128)            # 128
    w3p = jnp.pad(w3t, ((0, 0), (0, pad_dim - out_dim)))
    b3p = jnp.pad(b3, ((0, 0), (0, pad_dim - out_dim)))
    out = pl.pallas_call(
        _stn_fc_kernel,
        out_shape=jax.ShapeDtypeStruct((B, pad_dim), jnp.float32),
    )(x, w1t, b1, w2t, b2, w3p, b3p)
    return out[:, :out_dim]


# ----------------------------------------------------------------------------
# Parameter construction (deterministic, BN folded into conv / linear)
# ----------------------------------------------------------------------------
def _init_linear(key, cin, cout):
    k1, k2 = jax.random.split(key)
    bound = 1.0 / jnp.sqrt(jnp.float32(cin))
    w = jax.random.uniform(k1, (cout, cin), jnp.float32, -bound, bound)
    b = jax.random.uniform(k2, (cout,), jnp.float32, -bound, bound)
    return w, b


def _init_bn(key, dim):
    k1, k2, k3, k4 = jax.random.split(key, 4)
    gamma = 1.0 + 0.1 * jax.random.normal(k1, (dim,), jnp.float32)
    beta = 0.1 * jax.random.normal(k2, (dim,), jnp.float32)
    mean = 0.1 * jax.random.normal(k3, (dim,), jnp.float32)
    var = 0.5 + jax.random.uniform(k4, (dim,), jnp.float32)
    return gamma, beta, mean, var


def _fold_bn(w, b, gamma, beta, mean, var, eps=1e-5):
    scale = gamma / jnp.sqrt(var + eps)
    w_f = w * scale[:, None]
    b_f = (b - mean) * scale + beta
    return w_f.T, b_f[None, :]                   # (cin, cout), (1, cout) for x @ W layout


def _make_conv_bn(key, cin, cout, dtype=jnp.bfloat16):
    k1, k2 = jax.random.split(key)
    w, b = _init_linear(k1, cin, cout)
    w_t, b_row = _fold_bn(w, b, *_init_bn(k2, cout))
    return w_t.astype(dtype), b_row              # weights in bf16 for MXU, bias f32


def _make_linear(key, cin, cout):
    w, b = _init_linear(key, cin, cout)
    return w.T, b[None, :]


def init_params(key):
    ks = jax.random.split(key, 9)
    stn_conv = (*_make_conv_bn(ks[0], 3, 64),
                *_make_conv_bn(ks[1], 64, 128),
                *_make_conv_bn(ks[2], 128, 1024))
    stn_fc_p = (*_make_conv_bn(ks[3], 1024, 512, dtype=jnp.float32),
                *_make_conv_bn(ks[4], 512, 256, dtype=jnp.float32),
                *_make_linear(ks[5], 256, 9))
    feat_conv = (*_make_conv_bn(ks[6], 3, 64),
                 *_make_conv_bn(ks[7], 64, 128),
                 *_make_conv_bn(ks[8], 128, 1024))
    return {"stn": {"conv": stn_conv, "fc": stn_fc_p}, "feat_conv": feat_conv}


# ----------------------------------------------------------------------------
# PointNetfeat forward (global_feat=True, feature_transform=False)
# ----------------------------------------------------------------------------
def pointnetfeat_forward(x_bcn, params):
    """x_bcn: (B, 3, N) float32, same layout as the PyTorch module input."""
    B, cin, N = x_bcn.shape
    x_bnc = jnp.transpose(x_bcn, (0, 2, 1)).astype(jnp.bfloat16)        # (B, N, 3)

    # Pad the point axis to a tile multiple and the channel axis 3 -> 8 (zeros), once,
    # and share the padded tensor between both point-wise MLP passes.
    tile_n = min(_MAX_TILE_N, _round_up(N, 8))
    n_pad = _round_up(N, tile_n)
    x_pad = jnp.pad(x_bnc, ((0, 0), (0, n_pad - N), (0, _CIN_PAD - cin)))

    # ---- STN3d: conv stack + global max (relu after bn3), then FC head ----
    w1s, b1s, w2s, b2s, w3s, b3s = params["stn"]["conv"]
    w1s_pad = jnp.pad(w1s, ((0, _CIN_PAD - w1s.shape[0]), (0, 0)))      # (8, 64) bf16
    w1s_b = jnp.broadcast_to(w1s_pad[None], (B,) + w1s_pad.shape)       # (B, 8, 64)

    stn_feat = pointwise_mlp_max(x_pad, w1s_b, b1s, w2s, b2s, w3s, b3s,
                                 n_valid=N, tile_n=tile_n, relu3=True)  # (B, 1024)
    t9 = stn_fc(stn_feat, params["stn"]["fc"])                          # (B, 9)
    iden = jnp.eye(3, dtype=jnp.float32).reshape(1, 9)
    trans = (t9 + iden).reshape(B, 3, 3)

    # ---- input transform folded into feat layer-1: (x @ trans) @ W1 == x @ (trans @ W1) ----
    w1f, b1f, w2f, b2f, w3f, b3f = params["feat_conv"]
    w1f_fused = jnp.einsum("bij,jk->bik", trans, w1f.astype(jnp.float32))   # (B, 3, 64)
    w1f_fused = jnp.pad(w1f_fused,
                        ((0, 0), (0, _CIN_PAD - 3), (0, 0))).astype(jnp.bfloat16)

    # ---- point-wise MLP (bn3 without relu) + global max pool ----
    gfeat = pointwise_mlp_max(x_pad, w1f_fused, b1f, w2f, b2f, w3f, b3f,
                              n_valid=N, tile_n=tile_n, relu3=False)    # (B, 1024)

    # global_feat=True -> (x, trans, trans_feat=None)
    return gfeat, trans, None
    # TODO(synk): global_feat=False concat branch and feature_transform=True (STNkd)
    # branch are not exercised (module defaults).


# ----------------------------------------------------------------------------
# Pure-JAX reference (same quantized parameters, PyTorch-style dataflow)
# ----------------------------------------------------------------------------
def _ref_mlp_max(x_bnc, params, relu3):
    w1t, b1, w2t, b2, w3t, b3 = params
    h = jax.nn.relu(x_bnc @ w1t.astype(jnp.float32) + b1)
    h = jax.nn.relu(h @ w2t.astype(jnp.float32) + b2)
    h = h @ w3t.astype(jnp.float32) + b3
    if relu3:
        h = jax.nn.relu(h)
    return jnp.max(h, axis=1)


def ref_forward(x_bcn, params):
    B = x_bcn.shape[0]
    x_bnc = jnp.transpose(x_bcn, (0, 2, 1)).astype(jnp.bfloat16).astype(jnp.float32)
    feat = _ref_mlp_max(x_bnc, params["stn"]["conv"], True)
    w1t, b1, w2t, b2, w3t, b3 = params["stn"]["fc"]
    h = jax.nn.relu(feat @ w1t + b1)
    h = jax.nn.relu(h @ w2t + b2)
    t9 = h @ w3t + b3
    trans = (t9 + jnp.eye(3, dtype=jnp.float32).reshape(1, 9)).reshape(B, 3, 3)
    x_t = jnp.einsum("bnc,bcd->bnd", x_bnc, trans)
    gfeat = _ref_mlp_max(x_t, params["feat_conv"], False)
    return gfeat, trans


# ----------------------------------------------------------------------------
if __name__ == "__main__":
    key = jax.random.PRNGKey(0)
    k_x, k_p = jax.random.split(key)

    B, N = 2, 16                                  # small demo shapes; input is (B, 3, N)
    x = jax.random.normal(k_x, (B, 3, N), jnp.float32)
    params = init_params(k_p)

    fwd = jax.jit(lambda xx: pointnetfeat_forward(xx, params))
    gfeat, trans, trans_feat = fwd(x)
    jax.block_until_ready((gfeat, trans))

    assert gfeat.shape == (B, 1024) and trans.shape == (B, 3, 3) and trans_feat is None

    ref_gfeat, ref_trans = ref_forward(x, params)
    assert jnp.allclose(trans, ref_trans, rtol=5e-2, atol=5e-2), (
        float(jnp.max(jnp.abs(trans - ref_trans))))
    assert jnp.allclose(gfeat, ref_gfeat, rtol=5e-2, atol=5e-2), (
        float(jnp.max(jnp.abs(gfeat - ref_gfeat))))

    print("KERNEL_OK")
</pallas_src>

<mosaic_0001>
module attributes {stable_mosaic.version = 11 : i64} {
  func.func @_stn_fc_kernel(%arg0: memref<2x1024xf32, #tpu.memory_space<vmem>>, %arg1: memref<1024x512xf32, #tpu.memory_space<vmem>>, %arg2: memref<1x512xf32, #tpu.memory_space<vmem>>, %arg3: memref<512x256xf32, #tpu.memory_space<vmem>>, %arg4: memref<1x256xf32, #tpu.memory_space<vmem>>, %arg5: memref<256x128xf32, #tpu.memory_space<vmem>>, %arg6: memref<1x128xf32, #tpu.memory_space<vmem>>, %arg7: memref<2x128xf32, #tpu.memory_space<vmem>>) attributes {dimension_semantics = [], scalar_prefetch = 0 : i64, scratch_operands = 0 : i64, tpu.core_type = #tpu.core_type<tc>} {
    %c0 = arith.constant 0 : index
    %c0_0 = arith.constant 0 : index
    %0 = vector.load %arg0[%c0, %c0_0] : memref<2x1024xf32, #tpu.memory_space<vmem>>, vector<2x1024xf32>
    %c0_1 = arith.constant 0 : index
    %c0_2 = arith.constant 0 : index
    %1 = vector.load %arg1[%c0_1, %c0_2] : memref<1024x512xf32, #tpu.memory_space<vmem>>, vector<1024x512xf32>
    %cst = arith.constant dense<0.000000e+00> : vector<2x512xf32>
    %2 = tpu.matmul %0, %1, %cst {dimension_numbers = #tpu.dot_dimension_numbers<[1], [0], [0], [1], [0, 0, 1, 1], [], []>} : vector<2x1024xf32>, vector<1024x512xf32>, vector<2x512xf32> -> vector<2x512xf32>
    %c0_3 = arith.constant 0 : index
    %c0_4 = arith.constant 0 : index
    %3 = vector.load %arg2[%c0_3, %c0_4] : memref<1x512xf32, #tpu.memory_space<vmem>>, vector<1x512xf32>
    %4 = vector.broadcast %3 : vector<1x512xf32> to vector<2x512xf32>
    %5 = arith.addf %2, %4 : vector<2x512xf32>
    %cst_5 = arith.constant 0.000000e+00 : f32
    %6 = vector.broadcast %cst_5 : f32 to vector<2x512xf32>
    %7 = arith.maximumf %5, %6 : vector<2x512xf32>
    %c0_6 = arith.constant 0 : index
    %c0_7 = arith.constant 0 : index
    %8 = vector.load %arg3[%c0_6, %c0_7] : memref<512x256xf32, #tpu.memory_space<vmem>>, vector<512x256xf32>
    %cst_8 = arith.constant dense<0.000000e+00> : vector<2x256xf32>
    %9 = tpu.matmul %7, %8, %cst_8 {dimension_numbers = #tpu.dot_dimension_numbers<[1], [0], [0], [1], [0, 0, 1, 1], [], []>} : vector<2x512xf32>, vector<512x256xf32>, vector<2x256xf32> -> vector<2x256xf32>
    %c0_9 = arith.constant 0 : index
    %c0_10 = arith.constant 0 : index
    %10 = vector.load %arg4[%c0_9, %c0_10] : memref<1x256xf32, #tpu.memory_space<vmem>>, vector<1x256xf32>
    %11 = vector.broadcast %10 : vector<1x256xf32> to vector<2x256xf32>
    %12 = arith.addf %9, %11 : vector<2x256xf32>
    %cst_11 = arith.constant 0.000000e+00 : f32
    %13 = vector.broadcast %cst_11 : f32 to vector<2x256xf32>
    %14 = arith.maximumf %12, %13 : vector<2x256xf32>
    %c0_12 = arith.constant 0 : index
    %c0_13 = arith.constant 0 : index
    %15 = vector.load %arg5[%c0_12, %c0_13] : memref<256x128xf32, #tpu.memory_space<vmem>>, vector<256x128xf32>
    %cst_14 = arith.constant dense<0.000000e+00> : vector<2x128xf32>
    %16 = tpu.matmul %14, %15, %cst_14 {dimension_numbers = #tpu.dot_dimension_numbers<[1], [0], [0], [1], [0, 0, 1, 1], [], []>} : vector<2x256xf32>, vector<256x128xf32>, vector<2x128xf32> -> vector<2x128xf32>
    %c0_15 = arith.constant 0 : index
    %c0_16 = arith.constant 0 : index
    %17 = vector.load %arg6[%c0_15, %c0_16] : memref<1x128xf32, #tpu.memory_space<vmem>>, vector<1x128xf32>
    %18 = vector.broadcast %17 : vector<1x128xf32> to vector<2x128xf32>
    %19 = arith.addf %16, %18 : vector<2x128xf32>
    %c0_17 = arith.constant 0 : index
    %c0_18 = arith.constant 0 : index
    %20 = vector.load %arg7[%c0_17, %c0_18] : memref<2x128xf32, #tpu.memory_space<vmem>>, vector<2x128xf32>
    tpu.vector_store %arg7[%c0_17, %c0_18], %19 {strides = array<i32>} : memref<2x128xf32, #tpu.memory_space<vmem>>, vector<2x128xf32>,
    return
  }
}

module attributes {stable_mosaic.version = 11 : i64} {
  func.func @_mlp_max_kernel(%arg0: i32, %arg1: i32, %arg2: memref<1x16x8xbf16, #tpu.memory_space<vmem>>, %arg3: memref<1x8x64xbf16, #tpu.memory_space<vmem>>, %arg4: memref<1x64xf32, #tpu.memory_space<vmem>>, %arg5: memref<64x128xbf16, #tpu.memory_space<vmem>>, %arg6: memref<1x128xf32, #tpu.memory_space<vmem>>, %arg7: memref<128x1024xbf16, #tpu.memory_space<vmem>>, %arg8: memref<1x1024xf32, #tpu.memory_space<vmem>>, %arg9: memref<1x1x1024xf32, #tpu.memory_space<vmem>>, %arg10: memref<1x1024xf32, #tpu.memory_space<vmem>>) attributes {dimension_semantics = [#tpu.dimension_semantics<parallel>, #tpu.dimension_semantics<arbitrary>], iteration_bounds = array<i64: 2, 1>, scalar_prefetch = 0 : i64, scratch_operands = 1 : i64, tpu.core_type = #tpu.core_type<tc>, window_params = [{transform_indices = @transform_0, window_bounds = array<i64: 1, 16, 8>}, {transform_indices = @transform_1, window_bounds = array<i64: 1, 8, 64>}, {pipeline_mode = #tpu.pipeline_mode<synchronous>, transform_indices = @transform_2, window_bounds = array<i64: 1, 64>}, {pipeline_mode = #tpu.pipeline_mode<synchronous>, transform_indices = @transform_3, window_bounds = array<i64: 64, 128>}, {pipeline_mode = #tpu.pipeline_mode<synchronous>, transform_indices = @transform_4, window_bounds = array<i64: 1, 128>}, {pipeline_mode = #tpu.pipeline_mode<synchronous>, transform_indices = @transform_5, window_bounds = array<i64: 128, 1024>}, {pipeline_mode = #tpu.pipeline_mode<synchronous>, transform_indices = @transform_6, window_bounds = array<i64: 1, 1024>}, {transform_indices = @transform_7, window_bounds = array<i64: 1, 1, 1024>}]} {
    %c0_i32 = arith.constant 0 : i32
    %0 = arith.cmpi eq, %arg1, %c0_i32 : i32
    %1 = arith.extui %0 : i1 to i32
    %c0_i32_0 = arith.constant 0 : i32
    %2 = arith.cmpi ne, %1, %c0_i32_0 : i32
    scf.if %2 {
      %cst_58 = arith.constant 0xFF800000 : f32
      %73 = vector.broadcast %cst_58 : f32 to vector<1x1024xf32>
      %c0_59 = arith.constant 0 : index
      %c0_60 = arith.constant 0 : index
      %74 = vector.load %arg10[%c0_59, %c0_60] : memref<1x1024xf32, #tpu.memory_space<vmem>>, vector<1x1024xf32>
      tpu.vector_store %arg10[%c0_59, %c0_60], %73 {strides = array<i32>} : memref<1x1024xf32, #tpu.memory_space<vmem>>, vector<1x1024xf32>,
    } else {
    }
    %c0 = arith.constant 0 : index
    %c0_1 = arith.constant 0 : index
    %c0_2 = arith.constant 0 : index
    %3 = vector.load %arg2[%c0, %c0_1, %c0_2] : memref<1x16x8xbf16, #tpu.memory_space<vmem>>, vector<1x16x8xbf16>
    %4 = vector.shape_cast %3 : vector<1x16x8xbf16> to vector<16x8xbf16>
    %c0_3 = arith.constant 0 : index
    %c0_4 = arith.constant 0 : index
    %c0_5 = arith.constant 0 : index
    %5 = vector.load %arg3[%c0_3, %c0_4, %c0_5] : memref<1x8x64xbf16, #tpu.memory_space<vmem>>, vector<1x8x64xbf16>
    %6 = vector.shape_cast %5 : vector<1x8x64xbf16> to vector<8x64xbf16>
    %cst = arith.constant dense<0.000000e+00> : vector<16x64xf32>
    %7 = tpu.matmul %4, %6, %cst {dimension_numbers = #tpu.dot_dimension_numbers<[1], [0], [0], [1], [0, 0, 1, 1], [], []>} : vector<16x8xbf16>, vector<8x64xbf16>, vector<16x64xf32> -> vector<16x64xf32>
    %c0_6 = arith.constant 0 : index
    %c0_7 = arith.constant 0 : index
    %8 = vector.load %arg4[%c0_6, %c0_7] : memref<1x64xf32, #tpu.memory_space<vmem>>, vector<1x64xf32>
    %9 = vector.broadcast %8 : vector<1x64xf32> to vector<16x64xf32>
    %10 = arith.addf %7, %9 : vector<16x64xf32>
    %cst_8 = arith.constant 0.000000e+00 : f32
    %11 = vector.broadcast %cst_8 : f32 to vector<16x64xf32>
    %12 = arith.maximumf %10, %11 : vector<16x64xf32>
    %13 = arith.truncf %12 : vector<16x64xf32> to vector<16x64xbf16>
    %c0_9 = arith.constant 0 : index
    %c0_10 = arith.constant 0 : index
    %14 = vector.load %arg5[%c0_9, %c0_10] : memref<64x128xbf16, #tpu.memory_space<vmem>>, vector<64x128xbf16>
    %cst_11 = arith.constant dense<0.000000e+00> : vector<16x128xf32>
    %15 = tpu.matmul %13, %14, %cst_11 {dimension_numbers = #tpu.dot_dimension_numbers<[1], [0], [0], [1], [0, 0, 1, 1], [], []>} : vector<16x64xbf16>, vector<64x128xbf16>, vector<16x128xf32> -> vector<16x128xf32>
    %c0_12 = arith.constant 0 : index
    %c0_13 = arith.constant 0 : index
    %16 = vector.load %arg6[%c0_12, %c0_13] : memref<1x128xf32, #tpu.memory_space<vmem>>, vector<1x128xf32>
    %17 = vector.broadcast %16 : vector<1x128xf32> to vector<16x128xf32>
    %18 = arith.addf %15, %17 : vector<16x128xf32>
    %cst_14 = arith.constant 0.000000e+00 : f32
    %19 = vector.broadcast %cst_14 : f32 to vector<16x128xf32>
    %20 = arith.maximumf %18, %19 : vector<16x128xf32>
    %21 = arith.truncf %20 : vector<16x128xf32> to vector<16x128xbf16>
    %c0_15 = arith.constant 0 : index
    %c0_16 = arith.constant 0 : index
    %22 = vector.load %arg7[%c0_15, %c0_16] : memref<128x1024xbf16, #tpu.memory_space<vmem>>, vector<128x256xbf16>
    %cst_17 = arith.constant dense<0.000000e+00> : vector<16x256xf32>
    %23 = tpu.matmul %21, %22, %cst_17 {dimension_numbers = #tpu.dot_dimension_numbers<[1], [0], [0], [1], [0, 0, 1, 1], [], []>} : vector<16x128xbf16>, vector<128x256xbf16>, vector<16x256xf32> -> vector<16x256xf32>
    %c0_18 = arith.constant 0 : index
    %c0_19 = arith.constant 0 : index
    %24 = vector.load %arg8[%c0_18, %c0_19] : memref<1x1024xf32, #tpu.memory_space<vmem>>, vector<1x256xf32>
    %25 = vector.broadcast %24 : vector<1x256xf32> to vector<16x256xf32>
    %26 = arith.addf %23, %25 : vector<16x256xf32>
    %cst_20 = arith.constant 0.000000e+00 : f32
    %27 = vector.broadcast %cst_20 : f32 to vector<16x256xf32>
    %28 = arith.maximumf %26, %27 : vector<16x256xf32>
    %c0_21 = arith.constant 0 : index
    %c0_22 = arith.constant 0 : index
    %29 = vector.load %arg10[%c0_21, %c0_22] : memref<1x1024xf32, #tpu.memory_space<vmem>>, vector<1x256xf32>
    %cst_23 = arith.constant dense<0xFF800000> : vector<256xf32>
    %30 = vector.multi_reduction <maximumf>, %28, %cst_23 [0] : vector<16x256xf32> to vector<256xf32>
    %31 = vector.shape_cast %30 : vector<256xf32> to vector<1x256xf32>
    %32 = arith.maximumf %29, %31 : vector<1x256xf32>
    %c0_24 = arith.constant 0 : index
    %c0_25 = arith.constant 0 : index
    %33 = vector.load %arg10[%c0_24, %c0_25] : memref<1x1024xf32, #tpu.memory_space<vmem>>, vector<1x256xf32>
    tpu.vector_store %arg10[%c0_24, %c0_25], %32 {strides = array<i32>} : memref<1x1024xf32, #tpu.memory_space<vmem>>, vector<1x256xf32>,
    %c0_26 = arith.constant 0 : index
    %c256 = arith.constant 256 : index
    %34 = vector.load %arg7[%c0_26, %c256] : memref<128x1024xbf16, #tpu.memory_space<vmem>>, vector<128x256xbf16>
    %cst_27 = arith.constant dense<0.000000e+00> : vector<16x256xf32>
    %35 = tpu.matmul %21, %34, %cst_27 {dimension_numbers = #tpu.dot_dimension_numbers<[1], [0], [0], [1], [0, 0, 1, 1], [], []>} : vector<16x128xbf16>, vector<128x256xbf16>, vector<16x256xf32> -> vector<16x256xf32>
    %c0_28 = arith.constant 0 : index
    %c256_29 = arith.constant 256 : index
    %36 = vector.load %arg8[%c0_28, %c256_29] : memref<1x1024xf32, #tpu.memory_space<vmem>>, vector<1x256xf32>
    %37 = vector.broadcast %36 : vector<1x256xf32> to vector<16x256xf32>
    %38 = arith.addf %35, %37 : vector<16x256xf32>
    %cst_30 = arith.constant 0.000000e+00 : f32
    %39 = vector.broadcast %cst_30 : f32 to vector<16x256xf32>
    %40 = arith.maximumf %38, %39 : vector<16x256xf32>
    %c0_31 = arith.constant 0 : index
    %c256_32 = arith.constant 256 : index
    %41 = vector.load %arg10[%c0_31, %c256_32] : memref<1x1024xf32, #tpu.memory_space<vmem>>, vector<1x256xf32>
    %cst_33 = arith.constant dense<0xFF800000> : vector<256xf32>
    %42 = vector.multi_reduction <maximumf>, %40, %cst_33 [0] : vector<16x256xf32> to vector<256xf32>
    %43 = vector.shape_cast %42 : vector<256xf32> to vector<1x256xf32>
    %44 = arith.maximumf %41, %43 : vector<1x256xf32>
    %c0_34 = arith.constant 0 : index
    %c256_35 = arith.constant 256 : index
    %45 = vector.load %arg10[%c0_34, %c256_35] : memref<1x1024xf32, #tpu.memory_space<vmem>>, vector<1x256xf32>
    tpu.vector_store %arg10[%c0_34, %c256_35], %44 {strides = array<i32>} : memref<1x1024xf32, #tpu.memory_space<vmem>>, vector<1x256xf32>,
    %c0_36 = arith.constant 0 : index
    %c512 = arith.constant 512 : index
    %46 = vector.load %arg7[%c0_36, %c512] : memref<128x1024xbf16, #tpu.memory_space<vmem>>, vector<128x256xbf16>
    %cst_37 = arith.constant dense<0.000000e+00> : vector<16x256xf32>
    %47 = tpu.matmul %21, %46, %cst_37 {dimension_numbers = #tpu.dot_dimension_numbers<[1], [0], [0], [1], [0, 0, 1, 1], [], []>} : vector<16x128xbf16>, vector<128x256xbf16>, vector<16x256xf32> -> vector<16x256xf32>
    %c0_38 = arith.constant 0 : index
    %c512_39 = arith.constant 512 : index
    %48 = vector.load %arg8[%c0_38, %c512_39] : memref<1x1024xf32, #tpu.memory_space<vmem>>, vector<1x256xf32>
    %49 = vector.broadcast %48 : vector<1x256xf32> to vector<16x256xf32>
    %50 = arith.addf %47, %49 : vector<16x256xf32>
    %cst_40 = arith.constant 0.000000e+00 : f32
    %51 = vector.broadcast %cst_40 : f32 to vector<16x256xf32>
    %52 = arith.maximumf %50, %51 : vector<16x256xf32>
    %c0_41 = arith.constant 0 : index
    %c512_42 = arith.constant 512 : index
    %53 = vector.load %arg10[%c0_41, %c512_42] : memref<1x1024xf32, #tpu.memory_space<vmem>>, vector<1x256xf32>
    %cst_43 = arith.constant dense<0xFF800000> : vector<256xf32>
    %54 = vector.multi_reduction <maximumf>, %52, %cst_43 [0] : vector<16x256xf32> to vector<256xf32>
    %55 = vector.shape_cast %54 : vector<256xf32> to vector<1x256xf32>
    %56 = arith.maximumf %53, %55 : vector<1x256xf32>
    %c0_44 = arith.constant 0 : index
    %c512_45 = arith.constant 512 : index
    %57 = vector.load %arg10[%c0_44, %c512_45] : memref<1x1024xf32, #tpu.memory_space<vmem>>, vector<1x256xf32>
    tpu.vector_store %arg10[%c0_44, %c512_45], %56 {strides = array<i32>} : memref<1x1024xf32, #tpu.memory_space<vmem>>, vector<1x256xf32>,
    %c0_46 = arith.constant 0 : index
    %c768 = arith.constant 768 : index
    %58 = vector.load %arg7[%c0_46, %c768] : memref<128x1024xbf16, #tpu.memory_space<vmem>>, vector<128x256xbf16>
    %cst_47 = arith.constant dense<0.000000e+00> : vector<16x256xf32>
    %59 = tpu.matmul %21, %58, %cst_47 {dimension_numbers = #tpu.dot_dimension_numbers<[1], [0], [0], [1], [0, 0, 1, 1], [], []>} : vector<16x128xbf16>, vector<128x256xbf16>, vector<16x256xf32> -> vector<16x256xf32>
    %c0_48 = arith.constant 0 : index
    %c768_49 = arith.constant 768 : index
    %60 = vector.load %arg8[%c0_48, %c768_49] : memref<1x1024xf32, #tpu.memory_space<vmem>>, vector<1x256xf32>
    %61 = vector.broadcast %60 : vector<1x256xf32> to vector<16x256xf32>
    %62 = arith.addf %59, %61 : vector<16x256xf32>
    %cst_50 = arith.constant 0.000000e+00 : f32
    %63 = vector.broadcast %cst_50 : f32 to vector<16x256xf32>
    %64 = arith.maximumf %62, %63 : vector<16x256xf32>
    %c0_51 = arith.constant 0 : index
    %c768_52 = arith.constant 768 : index
    %65 = vector.load %arg10[%c0_51, %c768_52] : memref<1x1024xf32, #tpu.memory_space<vmem>>, vector<1x256xf32>
    %cst_53 = arith.constant dense<0xFF800000> : vector<256xf32>
    %66 = vector.multi_reduction <maximumf>, %64, %cst_53 [0] : vector<16x256xf32> to vector<256xf32>
    %67 = vector.shape_cast %66 : vector<256xf32> to vector<1x256xf32>
    %68 = arith.maximumf %65, %67 : vector<1x256xf32>
    %c0_54 = arith.constant 0 : index
    %c768_55 = arith.constant 768 : index
    %69 = vector.load %arg10[%c0_54, %c768_55] : memref<1x1024xf32, #tpu.memory_space<vmem>>, vector<1x256xf32>
    tpu.vector_store %arg10[%c0_54, %c768_55], %68 {strides = array<i32>} : memref<1x1024xf32, #tpu.memory_space<vmem>>, vector<1x256xf32>,
    %c0_i32_56 = arith.constant 0 : i32
    %70 = arith.cmpi eq, %arg1, %c0_i32_56 : i32
    %71 = arith.extui %70 : i1 to i32
    %c0_i32_57 = arith.constant 0 : i32
    %72 = arith.cmpi ne, %71, %c0_i32_57 : i32
    scf.if %72 {
      %c0_58 = arith.constant 0 : index
      %c0_59 = arith.constant 0 : index
      %73 = vector.load %arg10[%c0_58, %c0_59] : memref<1x1024xf32, #tpu.memory_space<vmem>>, vector<1x1024xf32>
      %c0_60 = arith.constant 0 : index
      %c0_61 = arith.constant 0 : index
      %c0_62 = arith.constant 0 : index
      %74 = vector.load %arg9[%c0_60, %c0_61, %c0_62] : memref<1x1x1024xf32, #tpu.memory_space<vmem>>, vector<1x1x1024xf32>
      %75 = vector.shape_cast %74 : vector<1x1x1024xf32> to vector<1x1024xf32>
      %76 = vector.shape_cast %73 : vector<1x1024xf32> to vector<1x1x1024xf32>
      tpu.vector_store %arg9[%c0_60, %c0_61, %c0_62], %76 {strides = array<i32>} : memref<1x1x1024xf32, #tpu.memory_space<vmem>>, vector<1x1x1024xf32>,
    } else {
    }
    return
  }
  func.func @transform_0(%arg0: i32, %arg1: i32) -> (i32, i32, i32) {
    %c0_i32 = arith.constant 0 : i32
    %c0_i32_0 = arith.constant 0 : i32
    return %arg0, %arg1, %c0_i32 : i32, i32, i32
  }
  func.func @transform_1(%arg0: i32, %arg1: i32) -> (i32, i32, i32) {
    %c0_i32 = arith.constant 0 : i32
    %c0_i32_0 = arith.constant 0 : i32
    %c0_i32_1 = arith.constant 0 : i32
    return %arg0, %c0_i32, %c0_i32_0 : i32, i32, i32
  }
  func.func @transform_2(%arg0: i32, %arg1: i32) -> (i32, i32) {
    %c0_i32 = arith.constant 0 : i32
    %c0_i32_0 = arith.constant 0 : i32
    %c0_i32_1 = arith.constant 0 : i32
    return %c0_i32, %c0_i32_0 : i32, i32
  }
  func.func @transform_3(%arg0: i32, %arg1: i32) -> (i32, i32) {
    %c0_i32 = arith.constant 0 : i32
    %c0_i32_0 = arith.constant 0 : i32
    %c0_i32_1 = arith.constant 0 : i32
    return %c0_i32, %c0_i32_0 : i32, i32
  }
  func.func @transform_4(%arg0: i32, %arg1: i32) -> (i32, i32) {
    %c0_i32 = arith.constant 0 : i32
    %c0_i32_0 = arith.constant 0 : i32
    %c0_i32_1 = arith.constant 0 : i32
    return %c0_i32, %c0_i32_0 : i32, i32
  }
  func.func @transform_5(%arg0: i32, %arg1: i32) -> (i32, i32) {
    %c0_i32 = arith.constant 0 : i32
    %c0_i32_0 = arith.constant 0 : i32
    %c0_i32_1 = arith.constant 0 : i32
    return %c0_i32, %c0_i32_0 : i32, i32
  }
  func.func @transform_6(%arg0: i32, %arg1: i32) -> (i32, i32) {
    %c0_i32 = arith.constant 0 : i32
    %c0_i32_0 = arith.constant 0 : i32
    %c0_i32_1 = arith.constant 0 : i32
    return %c0_i32, %c0_i32_0 : i32, i32
  }
  func.func @transform_7(%arg0: i32, %arg1: i32) -> (i32, i32, i32) {
    %c0_i32 = arith.constant 0 : i32
    %c0_i32_0 = arith.constant 0 : i32
    %c0_i32_1 = arith.constant 0 : i32
    return %arg0, %c0_i32, %c0_i32_0 : i32, i32, i32
  }
}

module attributes {stable_mosaic.version = 11 : i64} {
  func.func @_mlp_max_kernel(%arg0: i32, %arg1: i32, %arg2: memref<1x16x8xbf16, #tpu.memory_space<vmem>>, %arg3: memref<1x8x64xbf16, #tpu.memory_space<vmem>>, %arg4: memref<1x64xf32, #tpu.memory_space<vmem>>, %arg5: memref<64x128xbf16, #tpu.memory_space<vmem>>, %arg6: memref<1x128xf32, #tpu.memory_space<vmem>>, %arg7: memref<128x1024xbf16, #tpu.memory_space<vmem>>, %arg8: memref<1x1024xf32, #tpu.memory_space<vmem>>, %arg9: memref<1x1x1024xf32, #tpu.memory_space<vmem>>, %arg10: memref<1x1024xf32, #tpu.memory_space<vmem>>) attributes {dimension_semantics = [#tpu.dimension_semantics<parallel>, #tpu.dimension_semantics<arbitrary>], iteration_bounds = array<i64: 2, 1>, scalar_prefetch = 0 : i64, scratch_operands = 1 : i64, tpu.core_type = #tpu.core_type<tc>, window_params = [{transform_indices = @transform_0, window_bounds = array<i64: 1, 16, 8>}, {transform_indices = @transform_1, window_bounds = array<i64: 1, 8, 64>}, {pipeline_mode = #tpu.pipeline_mode<synchronous>, transform_indices = @transform_2, window_bounds = array<i64: 1, 64>}, {pipeline_mode = #tpu.pipeline_mode<synchronous>, transform_indices = @transform_3, window_bounds = array<i64: 64, 128>}, {pipeline_mode = #tpu.pipeline_mode<synchronous>, transform_indices = @transform_4, window_bounds = array<i64: 1, 128>}, {pipeline_mode = #tpu.pipeline_mode<synchronous>, transform_indices = @transform_5, window_bounds = array<i64: 128, 1024>}, {pipeline_mode = #tpu.pipeline_mode<synchronous>, transform_indices = @transform_6, window_bounds = array<i64: 1, 1024>}, {transform_indices = @transform_7, window_bounds = array<i64: 1, 1, 1024>}]} {
    %c0_i32 = arith.constant 0 : i32
    %0 = arith.cmpi eq, %arg1, %c0_i32 : i32
    %1 = arith.extui %0 : i1 to i32
    %c0_i32_0 = arith.constant 0 : i32
    %2 = arith.cmpi ne, %1, %c0_i32_0 : i32
    scf.if %2 {
      %cst_54 = arith.constant 0xFF800000 : f32
      %65 = vector.broadcast %cst_54 : f32 to vector<1x1024xf32>
      %c0_55 = arith.constant 0 : index
      %c0_56 = arith.constant 0 : index
      %66 = vector.load %arg10[%c0_55, %c0_56] : memref<1x1024xf32, #tpu.memory_space<vmem>>, vector<1x1024xf32>
      tpu.vector_store %arg10[%c0_55, %c0_56], %65 {strides = array<i32>} : memref<1x1024xf32, #tpu.memory_space<vmem>>, vector<1x1024xf32>,
    } else {
    }
    %c0 = arith.constant 0 : index
    %c0_1 = arith.constant 0 : index
    %c0_2 = arith.constant 0 : index
    %3 = vector.load %arg2[%c0, %c0_1, %c0_2] : memref<1x16x8xbf16, #tpu.memory_space<vmem>>, vector<1x16x8xbf16>
    %4 = vector.shape_cast %3 : vector<1x16x8xbf16> to vector<16x8xbf16>
    %c0_3 = arith.constant 0 : index
    %c0_4 = arith.constant 0 : index
    %c0_5 = arith.constant 0 : index
    %5 = vector.load %arg3[%c0_3, %c0_4, %c0_5] : memref<1x8x64xbf16, #tpu.memory_space<vmem>>, vector<1x8x64xbf16>
    %6 = vector.shape_cast %5 : vector<1x8x64xbf16> to vector<8x64xbf16>
    %cst = arith.constant dense<0.000000e+00> : vector<16x64xf32>
    %7 = tpu.matmul %4, %6, %cst {dimension_numbers = #tpu.dot_dimension_numbers<[1], [0], [0], [1], [0, 0, 1, 1], [], []>} : vector<16x8xbf16>, vector<8x64xbf16>, vector<16x64xf32> -> vector<16x64xf32>
    %c0_6 = arith.constant 0 : index
    %c0_7 = arith.constant 0 : index
    %8 = vector.load %arg4[%c0_6, %c0_7] : memref<1x64xf32, #tpu.memory_space<vmem>>, vector<1x64xf32>
    %9 = vector.broadcast %8 : vector<1x64xf32> to vector<16x64xf32>
    %10 = arith.addf %7, %9 : vector<16x64xf32>
    %cst_8 = arith.constant 0.000000e+00 : f32
    %11 = vector.broadcast %cst_8 : f32 to vector<16x64xf32>
    %12 = arith.maximumf %10, %11 : vector<16x64xf32>
    %13 = arith.truncf %12 : vector<16x64xf32> to vector<16x64xbf16>
    %c0_9 = arith.constant 0 : index
    %c0_10 = arith.constant 0 : index
    %14 = vector.load %arg5[%c0_9, %c0_10] : memref<64x128xbf16, #tpu.memory_space<vmem>>, vector<64x128xbf16>
    %cst_11 = arith.constant dense<0.000000e+00> : vector<16x128xf32>
    %15 = tpu.matmul %13, %14, %cst_11 {dimension_numbers = #tpu.dot_dimension_numbers<[1], [0], [0], [1], [0, 0, 1, 1], [], []>} : vector<16x64xbf16>, vector<64x128xbf16>, vector<16x128xf32> -> vector<16x128xf32>
    %c0_12 = arith.constant 0 : index
    %c0_13 = arith.constant 0 : index
    %16 = vector.load %arg6[%c0_12, %c0_13] : memref<1x128xf32, #tpu.memory_space<vmem>>, vector<1x128xf32>
    %17 = vector.broadcast %16 : vector<1x128xf32> to vector<16x128xf32>
    %18 = arith.addf %15, %17 : vector<16x128xf32>
    %cst_14 = arith.constant 0.000000e+00 : f32
    %19 = vector.broadcast %cst_14 : f32 to vector<16x128xf32>
    %20 = arith.maximumf %18, %19 : vector<16x128xf32>
    %21 = arith.truncf %20 : vector<16x128xf32> to vector<16x128xbf16>
    %c0_15 = arith.constant 0 : index
    %c0_16 = arith.constant 0 : index
    %22 = vector.load %arg7[%c0_15, %c0_16] : memref<128x1024xbf16, #tpu.memory_space<vmem>>, vector<128x256xbf16>
    %cst_17 = arith.constant dense<0.000000e+00> : vector<16x256xf32>
    %23 = tpu.matmul %21, %22, %cst_17 {dimension_numbers = #tpu.dot_dimension_numbers<[1], [0], [0], [1], [0, 0, 1, 1], [], []>} : vector<16x128xbf16>, vector<128x256xbf16>, vector<16x256xf32> -> vector<16x256xf32>
    %c0_18 = arith.constant 0 : index
    %c0_19 = arith.constant 0 : index
    %24 = vector.load %arg8[%c0_18, %c0_19] : memref<1x1024xf32, #tpu.memory_space<vmem>>, vector<1x256xf32>
    %25 = vector.broadcast %24 : vector<1x256xf32> to vector<16x256xf32>
    %26 = arith.addf %23, %25 : vector<16x256xf32>
    %c0_20 = arith.constant 0 : index
    %c0_21 = arith.constant 0 : index
    %27 = vector.load %arg10[%c0_20, %c0_21] : memref<1x1024xf32, #tpu.memory_space<vmem>>, vector<1x256xf32>
    %cst_22 = arith.constant dense<0xFF800000> : vector<256xf32>
    %28 = vector.multi_reduction <maximumf>, %26, %cst_22 [0] : vector<16x256xf32> to vector<256xf32>
    %29 = vector.shape_cast %28 : vector<256xf32> to vector<1x256xf32>
    %30 = arith.maximumf %27, %29 : vector<1x256xf32>
    %c0_23 = arith.constant 0 : index
    %c0_24 = arith.constant 0 : index
    %31 = vector.load %arg10[%c0_23, %c0_24] : memref<1x1024xf32, #tpu.memory_space<vmem>>, vector<1x256xf32>
    tpu.vector_store %arg10[%c0_23, %c0_24], %30 {strides = array<i32>} : memref<1x1024xf32, #tpu.memory_space<vmem>>, vector<1x256xf32>,
    %c0_25 = arith.constant 0 : index
    %c256 = arith.constant 256 : index
    %32 = vector.load %arg7[%c0_25, %c256] : memref<128x1024xbf16, #tpu.memory_space<vmem>>, vector<128x256xbf16>
    %cst_26 = arith.constant dense<0.000000e+00> : vector<16x256xf32>
    %33 = tpu.matmul %21, %32, %cst_26 {dimension_numbers = #tpu.dot_dimension_numbers<[1], [0], [0], [1], [0, 0, 1, 1], [], []>} : vector<16x128xbf16>, vector<128x256xbf16>, vector<16x256xf32> -> vector<16x256xf32>
    %c0_27 = arith.constant 0 : index
    %c256_28 = arith.constant 256 : index
    %34 = vector.load %arg8[%c0_27, %c256_28] : memref<1x1024xf32, #tpu.memory_space<vmem>>, vector<1x256xf32>
    %35 = vector.broadcast %34 : vector<1x256xf32> to vector<16x256xf32>
    %36 = arith.addf %33, %35 : vector<16x256xf32>
    %c0_29 = arith.constant 0 : index
    %c256_30 = arith.constant 256 : index
    %37 = vector.load %arg10[%c0_29, %c256_30] : memref<1x1024xf32, #tpu.memory_space<vmem>>, vector<1x256xf32>
    %cst_31 = arith.constant dense<0xFF800000> : vector<256xf32>
    %38 = vector.multi_reduction <maximumf>, %36, %cst_31 [0] : vector<16x256xf32> to vector<256xf32>
    %39 = vector.shape_cast %38 : vector<256xf32> to vector<1x256xf32>
    %40 = arith.maximumf %37, %39 : vector<1x256xf32>
    %c0_32 = arith.constant 0 : index
    %c256_33 = arith.constant 256 : index
    %41 = vector.load %arg10[%c0_32, %c256_33] : memref<1x1024xf32, #tpu.memory_space<vmem>>, vector<1x256xf32>
    tpu.vector_store %arg10[%c0_32, %c256_33], %40 {strides = array<i32>} : memref<1x1024xf32, #tpu.memory_space<vmem>>, vector<1x256xf32>,
    %c0_34 = arith.constant 0 : index
    %c512 = arith.constant 512 : index
    %42 = vector.load %arg7[%c0_34, %c512] : memref<128x1024xbf16, #tpu.memory_space<vmem>>, vector<128x256xbf16>
    %cst_35 = arith.constant dense<0.000000e+00> : vector<16x256xf32>
    %43 = tpu.matmul %21, %42, %cst_35 {dimension_numbers = #tpu.dot_dimension_numbers<[1], [0], [0], [1], [0, 0, 1, 1], [], []>} : vector<16x128xbf16>, vector<128x256xbf16>, vector<16x256xf32> -> vector<16x256xf32>
    %c0_36 = arith.constant 0 : index
    %c512_37 = arith.constant 512 : index
    %44 = vector.load %arg8[%c0_36, %c512_37] : memref<1x1024xf32, #tpu.memory_space<vmem>>, vector<1x256xf32>
    %45 = vector.broadcast %44 : vector<1x256xf32> to vector<16x256xf32>
    %46 = arith.addf %43, %45 : vector<16x256xf32>
    %c0_38 = arith.constant 0 : index
    %c512_39 = arith.constant 512 : index
    %47 = vector.load %arg10[%c0_38, %c512_39] : memref<1x1024xf32, #tpu.memory_space<vmem>>, vector<1x256xf32>
    %cst_40 = arith.constant dense<0xFF800000> : vector<256xf32>
    %48 = vector.multi_reduction <maximumf>, %46, %cst_40 [0] : vector<16x256xf32> to vector<256xf32>
    %49 = vector.shape_cast %48 : vector<256xf32> to vector<1x256xf32>
    %50 = arith.maximumf %47, %49 : vector<1x256xf32>
    %c0_41 = arith.constant 0 : index
    %c512_42 = arith.constant 512 : index
    %51 = vector.load %arg10[%c0_41, %c512_42] : memref<1x1024xf32, #tpu.memory_space<vmem>>, vector<1x256xf32>
    tpu.vector_store %arg10[%c0_41, %c512_42], %50 {strides = array<i32>} : memref<1x1024xf32, #tpu.memory_space<vmem>>, vector<1x256xf32>,
    %c0_43 = arith.constant 0 : index
    %c768 = arith.constant 768 : index
    %52 = vector.load %arg7[%c0_43, %c768] : memref<128x1024xbf16, #tpu.memory_space<vmem>>, vector<128x256xbf16>
    %cst_44 = arith.constant dense<0.000000e+00> : vector<16x256xf32>
    %53 = tpu.matmul %21, %52, %cst_44 {dimension_numbers = #tpu.dot_dimension_numbers<[1], [0], [0], [1], [0, 0, 1, 1], [], []>} : vector<16x128xbf16>, vector<128x256xbf16>, vector<16x256xf32> -> vector<16x256xf32>
    %c0_45 = arith.constant 0 : index
    %c768_46 = arith.constant 768 : index
    %54 = vector.load %arg8[%c0_45, %c768_46] : memref<1x1024xf32, #tpu.memory_space<vmem>>, vector<1x256xf32>
    %55 = vector.broadcast %54 : vector<1x256xf32> to vector<16x256xf32>
    %56 = arith.addf %53, %55 : vector<16x256xf32>
    %c0_47 = arith.constant 0 : index
    %c768_48 = arith.constant 768 : index
    %57 = vector.load %arg10[%c0_47, %c768_48] : memref<1x1024xf32, #tpu.memory_space<vmem>>, vector<1x256xf32>
    %cst_49 = arith.constant dense<0xFF800000> : vector<256xf32>
    %58 = vector.multi_reduction <maximumf>, %56, %cst_49 [0] : vector<16x256xf32> to vector<256xf32>
    %59 = vector.shape_cast %58 : vector<256xf32> to vector<1x256xf32>
    %60 = arith.maximumf %57, %59 : vector<1x256xf32>
    %c0_50 = arith.constant 0 : index
    %c768_51 = arith.constant 768 : index
    %61 = vector.load %arg10[%c0_50, %c768_51] : memref<1x1024xf32, #tpu.memory_space<vmem>>, vector<1x256xf32>
    tpu.vector_store %arg10[%c0_50, %c768_51], %60 {strides = array<i32>} : memref<1x1024xf32, #tpu.memory_space<vmem>>, vector<1x256xf32>,
    %c0_i32_52 = arith.constant 0 : i32
    %62 = arith.cmpi eq, %arg1, %c0_i32_52 : i32
    %63 = arith.extui %62 : i1 to i32
    %c0_i32_53 = arith.constant 0 : i32
    %64 = arith.cmpi ne, %63, %c0_i32_53 : i32
    scf.if %64 {
      %c0_54 = arith.constant 0 : index
      %c0_55 = arith.constant 0 : index
      %65 = vector.load %arg10[%c0_54, %c0_55] : memref<1x1024xf32, #tpu.memory_space<vmem>>, vector<1x1024xf32>
      %c0_56 = arith.constant 0 : index
      %c0_57 = arith.constant 0 : index
      %c0_58 = arith.constant 0 : index
      %66 = vector.load %arg9[%c0_56, %c0_57, %c0_58] : memref<1x1x1024xf32, #tpu.memory_space<vmem>>, vector<1x1x1024xf32>
      %67 = vector.shape_cast %66 : vector<1x1x1024xf32> to vector<1x1024xf32>
      %68 = vector.shape_cast %65 : vector<1x1024xf32> to vector<1x1x1024xf32>
      tpu.vector_store %arg9[%c0_56, %c0_57, %c0_58], %68 {strides = array<i32>} : memref<1x1x1024xf32, #tpu.memory_space<vmem>>, vector<1x1x1024xf32>,
    } else {
    }
    return
  }
  func.func @transform_0(%arg0: i32, %arg1: i32) -> (i32, i32, i32) {
    %c0_i32 = arith.constant 0 : i32
    %c0_i32_0 = arith.constant 0 : i32
    return %arg0, %arg1, %c0_i32 : i32, i32, i32
  }
  func.func @transform_1(%arg0: i32, %arg1: i32) -> (i32, i32, i32) {
    %c0_i32 = arith.constant 0 : i32
    %c0_i32_0 = arith.constant 0 : i32
    %c0_i32_1 = arith.constant 0 : i32
    return %arg0, %c0_i32, %c0_i32_0 : i32, i32, i32
  }
  func.func @transform_2(%arg0: i32, %arg1: i32) -> (i32, i32) {
    %c0_i32 = arith.constant 0 : i32
    %c0_i32_0 = arith.constant 0 : i32
    %c0_i32_1 = arith.constant 0 : i32
    return %c0_i32, %c0_i32_0 : i32, i32
  }
  func.func @transform_3(%arg0: i32, %arg1: i32) -> (i32, i32) {
    %c0_i32 = arith.constant 0 : i32
    %c0_i32_0 = arith.constant 0 : i32
    %c0_i32_1 = arith.constant 0 : i32
    return %c0_i32, %c0_i32_0 : i32, i32
  }
  func.func @transform_4(%arg0: i32, %arg1: i32) -> (i32, i32) {
    %c0_i32 = arith.constant 0 : i32
    %c0_i32_0 = arith.constant 0 : i32
    %c0_i32_1 = arith.constant 0 : i32
    return %c0_i32, %c0_i32_0 : i32, i32
  }
  func.func @transform_5(%arg0: i32, %arg1: i32) -> (i32, i32) {
    %c0_i32 = arith.constant 0 : i32
    %c0_i32_0 = arith.constant 0 : i32
    %c0_i32_1 = arith.constant 0 : i32
    return %c0_i32, %c0_i32_0 : i32, i32
  }
  func.func @transform_6(%arg0: i32, %arg1: i32) -> (i32, i32) {
    %c0_i32 = arith.constant 0 : i32
    %c0_i32_0 = arith.constant 0 : i32
    %c0_i32_1 = arith.constant 0 : i32
    return %c0_i32, %c0_i32_0 : i32, i32
  }
  func.func @transform_7(%arg0: i32, %arg1: i32) -> (i32, i32, i32) {
    %c0_i32 = arith.constant 0 : i32
    %c0_i32_0 = arith.constant 0 : i32
    %c0_i32_1 = arith.constant 0 : i32
    return %arg0, %c0_i32, %c0_i32_0 : i32, i32, i32
  }
}

</mosaic_0001>

<llo_original>
// kernel: _lambda_.3
$region0: #{_lambda_.3}
  #allocation0 [shape = 'u32[]', space=smem, size = 0x4, offset = 0x4, fixed_abs, tag = 'smem constant byte address 0x4 - core index']
  #allocation1 [shape = 'u32[144,128]{1,0:T(1,128)}', space=vmem, size = 0x12000, scoped, tag = 'internal scratch']
  #allocation2 [shape = 'f32[1,1024]{1,0:T(1,128)}', space=vmem, size = 0x1000, scoped, tag = 'scratch operand']
  %s0 = inlined_call_operand.vmem [shape: bf16[2,16,8], index: 0, kind: input, shape index: {}]
  %s1 = inlined_call_operand.vmem [shape: bf16[2,8,64], index: 1, kind: input, shape index: {}]
  %s2 = inlined_call_operand.hbm [shape: f32[1,64], index: 2, kind: input, shape index: {}]
  %s3 = inlined_call_operand.hbm [shape: bf16[64,128], index: 3, kind: input, shape index: {}]
  %s4 = inlined_call_operand.hbm [shape: f32[1,128], index: 4, kind: input, shape index: {}]
  %s5 = inlined_call_operand.vmem [shape: bf16[128,1024], index: 5, kind: input, shape index: {}]
  %s6 = inlined_call_operand.hbm [shape: f32[1,1024], index: 6, kind: input, shape index: {}]
  %s7 = inlined_call_operand.vmem [shape: f32[2,1,1024], index: 7, kind: output, shape index: {}]
  %s8 = sld [smem:[#allocation0]]
  $region85: #{_lambda_.3} parent=0
    _
  %s10 = ssub.s32 1, %s8
  %s11 = scalar_select 0, %s10, %s8
  $region1: #{_lambda_.3} parent=0
    #allocation3 [shape = 'u8[512]{0}', space=vmem, size = 0x400, scoped, tag = 'input window, operand 2, single buffered']
    #allocation4 [shape = 's32[2]{0}', space=sflag, size = 0x8, scoped, tag = 'scoped memory for _lambda_.3']
    #allocation5 [shape = 'u8[16384]{0}', space=vmem, size = 0x4000, scoped, tag = 'input window, operand 3, single buffered']
    #allocation6 [shape = 's32[1]{0}', space=sflag, size = 0x4, scoped, tag = 'scoped memory for _lambda_.3']
    #allocation7 [shape = 'u8[512]{0}', space=vmem, size = 0x400, scoped, tag = 'input window, operand 4, single buffered']
    #allocation8 [shape = 'u8[4096]{0}', space=vmem, size = 0x1000, scoped, tag = 'input window, operand 6, single buffered']
    #allocation9 [shape = 's32[1]{0}', space=sflag, size = 0x4, scoped, tag = 'scoped memory for _lambda_.3']
    %12 = vsyncpa [#allocation4], 0
    %13 = vsyncpa [#allocation6], 0
    %14 = vsyncpa [#allocation9], 0
    loop: start=0, step=1, limit=4
    $region2: #{_lambda_.3} parent=1 // loop_pre_header
      _
    $region3: #{_lambda_.3} parent=1 // loop_header
      %s16 = sphi 0, %s20
      %p17 = scmp.ge.s32.totalorder %s16, 4
      %s23 = sphi 0, %s35
      %s24 = sphi 0, %s31
      %s25 = sphi 0, %s23
      %s26 = sphi 0, %s24
      %s27 = sphi 0, %s25
      %s28 = sphi 0, %s26
      %s40 = sphi 0, %s42
      %s43 = sphi 0, %s40
      %s44 = sphi 0, %s43
      %s60 = sphi 0, %s44
      %s66 = sphi 0, %s68
      %s69 = sphi 0, %s66
      %s70 = sphi 0, %s69
      %s86 = sphi 0, %s70
      %s90 = sphi 0, %s90
      %s92 = sphi 0, %s90
      %s93 = sphi 0, %s92
      %s107 = sphi 0, %s93
      %s111 = sphi 0, %s111
      %s113 = sphi 0, %s111
      %s114 = sphi 0, %s113
      %s128 = sphi 0, %s114
      %s132 = sphi 0, %s132
      %s134 = sphi 0, %s132
      %s135 = sphi 0, %s134
      %s149 = sphi 0, %s135
      %s153 = sphi 0, %s153
      %s155 = sphi 0, %s153
      %s156 = sphi 0, %s155
      %s170 = sphi 0, %s156
      %s174 = sphi 0, %s174
      %s176 = sphi 0, %s174
      %s177 = sphi 0, %s176
      %s191 = sphi 0, %s177
      %s197 = sphi 0, %s199
      %s200 = sphi 0, %s197
      %s201 = sphi 0, %s200
      %s217 = sphi 0, %s201
    $region4: #{_lambda_.3} parent=1 // loop_header_branch
      %19 = sbr.rel (%p17) target = $region8
    $region5: #{_lambda_.3} parent=1 // loop_body
      %s21 = ssub.s32 %s16, 1
      %s22 = ssub.s32 %s16, 2
      %s29 = sadd.s32 1, %s24
      %p30 = scmp.ge.s32.totalorder %s29, 1
      %s31 = scalar_select %p30, 0, %s29
      %s32 = sadd.s32 1, %s23
      %s33 = scalar_select %p30, %s32, %s23
      %p34 = scmp.ge.s32.totalorder %s33, 2
      %s35 = scalar_select %p34, 0, %s33
      %s36 = ssub.s32 %s23, %s35
      %s37 = ssub.s32 %s24, %s31
      %s38 = sor.u32 %s36, %s37
      %p39 = scmp.eq.s32.totalorder %s38, 0
      %s41 = sadd.s32 %s40, 1
      %s42 = scalar_select %p39, %s40, %s41
      %p45 = pneg %p39
      %p46 = scmp.eq.s32.totalorder %s16, 1
      %p47 = por %p45, %p46
      %p48 = scmp.ne.s32.totalorder %s40, %s43
      %p49 = scmp.eq.s32.totalorder %s16, 0
      %p50 = por %p48, %p49
      %p51 = scmp.ne.s32.totalorder %s40, %s43
      %p52 = scmp.eq.s32.totalorder %s21, 1
      %p53 = por %p51, %p52
      %p54 = scmp.ne.s32.totalorder %s43, %s44
      %p55 = scmp.eq.s32.totalorder %s21, 0
      %p56 = por %p54, %p55
      %p57 = scmp.ne.s32.totalorder %s43, %s44
      %p58 = scmp.eq.s32.totalorder %s22, 1
      %p59 = por %p57, %p58
      %p61 = scmp.ne.s32.totalorder %s44, %s60
      %p62 = scmp.eq.s32.totalorder %s22, 0
      %p63 = por %p61, %p62
      %s64 = ssub.s32 %s23, %s35
      %p65 = scmp.eq.s32.totalorder %s64, 0
      %s67 = sadd.s32 %s66, 1
      %s68 = scalar_select %p65, %s66, %s67
      %p71 = pneg %p65
      %p72 = scmp.eq.s32.totalorder %s16, 1
      %p73 = por %p71, %p72
      %p74 = scmp.ne.s32.totalorder %s66, %s69
      %p75 = scmp.eq.s32.totalorder %s16, 0
      %p76 = por %p74, %p75
      %p77 = scmp.ne.s32.totalorder %s66, %s69
      %p78 = scmp.eq.s32.totalorder %s21, 1
      %p79 = por %p77, %p78
      %p80 = scmp.ne.s32.totalorder %s69, %s70
      %p81 = scmp.eq.s32.totalorder %s21, 0
      %p82 = por %p80, %p81
      %p83 = scmp.ne.s32.totalorder %s69, %s70
      %p84 = scmp.eq.s32.totalorder %s22, 1
      %p85 = por %p83, %p84
      %p87 = scmp.ne.s32.totalorder %s70, %s86
      %p88 = scmp.eq.s32.totalorder %s22, 0
      %p89 = por %p87, %p88
      %s91 = sadd.s32 %s90, 1
      %p94 = scmp.eq.s32.totalorder %s16, 1
      %p95 = scmp.ne.s32.totalorder %s90, %s92
      %p96 = scmp.eq.s32.totalorder %s16, 0
      %p97 = por %p95, %p96
      %p98 = scmp.ne.s32.totalorder %s90, %s92
      %p99 = scmp.eq.s32.totalorder %s21, 1
      %p100 = por %p98, %p99
      %p101 = scmp.ne.s32.totalorder %s92, %s93
      %p102 = scmp.eq.s32.totalorder %s21, 0
      %p103 = por %p101, %p102
      %p104 = scmp.ne.s32.totalorder %s92, %s93
      %p105 = scmp.eq.s32.totalorder %s22, 1
      %p106 = por %p104, %p105
      %p108 = scmp.ne.s32.totalorder %s93, %s107
      %p109 = scmp.eq.s32.totalorder %s22, 0
      %p110 = por %p108, %p109
      %s112 = sadd.s32 %s111, 1
      %p115 = scmp.eq.s32.totalorder %s16, 1
      %p116 = scmp.ne.s32.totalorder %s111, %s113
      %p117 = scmp.eq.s32.totalorder %s16, 0
      %p118 = por %p116, %p117
      %p119 = scmp.ne.s32.totalorder %s111, %s113
      %p120 = scmp.eq.s32.totalorder %s21, 1
      %p121 = por %p119, %p120
      %p122 = scmp.ne.s32.totalorder %s113, %s114
      %p123 = scmp.eq.s32.totalorder %s21, 0
      %p124 = por %p122, %p123
      %p125 = scmp.ne.s32.totalorder %s113, %s114
      %p126 = scmp.eq.s32.totalorder %s22, 1
      %p127 = por %p125, %p126
      %p129 = scmp.ne.s32.totalorder %s114, %s128
      %p130 = scmp.eq.s32.totalorder %s22, 0
      %p131 = por %p129, %p130
      %s133 = sadd.s32 %s132, 1
      %p136 = scmp.eq.s32.totalorder %s16, 1
      %p137 = scmp.ne.s32.totalorder %s132, %s134
      %p138 = scmp.eq.s32.totalorder %s16, 0
      %p139 = por %p137, %p138
      %p140 = scmp.ne.s32.totalorder %s132, %s134
      %p141 = scmp.eq.s32.totalorder %s21, 1
      %p142 = por %p140, %p141
      %p143 = scmp.ne.s32.totalorder %s134, %s135
      %p144 = scmp.eq.s32.totalorder %s21, 0
      %p145 = por %p143, %p144
      %p146 = scmp.ne.s32.totalorder %s134, %s135
      %p147 = scmp.eq.s32.totalorder %s22, 1
      %p148 = por %p146, %p147
      %p150 = scmp.ne.s32.totalorder %s135, %s149
      %p151 = scmp.eq.s32.totalorder %s22, 0
      %p152 = por %p150, %p151
      %s154 = sadd.s32 %s153, 1
      %p157 = scmp.eq.s32.totalorder %s16, 1
      %p158 = scmp.ne.s32.totalorder %s153, %s155
      %p159 = scmp.eq.s32.totalorder %s16, 0
      %p160 = por %p158, %p159
      %p161 = scmp.ne.s32.totalorder %s153, %s155
      %p162 = scmp.eq.s32.totalorder %s21, 1
      %p163 = por %p161, %p162
      %p164 = scmp.ne.s32.totalorder %s155, %s156
      %p165 = scmp.eq.s32.totalorder %s21, 0
      %p166 = por %p164, %p165
      %p167 = scmp.ne.s32.totalorder %s155, %s156
      %p168 = scmp.eq.s32.totalorder %s22, 1
      %p169 = por %p167, %p168
      %p171 = scmp.ne.s32.totalorder %s156, %s170
      %p172 = scmp.eq.s32.totalorder %s22, 0
      %p173 = por %p171, %p172
      %s175 = sadd.s32 %s174, 1
      %p178 = scmp.eq.s32.totalorder %s16, 1
      %p179 = scmp.ne.s32.totalorder %s174, %s176
      %p180 = scmp.eq.s32.totalorder %s16, 0
      %p181 = por %p179, %p180
      %p182 = scmp.ne.s32.totalorder %s174, %s176
      %p183 = scmp.eq.s32.totalorder %s21, 1
      %p184 = por %p182, %p183
      %p185 = scmp.ne.s32.totalorder %s176, %s177
      %p186 = scmp.eq.s32.totalorder %s21, 0
      %p187 = por %p185, %p186
      %p188 = scmp.ne.s32.totalorder %s176, %s177
      %p189 = scmp.eq.s32.totalorder %s22, 1
      %p190 = por %p188, %p189
      %p192 = scmp.ne.s32.totalorder %s177, %s191
      %p193 = scmp.eq.s32.totalorder %s22, 0
      %p194 = por %p192, %p193
      %s195 = ssub.s32 %s23, %s35
      %p196 = scmp.eq.s32.totalorder %s195, 0
      %s198 = sadd.s32 %s197, 1
      %s199 = scalar_select %p196, %s197, %s198
      %p202 = pneg %p196
      %p203 = scmp.eq.s32.totalorder %s16, 1
      %p204 = por %p202, %p203
      %p205 = scmp.ne.s32.totalorder %s197, %s200
      %p206 = scmp.eq.s32.totalorder %s16, 0
      %p207 = por %p205, %p206
      %p208 = scmp.ne.s32.totalorder %s197, %s200
      %p209 = scmp.eq.s32.totalorder %s21, 1
      %p210 = por %p208, %p209
      %p211 = scmp.ne.s32.totalorder %s200, %s201
      %p212 = scmp.eq.s32.totalorder %s21, 0
      %p213 = por %p211, %p212
      %p214 = scmp.ne.s32.totalorder %s200, %s201
      %p215 = scmp.eq.s32.totalorder %s22, 1
      %p216 = por %p214, %p215
      %p218 = scmp.ne.s32.totalorder %s201, %s217
      %p219 = scmp.eq.s32.totalorder %s22, 0
      %p220 = por %p218, %p219
      %p221 = scmp.le.s32.totalorder 1, %s16
      %p222 = scmp.lt.s32.totalorder %s16, 3
      %p223 = pnand %p221, %p222
      %p224 = pneg %p223
      // Predicated region
      $region9: #{_lambda_.3} parent=5 // pred_check
        _
      $region10: #{_lambda_.3} parent=5 // pred_check_branch
        %226 = sbr.rel (%p223) target = $region12
      $region11: #{_lambda_.3} parent=5 // pred_region
        %s227 = ssub.s32 %s16, 1
        // Predicated region
        $region13: #{_lambda_.3} parent=11 // pred_check
          %p228 = pneg %p103
        $region14: #{_lambda_.3} parent=11 // pred_check_branch
          %230 = sbr.rel (%p228) target = $region16
        $region15: #{_lambda_.3} parent=11 // pred_region
          %s232 = ssub.s32 16, 16
          %233 = vsyncadd [#allocation4], %s232
          %s235 = sshll.u32 [#allocation3], 4
          %s236 = int_to_ptr.vmem [resolvable:$true] %s235
          %238 = dma.hbm_to_vmem [thread:$0]  %s2, 16, %s236, [#allocation4]
        $region16: #{_lambda_.3} parent=11 // pred_fallthru
          _
        // Predicated region
        $region17: #{_lambda_.3} parent=11 // pred_check
          %p239 = pneg %p124
        $region18: #{_lambda_.3} parent=11 // pred_check_branch
          %241 = sbr.rel (%p239) target = $region20
        $region19: #{_lambda_.3} parent=11 // pred_region
          %s243 = ssub.s32 512, 512
          %244 = vsyncadd [#allocation6], %s243
          %s245 = sshll.u32 [#allocation5], 4
          %s246 = int_to_ptr.vmem [resolvable:$true] %s245
          %251 = dma.hbm_to_vmem [thread:$0]  %s3, 512, %s246, [#allocation6], 64, 64, 4
        $region20: #{_lambda_.3} parent=11 // pred_fallthru
          _
        // Predicated region
        $region21: #{_lambda_.3} parent=11 // pred_check
          %p252 = pneg %p145
        $region22: #{_lambda_.3} parent=11 // pred_check_branch
          %254 = sbr.rel (%p252) target = $region24
        $region23: #{_lambda_.3} parent=11 // pred_region
          %s256 = ssub.s32 16, 16
          %257 = vsyncadd [#allocation6], %s256
          %s259 = sshll.u32 [#allocation7], 4
          %s260 = int_to_ptr.vmem [resolvable:$true] %s259
          %262 = dma.hbm_to_vmem [thread:$0]  %s4, 16, %s260, [#allocation6]
        $region24: #{_lambda_.3} parent=11 // pred_fallthru
          _
        // Predicated region
        $region25: #{_lambda_.3} parent=11 // pred_check
          %p263 = pneg %p166
        $region26: #{_lambda_.3} parent=11 // pred_check_branch
          %265 = sbr.rel (%p263) target = $region28
        $region27: #{_lambda_.3} parent=11 // pred_region
          _
        $region28: #{_lambda_.3} parent=11 // pred_fallthru
          _
        // Predicated region
        $region29: #{_lambda_.3} parent=11 // pred_check
          %p266 = pneg %p187
        $region30: #{_lambda_.3} parent=11 // pred_check_branch
          %268 = sbr.rel (%p266) target = $region32
        $region31: #{_lambda_.3} parent=11 // pred_region
          %s270 = ssub.s32 128, 128
          %271 = vsyncadd [#allocation9], %s270
          %s273 = sshll.u32 [#allocation8], 4
          %s274 = int_to_ptr.vmem [resolvable:$true] %s273
          %276 = dma.hbm_to_vmem [thread:$0]  %s6, 128, %s274, [#allocation9]
        $region32: #{_lambda_.3} parent=11 // pred_fallthru
          _
      $region12: #{_lambda_.3} parent=5 // pred_fallthru
        _
      %p277 = scmp.lt.s32.totalorder %s16, 2
      // Predicated region
      $region33: #{_lambda_.3} parent=5 // pred_check
        %p278 = pneg %p277
      $region34: #{_lambda_.3} parent=5 // pred_check_branch
        %280 = sbr.rel (%p278) target = $region36
      $region35: #{_lambda_.3} parent=5 // pred_region
        // Predicated region
        $region37: #{_lambda_.3} parent=35 // pred_check
          %p281 = pneg %p50
        $region38: #{_lambda_.3} parent=35 // pred_check_branch
          %283 = sbr.rel (%p281) target = $region40
        $region39: #{_lambda_.3} parent=35 // pred_region
          %s284 = smul.u32 2, %s24
          %p285 = scmp.lt.s32.totalorder %s23, 1
          %s286 = scalar_select %p285, %s23, 1
          %p287 = scmp.lt.s32.totalorder %s284, 1
          %s288 = scalar_select %p287, %s284, 1
          %s289 = smul.addr %s286, 2
          %s290 = sadd.s32 %s288, %s289
          %s291 = smul.addr %s290, 4
          %s292 = scalar_lea.vmem %s0, %s291
          %s293 = smul.u32 2, %s24
        $region40: #{_lambda_.3} parent=35 // pred_fallthru
          _
        // Predicated region
        $region41: #{_lambda_.3} parent=35 // pred_check
          %p294 = pneg %p76
        $region42: #{_lambda_.3} parent=35 // pred_check_branch
          %296 = sbr.rel (%p294) target = $region44
        $region43: #{_lambda_.3} parent=35 // pred_region
          %p297 = scmp.lt.s32.totalorder %s23, 1
          %s298 = scalar_select %p297, %s23, 1
          %s299 = smul.addr %s298, 4
          %s300 = scalar_lea.vmem %s1, %s299
        $region44: #{_lambda_.3} parent=35 // pred_fallthru
          _
      $region36: #{_lambda_.3} parent=5 // pred_fallthru
        _
      %p301 = scmp.le.s32.totalorder 1, %s16
      %p302 = scmp.lt.s32.totalorder %s16, 3
      %p303 = pnand %p301, %p302
      %p304 = pneg %p303
      // Predicated region
      $region45: #{_lambda_.3} parent=5 // pred_check
        _
      $region46: #{_lambda_.3} parent=5 // pred_check_branch
        %306 = sbr.rel (%p303) target = $region48
      $region47: #{_lambda_.3} parent=5 // pred_region
        %s307 = ssub.s32 %s16, 1
        // Predicated region
        $region49: #{_lambda_.3} parent=47 // pred_check
          %p308 = pneg %p103
        $region50: #{_lambda_.3} parent=47 // pred_check_branch
          %310 = sbr.rel (%p308) target = $region52
        $region51: #{_lambda_.3} parent=47 // pred_region
          %311 = dma.done [#allocation4], 16
        $region52: #{_lambda_.3} parent=47 // pred_fallthru
          _
        // Predicated region
        $region53: #{_lambda_.3} parent=47 // pred_check
          %p312 = pneg %p124
        $region54: #{_lambda_.3} parent=47 // pred_check_branch
          %314 = sbr.rel (%p312) target = $region56
        $region55: #{_lambda_.3} parent=47 // pred_region
          %315 = dma.done [#allocation6], 512
        $region56: #{_lambda_.3} parent=47 // pred_fallthru
          _
        // Predicated region
        $region57: #{_lambda_.3} parent=47 // pred_check
          %p316 = pneg %p145
        $region58: #{_lambda_.3} parent=47 // pred_check_branch
          %318 = sbr.rel (%p316) target = $region60
        $region59: #{_lambda_.3} parent=47 // pred_region
          %319 = dma.done [#allocation6], 16
        $region60: #{_lambda_.3} parent=47 // pred_fallthru
          _
        // Predicated region
        $region61: #{_lambda_.3} parent=47 // pred_check
          %p320 = pneg %p187
        $region62: #{_lambda_.3} parent=47 // pred_check_branch
          %322 = sbr.rel (%p320) target = $region64
        $region63: #{_lambda_.3} parent=47 // pred_region
          %323 = dma.done [#allocation9], 128
        $region64: #{_lambda_.3} parent=47 // pred_fallthru
          _
        %s324 = smul.u32 2, %s26
        %p325 = scmp.lt.s32.totalorder %s25, 1
        %s326 = scalar_select %p325, %s25, 1
        %p327 = scmp.lt.s32.totalorder %s324, 1
        %s328 = scalar_select %p327, %s324, 1
        %s329 = smul.addr %s326, 2
        %s330 = sadd.s32 %s328, %s329
        %s331 = smul.addr %s330, 4
        %s332 = scalar_lea.vmem %s0, %s331
        %p333 = pneg %p56
        %p334 = pneg %p53
        %p335 = scmp.lt.s32.totalorder %s25, 1
        %s336 = scalar_select %p335, %s25, 1
        %s337 = smul.addr %s336, 4
        %s338 = scalar_lea.vmem %s1, %s337
        %p339 = pneg %p82
        %p340 = pneg %p79
        %p341 = pneg %p103
        %p342 = pneg %p100
        %p343 = pneg %p124
        %p344 = pneg %p121
        %p345 = pneg %p145
        %p346 = pneg %p142
        %p347 = pneg %p166
        %p348 = pneg %p163
        %p349 = pneg %p187
        %p350 = pneg %p184
        %p351 = pneg %p213
        %p352 = pneg %p210
        %p353 = scmp.lt.s32.totalorder %s25, 1
        %s354 = scalar_select %p353, %s25, 1
        %s355 = smul.addr %s354, 8
        %s356 = scalar_lea.vmem %s7, %s355
        %s357 = smul.u32 2, %s26
        %p358 = scmp.lt.s32.totalorder %s25, 1
        %s359 = scalar_select %p358, %s25, 1
        %p360 = scmp.lt.s32.totalorder %s357, 1
        %s361 = scalar_select %p360, %s357, 1
        %s362 = smul.addr %s359, 2
        %s363 = sadd.s32 %s361, %s362
        %s364 = smul.addr %s363, 4
        %s365 = scalar_lea.vmem %s0, %s364
        %s366 = smul.u32 2, %s26
        %p367 = scmp.lt.s32.totalorder %s25, 1
        %s368 = scalar_select %p367, %s25, 1
        %s369 = smul.addr %s368, 4
        %s370 = scalar_lea.vmem %s1, %s369
        %p371 = scmp.lt.s32.totalorder %s25, 1
        %s372 = scalar_select %p371, %s25, 1
        %s373 = smul.addr %s372, 8
        %s374 = scalar_lea.vmem %s7, %s373
        %p376 = scmp.eq.s32.totalorder %s26, 0
        // Predicated region
        $region65: #{_lambda_.3} parent=47 // pred_check
          %p377 = pneg %p376
        $region66: #{_lambda_.3} parent=47 // pred_check_branch
          %379 = sbr.rel (%p377) target = $region68
        $region67: #{_lambda_.3} parent=47 // pred_region
          %380 = vst [vmem:[#allocation2] sm:$0xff] -inf
        $region68: #{_lambda_.3} parent=47 // pred_fallthru
          _
        %v381 = vld [vmem:[%s365] sm:$0xf]
        %v382 = vld [vmem:[%s365 + $0x4] sm:$0xf]
        %v383 = vld [vmem:[%s370] sm:$0xf]
        %v384 = vld [vmem:[#allocation3] sm:$0x1]
        %v386 = vlaneseq
        %v387 = vshrl.u32 %v386, 7
        %v388 = vsub.s32 0, %v387
        %v389 = vrot.slane %v384, %v388
        %v393 = vunpack.c.l.b16 %v381
        %v394 = vunpack.c.l.b16 %v382
        %v395 = vpack.c.b16 %v394, %v393
        %vm396 = vcmask 64512
        %v398 = vsel %vm396, %v395, 0
        %vm400 = vcmask 1043456
        %v402 = vsel %vm400, %v383, 0
        %404 = vmatprep.subr.bf16.mxu0 0
        %405 = vmatpush1.bf16.msra.mxu0 %v402
        %406 = vmatprep.subr.bf16.mxu0 0
        %407 = vmatpush1.bf16.msra.mxu0 0
        %408 = vmatprep.subr.bf16.mxu0 0
        %409 = vmatpush1.bf16.msra.mxu0 0
        %410 = vmatprep.subr.bf16.mxu0 0
        %411 = vmatpush1.bf16.msra.mxu0 0
        %412 = vmatprep.subr.bf16.mxu0 0
        %413 = vmatpush1.bf16.msra.mxu0 0
        %414 = vmatprep.subr.bf16.mxu0 0
        %415 = vmatpush1.bf16.msra.mxu0 0
        %416 = vmatprep.subr.bf16.mxu0 0
        %417 = vmatpush1.bf16.msra.mxu0 0
        %418 = vmatprep.subr.bf16.mxu0 0
        %419 = vmatpush1.bf16.msra.mxu0 0
        %420 = vmatprep.subr.bf16.mxu0 0
        %421 = vmatpush1.bf16.msra.mxu0 0
        %422 = vmatprep.subr.bf16.mxu0 0
        %423 = vmatpush1.bf16.msra.mxu0 0
        %424 = vmatprep.subr.bf16.mxu0 0
        %425 = vmatpush1.bf16.msra.mxu0 0
        %426 = vmatprep.subr.bf16.mxu0 0
        %427 = vmatpush1.bf16.msra.mxu0 0
        %428 = vmatprep.subr.bf16.mxu0 0
        %429 = vmatpush1.bf16.msra.mxu0 0
        %430 = vmatprep.subr.bf16.mxu0 0
        %431 = vmatpush1.bf16.msra.mxu0 0
        %432 = vmatprep.subr.bf16.mxu0 0
        %433 = vmatpush1.bf16.msra.mxu0 0
        %434 = vmatprep.subr.bf16.mxu0 0
        %435 = vmatpush1.bf16.msra.mxu0 0
        %436 = vmatprep.mubr.bf16.mxu0 0
        %437 = vmatmul.mubr.bf16.gmra.mrb[0].mxu0 %v398
        %v438 = vpop.f32.mrb[0].mxu0
        %v439 = vadd.f32 %v389, %v438
        %v440 = vpop.f32.mrb[0].mxu0
        %v441 = vpop.f32.mrb[0].mxu0
        %v442 = vadd.f32 %v389, %v441
        %v443 = vpop.f32.mrb[0].mxu0
        %444 = vdwg.mxu0
        %v445 = vmax.f32 %v439, 0.0
        %v446 = vmax.f32 %v442, 0.0
        %v447 = vpack.c.bf16 %v446, %v445
        %v448 = vld [vmem:[#allocation5] sm:$0xf]
        %v449 = vld [vmem:[#allocation5 + $0x4] sm:$0xf]
        %v450 = vld [vmem:[#allocation5 + $0x8] sm:$0xf]
        %v451 = vld [vmem:[#allocation5 + $0xc] sm:$0xf]
        %v452 = vld [vmem:[#allocation5 + $0x10] sm:$0xf]
        %v453 = vld [vmem:[#allocation5 + $0x14] sm:$0xf]
        %v454 = vld [vmem:[#allocation5 + $0x18] sm:$0xf]
        %v455 = vld [vmem:[#allocation5 + $0x1c] sm:$0xf]
        %v456 = vld [vmem:[#allocation7] sm:$0x1]
        %v458 = vlaneseq
        %v459 = vshrl.u32 %v458, 7
        %v460 = vsub.s32 0, %v459
        %v461 = vrot.slane %v456, %v460
        %v471 = vunpack.c.l.b16 %v448
        %v472 = vunpack.c.l.b16 %v449
        %v473 = vunpack.c.l.b16 %v450
        %v474 = vunpack.c.l.b16 %v451
        %v475 = vunpack.c.l.b16 %v452
        %v476 = vunpack.c.l.b16 %v453
        %v477 = vunpack.c.l.b16 %v454
        %v478 = vunpack.c.l.b16 %v455
        %v479 = vpack.c.b16 %v472, %v471
        %v480 = vpack.c.b16 %v474, %v473
        %v481 = vpack.c.b16 %v476, %v475
        %v482 = vpack.c.b16 %v478, %v477
        %vm487 = vcmask 523264
        %v489 = vsel %vm487, %v447, 0
        %491 = vmatprep.subr.bf16.mxu0 0
        %492 = vmatpush1.bf16.msra.mxu0 %v479
        %493 = vmatprep.subr.bf16.mxu0 0
        %494 = vmatpush1.bf16.msra.mxu0 %v480
        %495 = vmatprep.subr.bf16.mxu0 0
        %496 = vmatpush1.bf16.msra.mxu0 %v481
        %497 = vmatprep.subr.bf16.mxu0 0
        %498 = vmatpush1.bf16.msra.mxu0 %v482
        %499 = vmatprep.subr.bf16.mxu0 0
        %500 = vmatpush1.bf16.msra.mxu0 0
        %501 = vmatprep.subr.bf16.mxu0 0
        %502 = vmatpush1.bf16.msra.mxu0 0
        %503 = vmatprep.subr.bf16.mxu0 0
        %504 = vmatpush1.bf16.msra.mxu0 0
        %505 = vmatprep.subr.bf16.mxu0 0
        %506 = vmatpush1.bf16.msra.mxu0 0
        %507 = vmatprep.subr.bf16.mxu0 0
        %508 = vmatpush1.bf16.msra.mxu0 0
        %509 = vmatprep.subr.bf16.mxu0 0
        %510 = vmatpush1.bf16.msra.mxu0 0
        %511 = vmatprep.subr.bf16.mxu0 0
        %512 = vmatpush1.bf16.msra.mxu0 0
        %513 = vmatprep.subr.bf16.mxu0 0
        %514 = vmatpush1.bf16.msra.mxu0 0
        %515 = vmatprep.subr.bf16.mxu0 0
        %516 = vmatpush1.bf16.msra.mxu0 0
        %517 = vmatprep.subr.bf16.mxu0 0
        %518 = vmatpush1.bf16.msra.mxu0 0
        %519 = vmatprep.subr.bf16.mxu0 0
        %520 = vmatpush1.bf16.msra.mxu0 0
        %521 = vmatprep.subr.bf16.mxu0 0
        %522 = vmatpush1.bf16.msra.mxu0 0
        %523 = vmatprep.mubr.bf16.mxu0 0
        %524 = vmatmul.mubr.bf16.gmra.mrb[0].mxu0 %v489
        %v525 = vpop.f32.mrb[0].mxu0
        %v526 = vadd.f32 %v461, %v525
        %v527 = vpop.f32.mrb[0].mxu0
        %v528 = vpop.f32.mrb[0].mxu0
        %v529 = vadd.f32 %v461, %v528
        %v530 = vpop.f32.mrb[0].mxu0
        %531 = vdwg.mxu0
        %v532 = vmax.f32 %v526, 0.0
        %v533 = vmax.f32 %v529, 0.0
        %v534 = vpack.c.bf16 %v533, %v532
        %v535 = vld [vmem:[%s5] sm:$0xff]
        %v536 = vld [vmem:[%s5 + $0x20] sm:$0xff]
        %v537 = vld [vmem:[%s5 + $0x40] sm:$0xff]
        %v538 = vld [vmem:[%s5 + $0x60] sm:$0xff]
        %v539 = vld [vmem:[%s5 + $0x80] sm:$0xff]
        %v540 = vld [vmem:[%s5 + $0xa0] sm:$0xff]
        %v541 = vld [vmem:[%s5 + $0xc0] sm:$0xff]
        %v542 = vld [vmem:[%s5 + $0xe0] sm:$0xff]
        %v543 = vld [vmem:[%s5 + $0x100] sm:$0xff]
        %v544 = vld [vmem:[%s5 + $0x120] sm:$0xff]
        %v545 = vld [vmem:[%s5 + $0x140] sm:$0xff]
        %v546 = vld [vmem:[%s5 + $0x160] sm:$0xff]
        %v547 = vld [vmem:[%s5 + $0x180] sm:$0xff]
        %v548 = vld [vmem:[%s5 + $0x1a0] sm:$0xff]
        %v549 = vld [vmem:[%s5 + $0x1c0] sm:$0xff]
        %v550 = vld [vmem:[%s5 + $0x1e0] sm:$0xff]
        %v551 = vld [vmem:[#allocation8] sm:$0x3]
        %v553 = vlaneseq
        %v554 = vshrl.u32 %v553, 7
        %v555 = vsub.s32 0, %v554
        %v556 = vrot.slane %v551, %v555
        %v557 = vlaneseq
        %v558 = vshrl.u32 %v557, 7
        %v559 = vsub.s32 1, %v558
        %v560 = vrot.slane %v551, %v559
        %v579 = vunpack.c.l.b16 %v535
        %v580 = vunpack.c.h.b16 %v535
        %v581 = vunpack.c.l.b16 %v536
        %v582 = vunpack.c.h.b16 %v536
        %v583 = vunpack.c.l.b16 %v537
        %v584 = vunpack.c.h.b16 %v537
        %v585 = vunpack.c.l.b16 %v538
        %v586 = vunpack.c.h.b16 %v538
        %v587 = vunpack.c.l.b16 %v539
        %v588 = vunpack.c.h.b16 %v539
        %v589 = vunpack.c.l.b16 %v540
        %v590 = vunpack.c.h.b16 %v540
        %v591 = vunpack.c.l.b16 %v541
        %v592 = vunpack.c.h.b16 %v541
        %v593 = vunpack.c.l.b16 %v542
        %v594 = vunpack.c.h.b16 %v542
        %v595 = vunpack.c.l.b16 %v543
        %v596 = vunpack.c.h.b16 %v543
        %v597 = vunpack.c.l.b16 %v544
        %v598 = vunpack.c.h.b16 %v544
        %v599 = vunpack.c.l.b16 %v545
        %v600 = vunpack.c.h.b16 %v545
        %v601 = vunpack.c.l.b16 %v546
        %v602 = vunpack.c.h.b16 %v546
        %v603 = vunpack.c.l.b16 %v547
        %v604 = vunpack.c.h.b16 %v547
        %v605 = vunpack.c.l.b16 %v548
        %v606 = vunpack.c.h.b16 %v548
        %v607 = vunpack.c.l.b16 %v549
        %v608 = vunpack.c.h.b16 %v549
        %v609 = vunpack.c.l.b16 %v550
        %v610 = vunpack.c.h.b16 %v550
        %v611 = vpack.c.b16 %v581, %v579
        %v612 = vpack.c.b16 %v582, %v580
        %v613 = vpack.c.b16 %v585, %v583
        %v614 = vpack.c.b16 %v586, %v584
        %v615 = vpack.c.b16 %v589, %v587
        %v616 = vpack.c.b16 %v590, %v588
        %v617 = vpack.c.b16 %v593, %v591
        %v618 = vpack.c.b16 %v594, %v592
        %v619 = vpack.c.b16 %v597, %v595
        %v620 = vpack.c.b16 %v598, %v596
        %v621 = vpack.c.b16 %v601, %v599
        %v622 = vpack.c.b16 %v602, %v600
        %v623 = vpack.c.b16 %v605, %v603
        %v624 = vpack.c.b16 %v606, %v604
        %v625 = vpack.c.b16 %v609, %v607
        %v626 = vpack.c.b16 %v610, %v608
        %643 = vmatprep.subr.bf16.mxu0 %v612
        %644 = vmatpush1.bf16.msra.mxu0 %v611
        %645 = vmatprep.subr.bf16.mxu0 %v614
        %646 = vmatpush1.bf16.msra.mxu0 %v613
        %647 = vmatprep.subr.bf16.mxu0 %v616
        %648 = vmatpush1.bf16.msra.mxu0 %v615
        %649 = vmatprep.subr.bf16.mxu0 %v618
        %650 = vmatpush1.bf16.msra.mxu0 %v617
        %651 = vmatprep.subr.bf16.mxu0 %v620
        %652 = vmatpush1.bf16.msra.mxu0 %v619
        %653 = vmatprep.subr.bf16.mxu0 %v622
        %654 = vmatpush1.bf16.msra.mxu0 %v621
        %655 = vmatprep.subr.bf16.mxu0 %v624
        %656 = vmatpush1.bf16.msra.mxu0 %v623
        %657 = vmatprep.subr.bf16.mxu0 %v626
        %658 = vmatpush1.bf16.msra.mxu0 %v625
        %659 = vmatprep.subr.bf16.mxu0 0
        %660 = vmatpush1.bf16.msra.mxu0 0
        %661 = vmatprep.subr.bf16.mxu0 0
        %662 = vmatpush1.bf16.msra.mxu0 0
        %663 = vmatprep.subr.bf16.mxu0 0
        %664 = vmatpush1.bf16.msra.mxu0 0
        %665 = vmatprep.subr.bf16.mxu0 0
        %666 = vmatpush1.bf16.msra.mxu0 0
        %667 = vmatprep.subr.bf16.mxu0 0
        %668 = vmatpush1.bf16.msra.mxu0 0
        %669 = vmatprep.subr.bf16.mxu0 0
        %670 = vmatpush1.bf16.msra.mxu0 0
        %671 = vmatprep.subr.bf16.mxu0 0
        %672 = vmatpush1.bf16.msra.mxu0 0
        %673 = vmatprep.subr.bf16.mxu0 0
        %674 = vmatpush1.bf16.msra.mxu0 0
        %675 = vmatprep.mubr.bf16.mxu0 0
        %676 = vmatmul.mubr.bf16.gmra.mrb[0].mxu0 %v534
        %v677 = vpop.f32.mrb[0].mxu0
        %v678 = vadd.f32 %v556, %v677
        %v679 = vpop.f32.mrb[0].mxu0
        %v680 = vadd.f32 %v560, %v679
        %v681 = vpop.f32.mrb[0].mxu0
        %v682 = vadd.f32 %v556, %v681
        %v683 = vpop.f32.mrb[0].mxu0
        %v684 = vadd.f32 %v560, %v683
        %685 = vdwg.mxu0
        %v686 = vmax.f32 %v678, 0.0
        %v687 = vmax.f32 %v680, 0.0
        %v688 = vmax.f32 %v682, 0.0
        %v689 = vmax.f32 %v684, 0.0
        %v690 = vld [vmem:[#allocation2] sm:$0x3]
        %v691 = vmax.f32 %v686, %v688
        %v692 = vrot.slane %v691, 4
        %v693 = vmax.f32 %v691, %v692
        %v694 = vrot.slane %v693, 2
        %v695 = vmax.f32 %v693, %v694
        %v696 = vrot.slane %v695, 1
        %v697 = vmax.f32 %v695, %v696
        %v698 = vmax.f32 %v687, %v689
        %v699 = vrot.slane %v698, 4
        %v700 = vmax.f32 %v698, %v699
        %v701 = vrot.slane %v700, 2
        %v702 = vmax.f32 %v700, %v701
        %v703 = vrot.slane %v702, 1
        %v704 = vmax.f32 %v702, %v703
        %v707 = vcombine.low %v697, %v704
        %v709 = vunpack.c.l.s4 1966171168
        %v710 = vunpack.c.0.s8 %v709
        %v711 = vlaneseq
        %v712 = vshrl.u32 %v711, 7
        %v713 = vsub.s32 %v710, %v712
        %v714 = vrot.slane %v707, %v713
        %v716 = vunpack.c.l.s4 1966171168
        %v717 = vunpack.c.0.s8 %v716
        %v718 = vlaneseq
        %v719 = vshrl.u32 %v718, 7
        %v720 = vsub.s32 %v717, %v719
        %v721 = vrot.slane %v714, %v720
        %v723 = vmax.f32 %v690, %v721
        %v724 = vlaneseq
        %vm725 = vcmp.ge.s32.totalorder %v724, 0
        %vm726 = vcmp.lt.s32.totalorder %v724, 256
        %vm727 = vmand %vm725, %vm726
        %728 = vst.msk [vmem:[#allocation2] sm:$0x3] %vm727, %v723
        %v729 = vld [vmem:[%s5 + $0x8] sm:$0xff]
        %v730 = vld [vmem:[%s5 + $0x28] sm:$0xff]
        %v731 = vld [vmem:[%s5 + $0x48] sm:$0xff]
        %v732 = vld [vmem:[%s5 + $0x68] sm:$0xff]
        %v733 = vld [vmem:[%s5 + $0x88] sm:$0xff]
        %v734 = vld [vmem:[%s5 + $0xa8] sm:$0xff]
        %v735 = vld [vmem:[%s5 + $0xc8] sm:$0xff]
        %v736 = vld [vmem:[%s5 + $0xe8] sm:$0xff]
        %v737 = vld [vmem:[%s5 + $0x108] sm:$0xff]
        %v738 = vld [vmem:[%s5 + $0x128] sm:$0xff]
        %v739 = vld [vmem:[%s5 + $0x148] sm:$0xff]
        %v740 = vld [vmem:[%s5 + $0x168] sm:$0xff]
        %v741 = vld [vmem:[%s5 + $0x188] sm:$0xff]
        %v742 = vld [vmem:[%s5 + $0x1a8] sm:$0xff]
        %v743 = vld [vmem:[%s5 + $0x1c8] sm:$0xff]
        %v744 = vld [vmem:[%s5 + $0x1e8] sm:$0xff]
        %v745 = vld [vmem:[#allocation8 + $0x2] sm:$0x3]
        %v747 = vlaneseq
        %v748 = vshrl.u32 %v747, 7
        %v749 = vsub.s32 0, %v748
        %v750 = vrot.slane %v745, %v749
        %v751 = vlaneseq
        %v752 = vshrl.u32 %v751, 7
        %v753 = vsub.s32 1, %v752
        %v754 = vrot.slane %v745, %v753
        %v773 = vunpack.c.l.b16 %v729
        %v774 = vunpack.c.h.b16 %v729
        %v775 = vunpack.c.l.b16 %v730
        %v776 = vunpack.c.h.b16 %v730
        %v777 = vunpack.c.l.b16 %v731
        %v778 = vunpack.c.h.b16 %v731
        %v779 = vunpack.c.l.b16 %v732
        %v780 = vunpack.c.h.b16 %v732
        %v781 = vunpack.c.l.b16 %v733
        %v782 = vunpack.c.h.b16 %v733
        %v783 = vunpack.c.l.b16 %v734
        %v784 = vunpack.c.h.b16 %v734
        %v785 = vunpack.c.l.b16 %v735
        %v786 = vunpack.c.h.b16 %v735
        %v787 = vunpack.c.l.b16 %v736
        %v788 = vunpack.c.h.b16 %v736
        %v789 = vunpack.c.l.b16 %v737
        %v790 = vunpack.c.h.b16 %v737
        %v791 = vunpack.c.l.b16 %v738
        %v792 = vunpack.c.h.b16 %v738
        %v793 = vunpack.c.l.b16 %v739
        %v794 = vunpack.c.h.b16 %v739
        %v795 = vunpack.c.l.b16 %v740
        %v796 = vunpack.c.h.b16 %v740
        %v797 = vunpack.c.l.b16 %v741
        %v798 = vunpack.c.h.b16 %v741
        %v799 = vunpack.c.l.b16 %v742
        %v800 = vunpack.c.h.b16 %v742
        %v801 = vunpack.c.l.b16 %v743
        %v802 = vunpack.c.h.b16 %v743
        %v803 = vunpack.c.l.b16 %v744
        %v804 = vunpack.c.h.b16 %v744
        %v805 = vpack.c.b16 %v775, %v773
        %v806 = vpack.c.b16 %v776, %v774
        %v807 = vpack.c.b16 %v779, %v777
        %v808 = vpack.c.b16 %v780, %v778
        %v809 = vpack.c.b16 %v783, %v781
        %v810 = vpack.c.b16 %v784, %v782
        %v811 = vpack.c.b16 %v787, %v785
        %v812 = vpack.c.b16 %v788, %v786
        %v813 = vpack.c.b16 %v791, %v789
        %v814 = vpack.c.b16 %v792, %v790
        %v815 = vpack.c.b16 %v795, %v793
        %v816 = vpack.c.b16 %v796, %v794
        %v817 = vpack.c.b16 %v799, %v797
        %v818 = vpack.c.b16 %v800, %v798
        %v819 = vpack.c.b16 %v803, %v801
        %v820 = vpack.c.b16 %v804, %v802
        %837 = vmatprep.subr.bf16.mxu0 %v806
        %838 = vmatpush1.bf16.msra.mxu0 %v805
        %839 = vmatprep.subr.bf16.mxu0 %v808
        %840 = vmatpush1.bf16.msra.mxu0 %v807
        %841 = vmatprep.subr.bf16.mxu0 %v810
        %842 = vmatpush1.bf16.msra.mxu0 %v809
        %843 = vmatprep.subr.bf16.mxu0 %v812
        %844 = vmatpush1.bf16.msra.mxu0 %v811
        %845 = vmatprep.subr.bf16.mxu0 %v814
        %846 = vmatpush1.bf16.msra.mxu0 %v813
        %847 = vmatprep.subr.bf16.mxu0 %v816
        %848 = vmatpush1.bf16.msra.mxu0 %v815
        %849 = vmatprep.subr.bf16.mxu0 %v818
        %850 = vmatpush1.bf16.msra.mxu0 %v817
        %851 = vmatprep.subr.bf16.mxu0 %v820
        %852 = vmatpush1.bf16.msra.mxu0 %v819
        %853 = vmatprep.subr.bf16.mxu0 0
        %854 = vmatpush1.bf16.msra.mxu0 0
        %855 = vmatprep.subr.bf16.mxu0 0
        %856 = vmatpush1.bf16.msra.mxu0 0
        %857 = vmatprep.subr.bf16.mxu0 0
        %858 = vmatpush1.bf16.msra.mxu0 0
        %859 = vmatprep.subr.bf16.mxu0 0
        %860 = vmatpush1.bf16.msra.mxu0 0
        %861 = vmatprep.subr.bf16.mxu0 0
        %862 = vmatpush1.bf16.msra.mxu0 0
        %863 = vmatprep.subr.bf16.mxu0 0
        %864 = vmatpush1.bf16.msra.mxu0 0
        %865 = vmatprep.subr.bf16.mxu0 0
        %866 = vmatpush1.bf16.msra.mxu0 0
        %867 = vmatprep.subr.bf16.mxu0 0
        %868 = vmatpush1.bf16.msra.mxu0 0
        %869 = vmatprep.mubr.bf16.mxu0 0
        %870 = vmatmul.mubr.bf16.gmra.mrb[0].mxu0 %v534
        %v871 = vpop.f32.mrb[0].mxu0
        %v872 = vadd.f32 %v750, %v871
        %v873 = vpop.f32.mrb[0].mxu0
        %v874 = vadd.f32 %v754, %v873
        %v875 = vpop.f32.mrb[0].mxu0
        %v876 = vadd.f32 %v750, %v875
        %v877 = vpop.f32.mrb[0].mxu0
        %v878 = vadd.f32 %v754, %v877
        %879 = vdwg.mxu0
        %v880 = vmax.f32 %v872, 0.0
        %v881 = vmax.f32 %v874, 0.0
        %v882 = vmax.f32 %v876, 0.0
        %v883 = vmax.f32 %v878, 0.0
        %v884 = vld [vmem:[#allocation2 + $0x2] sm:$0x3]
        %v885 = vmax.f32 %v880, %v882
        %v886 = vrot.slane %v885, 4
        %v887 = vmax.f32 %v885, %v886
        %v888 = vrot.slane %v887, 2
        %v889 = vmax.f32 %v887, %v888
        %v890 = vrot.slane %v889, 1
        %v891 = vmax.f32 %v889, %v890
        %v892 = vmax.f32 %v881, %v883
        %v893 = vrot.slane %v892, 4
        %v894 = vmax.f32 %v892, %v893
        %v895 = vrot.slane %v894, 2
        %v896 = vmax.f32 %v894, %v895
        %v897 = vrot.slane %v896, 1
        %v898 = vmax.f32 %v896, %v897
        %v901 = vcombine.low %v891, %v898
        %v903 = vunpack.c.l.s4 1966171168
        %v904 = vunpack.c.0.s8 %v903
        %v905 = vlaneseq
        %v906 = vshrl.u32 %v905, 7
        %v907 = vsub.s32 %v904, %v906
        %v908 = vrot.slane %v901, %v907
        %v910 = vunpack.c.l.s4 1966171168
        %v911 = vunpack.c.0.s8 %v910
        %v912 = vlaneseq
        %v913 = vshrl.u32 %v912, 7
        %v914 = vsub.s32 %v911, %v913
        %v915 = vrot.slane %v908, %v914
        %v917 = vmax.f32 %v884, %v915
        %918 = vst.msk [vmem:[#allocation2 + $0x2] sm:$0x3] %vm727, %v917
        %v919 = vld [vmem:[%s5 + $0x10] sm:$0xff]
        %v920 = vld [vmem:[%s5 + $0x30] sm:$0xff]
        %v921 = vld [vmem:[%s5 + $0x50] sm:$0xff]
        %v922 = vld [vmem:[%s5 + $0x70] sm:$0xff]
        %v923 = vld [vmem:[%s5 + $0x90] sm:$0xff]
        %v924 = vld [vmem:[%s5 + $0xb0] sm:$0xff]
        %v925 = vld [vmem:[%s5 + $0xd0] sm:$0xff]
        %v926 = vld [vmem:[%s5 + $0xf0] sm:$0xff]
        %v927 = vld [vmem:[%s5 + $0x110] sm:$0xff]
        %v928 = vld [vmem:[%s5 + $0x130] sm:$0xff]
        %v929 = vld [vmem:[%s5 + $0x150] sm:$0xff]
        %v930 = vld [vmem:[%s5 + $0x170] sm:$0xff]
        %v931 = vld [vmem:[%s5 + $0x190] sm:$0xff]
        %v932 = vld [vmem:[%s5 + $0x1b0] sm:$0xff]
        %v933 = vld [vmem:[%s5 + $0x1d0] sm:$0xff]
        %v934 = vld [vmem:[%s5 + $0x1f0] sm:$0xff]
        %v935 = vld [vmem:[#allocation8 + $0x4] sm:$0x3]
        %v937 = vlaneseq
        %v938 = vshrl.u32 %v937, 7
        %v939 = vsub.s32 0, %v938
        %v940 = vrot.slane %v935, %v939
        %v941 = vlaneseq
        %v942 = vshrl.u32 %v941, 7
        %v943 = vsub.s32 1, %v942
        %v944 = vrot.slane %v935, %v943
        %v963 = vunpack.c.l.b16 %v919
        %v964 = vunpack.c.h.b16 %v919
        %v965 = vunpack.c.l.b16 %v920
        %v966 = vunpack.c.h.b16 %v920
        %v967 = vunpack.c.l.b16 %v921
        %v968 = vunpack.c.h.b16 %v921
        %v969 = vunpack.c.l.b16 %v922
        %v970 = vunpack.c.h.b16 %v922
        %v971 = vunpack.c.l.b16 %v923
        %v972 = vunpack.c.h.b16 %v923
        %v973 = vunpack.c.l.b16 %v924
        %v974 = vunpack.c.h.b16 %v924
        %v975 = vunpack.c.l.b16 %v925
        %v976 = vunpack.c.h.b16 %v925
        %v977 = vunpack.c.l.b16 %v926
        %v978 = vunpack.c.h.b16 %v926
        %v979 = vunpack.c.l.b16 %v927
        %v980 = vunpack.c.h.b16 %v927
        %v981 = vunpack.c.l.b16 %v928
        %v982 = vunpack.c.h.b16 %v928
        %v983 = vunpack.c.l.b16 %v929
        %v984 = vunpack.c.h.b16 %v929
        %v985 = vunpack.c.l.b16 %v930
        %v986 = vunpack.c.h.b16 %v930
        %v987 = vunpack.c.l.b16 %v931
        %v988 = vunpack.c.h.b16 %v931
        %v989 = vunpack.c.l.b16 %v932
        %v990 = vunpack.c.h.b16 %v932
        %v991 = vunpack.c.l.b16 %v933
        %v992 = vunpack.c.h.b16 %v933
        %v993 = vunpack.c.l.b16 %v934
        %v994 = vunpack.c.h.b16 %v934
        %v995 = vpack.c.b16 %v965, %v963
        %v996 = vpack.c.b16 %v966, %v964
        %v997 = vpack.c.b16 %v969, %v967
        %v998 = vpack.c.b16 %v970, %v968
        %v999 = vpack.c.b16 %v973, %v971
        %v1000 = vpack.c.b16 %v974, %v972
        %v1001 = vpack.c.b16 %v977, %v975
        %v1002 = vpack.c.b16 %v978, %v976
        %v1003 = vpack.c.b16 %v981, %v979
        %v1004 = vpack.c.b16 %v982, %v980
        %v1005 = vpack.c.b16 %v985, %v983
        %v1006 = vpack.c.b16 %v986, %v984
        %v1007 = vpack.c.b16 %v989, %v987
        %v1008 = vpack.c.b16 %v990, %v988
        %v1009 = vpack.c.b16 %v993, %v991
        %v1010 = vpack.c.b16 %v994, %v992
        %1027 = vmatprep.subr.bf16.mxu0 %v996
        %1028 = vmatpush1.bf16.msra.mxu0 %v995
        %1029 = vmatprep.subr.bf16.mxu0 %v998
        %1030 = vmatpush1.bf16.msra.mxu0 %v997
        %1031 = vmatprep.subr.bf16.mxu0 %v1000
        %1032 = vmatpush1.bf16.msra.mxu0 %v999
        %1033 = vmatprep.subr.bf16.mxu0 %v1002
        %1034 = vmatpush1.bf16.msra.mxu0 %v1001
        %1035 = vmatprep.subr.bf16.mxu0 %v1004
        %1036 = vmatpush1.bf16.msra.mxu0 %v1003
        %1037 = vmatprep.subr.bf16.mxu0 %v1006
        %1038 = vmatpush1.bf16.msra.mxu0 %v1005
        %1039 = vmatprep.subr.bf16.mxu0 %v1008
        %1040 = vmatpush1.bf16.msra.mxu0 %v1007
        %1041 = vmatprep.subr.bf16.mxu0 %v1010
        %1042 = vmatpush1.bf16.msra.mxu0 %v1009
        %1043 = vmatprep.subr.bf16.mxu0 0
        %1044 = vmatpush1.bf16.msra.mxu0 0
        %1045 = vmatprep.subr.bf16.mxu0 0
        %1046 = vmatpush1.bf16.msra.mxu0 0
        %1047 = vmatprep.subr.bf16.mxu0 0
        %1048 = vmatpush1.bf16.msra.mxu0 0
        %1049 = vmatprep.subr.bf16.mxu0 0
        %1050 = vmatpush1.bf16.msra.mxu0 0
        %1051 = vmatprep.subr.bf16.mxu0 0
        %1052 = vmatpush1.bf16.msra.mxu0 0
        %1053 = vmatprep.subr.bf16.mxu0 0
        %1054 = vmatpush1.bf16.msra.mxu0 0
        %1055 = vmatprep.subr.bf16.mxu0 0
        %1056 = vmatpush1.bf16.msra.mxu0 0
        %1057 = vmatprep.subr.bf16.mxu0 0
        %1058 = vmatpush1.bf16.msra.mxu0 0
        %1059 = vmatprep.mubr.bf16.mxu0 0
        %1060 = vmatmul.mubr.bf16.gmra.mrb[0].mxu0 %v534
        %v1061 = vpop.f32.mrb[0].mxu0
        %v1062 = vadd.f32 %v940, %v1061
        %v1063 = vpop.f32.mrb[0].mxu0
        %v1064 = vadd.f32 %v944, %v1063
        %v1065 = vpop.f32.mrb[0].mxu0
        %v1066 = vadd.f32 %v940, %v1065
        %v1067 = vpop.f32.mrb[0].mxu0
        %v1068 = vadd.f32 %v944, %v1067
        %1069 = vdwg.mxu0
        %v1070 = vmax.f32 %v1062, 0.0
        %v1071 = vmax.f32 %v1064, 0.0
        %v1072 = vmax.f32 %v1066, 0.0
        %v1073 = vmax.f32 %v1068, 0.0
        %v1074 = vld [vmem:[#allocation2 + $0x4] sm:$0x3]
        %v1075 = vmax.f32 %v1070, %v1072
        %v1076 = vrot.slane %v1075, 4
        %v1077 = vmax.f32 %v1075, %v1076
        %v1078 = vrot.slane %v1077, 2
        %v1079 = vmax.f32 %v1077, %v1078
        %v1080 = vrot.slane %v1079, 1
        %v1081 = vmax.f32 %v1079, %v1080
        %v1082 = vmax.f32 %v1071, %v1073
        %v1083 = vrot.slane %v1082, 4
        %v1084 = vmax.f32 %v1082, %v1083
        %v1085 = vrot.slane %v1084, 2
        %v1086 = vmax.f32 %v1084, %v1085
        %v1087 = vrot.slane %v1086, 1
        %v1088 = vmax.f32 %v1086, %v1087
        %v1091 = vcombine.low %v1081, %v1088
        %v1093 = vunpack.c.l.s4 1966171168
        %v1094 = vunpack.c.0.s8 %v1093
        %v1095 = vlaneseq
        %v1096 = vshrl.u32 %v1095, 7
        %v1097 = vsub.s32 %v1094, %v1096
        %v1098 = vrot.slane %v1091, %v1097
        %v1100 = vunpack.c.l.s4 1966171168
        %v1101 = vunpack.c.0.s8 %v1100
        %v1102 = vlaneseq
        %v1103 = vshrl.u32 %v1102, 7
        %v1104 = vsub.s32 %v1101, %v1103
        %v1105 = vrot.slane %v1098, %v1104
        %v1107 = vmax.f32 %v1074, %v1105
        %1108 = vst.msk [vmem:[#allocation2 + $0x4] sm:$0x3] %vm727, %v1107
        %v1109 = vld [vmem:[%s5 + $0x18] sm:$0xff]
        %v1110 = vld [vmem:[%s5 + $0x38] sm:$0xff]
        %v1111 = vld [vmem:[%s5 + $0x58] sm:$0xff]
        %v1112 = vld [vmem:[%s5 + $0x78] sm:$0xff]
        %v1113 = vld [vmem:[%s5 + $0x98] sm:$0xff]
        %v1114 = vld [vmem:[%s5 + $0xb8] sm:$0xff]
        %v1115 = vld [vmem:[%s5 + $0xd8] sm:$0xff]
        %v1116 = vld [vmem:[%s5 + $0xf8] sm:$0xff]
        %v1117 = vld [vmem:[%s5 + $0x118] sm:$0xff]
        %v1118 = vld [vmem:[%s5 + $0x138] sm:$0xff]
        %v1119 = vld [vmem:[%s5 + $0x158] sm:$0xff]
        %v1120 = vld [vmem:[%s5 + $0x178] sm:$0xff]
        %v1121 = vld [vmem:[%s5 + $0x198] sm:$0xff]
        %v1122 = vld [vmem:[%s5 + $0x1b8] sm:$0xff]
        %v1123 = vld [vmem:[%s5 + $0x1d8] sm:$0xff]
        %v1124 = vld [vmem:[%s5 + $0x1f8] sm:$0xff]
        %v1125 = vld [vmem:[#allocation8 + $0x6] sm:$0x3]
        %v1127 = vlaneseq
        %v1128 = vshrl.u32 %v1127, 7
        %v1129 = vsub.s32 0, %v1128
        %v1130 = vrot.slane %v1125, %v1129
        %v1131 = vlaneseq
        %v1132 = vshrl.u32 %v1131, 7
        %v1133 = vsub.s32 1, %v1132
        %v1134 = vrot.slane %v1125, %v1133
        %v1153 = vunpack.c.l.b16 %v1109
        %v1154 = vunpack.c.h.b16 %v1109
        %v1155 = vunpack.c.l.b16 %v1110
        %v1156 = vunpack.c.h.b16 %v1110
        %v1157 = vunpack.c.l.b16 %v1111
        %v1158 = vunpack.c.h.b16 %v1111
        %v1159 = vunpack.c.l.b16 %v1112
        %v1160 = vunpack.c.h.b16 %v1112
        %v1161 = vunpack.c.l.b16 %v1113
        %v1162 = vunpack.c.h.b16 %v1113
        %v1163 = vunpack.c.l.b16 %v1114
        %v1164 = vunpack.c.h.b16 %v1114
        %v1165 = vunpack.c.l.b16 %v1115
        %v1166 = vunpack.c.h.b16 %v1115
        %v1167 = vunpack.c.l.b16 %v1116
        %v1168 = vunpack.c.h.b16 %v1116
        %v1169 = vunpack.c.l.b16 %v1117
        %v1170 = vunpack.c.h.b16 %v1117
        %v1171 = vunpack.c.l.b16 %v1118
        %v1172 = vunpack.c.h.b16 %v1118
        %v1173 = vunpack.c.l.b16 %v1119
        %v1174 = vunpack.c.h.b16 %v1119
        %v1175 = vunpack.c.l.b16 %v1120
        %v1176 = vunpack.c.h.b16 %v1120
        %v1177 = vunpack.c.l.b16 %v1121
        %v1178 = vunpack.c.h.b16 %v1121
        %v1179 = vunpack.c.l.b16 %v1122
        %v1180 = vunpack.c.h.b16 %v1122
        %v1181 = vunpack.c.l.b16 %v1123
        %v1182 = vunpack.c.h.b16 %v1123
        %v1183 = vunpack.c.l.b16 %v1124
        %v1184 = vunpack.c.h.b16 %v1124
        %v1185 = vpack.c.b16 %v1155, %v1153
        %v1186 = vpack.c.b16 %v1156, %v1154
        %v1187 = vpack.c.b16 %v1159, %v1157
        %v1188 = vpack.c.b16 %v1160, %v1158
        %v1189 = vpack.c.b16 %v1163, %v1161
        %v1190 = vpack.c.b16 %v1164, %v1162
        %v1191 = vpack.c.b16 %v1167, %v1165
        %v1192 = vpack.c.b16 %v1168, %v1166
        %v1193 = vpack.c.b16 %v1171, %v1169
        %v1194 = vpack.c.b16 %v1172, %v1170
        %v1195 = vpack.c.b16 %v1175, %v1173
        %v1196 = vpack.c.b16 %v1176, %v1174
        %v1197 = vpack.c.b16 %v1179, %v1177
        %v1198 = vpack.c.b16 %v1180, %v1178
        %v1199 = vpack.c.b16 %v1183, %v1181
        %v1200 = vpack.c.b16 %v1184, %v1182
        %1217 = vmatprep.subr.bf16.mxu0 %v1186
        %1218 = vmatpush1.bf16.msra.mxu0 %v1185
        %1219 = vmatprep.subr.bf16.mxu0 %v1188
        %1220 = vmatpush1.bf16.msra.mxu0 %v1187
        %1221 = vmatprep.subr.bf16.mxu0 %v1190
        %1222 = vmatpush1.bf16.msra.mxu0 %v1189
        %1223 = vmatprep.subr.bf16.mxu0 %v1192
        %1224 = vmatpush1.bf16.msra.mxu0 %v1191
        %1225 = vmatprep.subr.bf16.mxu0 %v1194
        %1226 = vmatpush1.bf16.msra.mxu0 %v1193
        %1227 = vmatprep.subr.bf16.mxu0 %v1196
        %1228 = vmatpush1.bf16.msra.mxu0 %v1195
        %1229 = vmatprep.subr.bf16.mxu0 %v1198
        %1230 = vmatpush1.bf16.msra.mxu0 %v1197
        %1231 = vmatprep.subr.bf16.mxu0 %v1200
        %1232 = vmatpush1.bf16.msra.mxu0 %v1199
        %1233 = vmatprep.subr.bf16.mxu0 0
        %1234 = vmatpush1.bf16.msra.mxu0 0
        %1235 = vmatprep.subr.bf16.mxu0 0
        %1236 = vmatpush1.bf16.msra.mxu0 0
        %1237 = vmatprep.subr.bf16.mxu0 0
        %1238 = vmatpush1.bf16.msra.mxu0 0
        %1239 = vmatprep.subr.bf16.mxu0 0
        %1240 = vmatpush1.bf16.msra.mxu0 0
        %1241 = vmatprep.subr.bf16.mxu0 0
        %1242 = vmatpush1.bf16.msra.mxu0 0
        %1243 = vmatprep.subr.bf16.mxu0 0
        %1244 = vmatpush1.bf16.msra.mxu0 0
        %1245 = vmatprep.subr.bf16.mxu0 0
        %1246 = vmatpush1.bf16.msra.mxu0 0
        %1247 = vmatprep.subr.bf16.mxu0 0
        %1248 = vmatpush1.bf16.msra.mxu0 0
        %1249 = vmatprep.mubr.bf16.mxu0 0
        %1250 = vmatmul.mubr.bf16.gmra.mrb[0].mxu0 %v534
        %v1251 = vpop.f32.mrb[0].mxu0
        %v1252 = vadd.f32 %v1130, %v1251
        %v1253 = vpop.f32.mrb[0].mxu0
        %v1254 = vadd.f32 %v1134, %v1253
        %v1255 = vpop.f32.mrb[0].mxu0
        %v1256 = vadd.f32 %v1130, %v1255
        %v1257 = vpop.f32.mrb[0].mxu0
        %v1258 = vadd.f32 %v1134, %v1257
        %1259 = vdwg.mxu0
        %v1260 = vmax.f32 %v1252, 0.0
        %v1261 = vmax.f32 %v1254, 0.0
        %v1262 = vmax.f32 %v1256, 0.0
        %v1263 = vmax.f32 %v1258, 0.0
        %v1264 = vld [vmem:[#allocation2 + $0x6] sm:$0x3]
        %v1265 = vmax.f32 %v1260, %v1262
        %v1266 = vrot.slane %v1265, 4
        %v1267 = vmax.f32 %v1265, %v1266
        %v1268 = vrot.slane %v1267, 2
        %v1269 = vmax.f32 %v1267, %v1268
        %v1270 = vrot.slane %v1269, 1
        %v1271 = vmax.f32 %v1269, %v1270
        %v1272 = vmax.f32 %v1261, %v1263
        %v1273 = vrot.slane %v1272, 4
        %v1274 = vmax.f32 %v1272, %v1273
        %v1275 = vrot.slane %v1274, 2
        %v1276 = vmax.f32 %v1274, %v1275
        %v1277 = vrot.slane %v1276, 1
        %v1278 = vmax.f32 %v1276, %v1277
        %v1281 = vcombine.low %v1271, %v1278
        %v1283 = vunpack.c.l.s4 1966171168
        %v1284 = vunpack.c.0.s8 %v1283
        %v1285 = vlaneseq
        %v1286 = vshrl.u32 %v1285, 7
        %v1287 = vsub.s32 %v1284, %v1286
        %v1288 = vrot.slane %v1281, %v1287
        %v1290 = vunpack.c.l.s4 1966171168
        %v1291 = vunpack.c.0.s8 %v1290
        %v1292 = vlaneseq
        %v1293 = vshrl.u32 %v1292, 7
        %v1294 = vsub.s32 %v1291, %v1293
        %v1295 = vrot.slane %v1288, %v1294
        %v1297 = vmax.f32 %v1264, %v1295
        %1298 = vst.msk [vmem:[#allocation2 + $0x6] sm:$0x3] %vm727, %v1297
        // Predicated region
        $region69: #{_lambda_.3} parent=47 // pred_check
          %p1299 = pneg %p376
        $region70: #{_lambda_.3} parent=47 // pred_check_branch
          %1301 = sbr.rel (%p1299) target = $region72
        $region71: #{_lambda_.3} parent=47 // pred_region
          %v1302 = vld [vmem:[#allocation2] sm:$0xff]
          %1303 = vst [vmem:[%s374] sm:$0xff] %v1302
        $region72: #{_lambda_.3} parent=47 // pred_fallthru
          _
        %p1304 = scmp.lt.s32.totalorder %s25, 1
        %s1305 = scalar_select %p1304, %s25, 1
        %s1306 = smul.addr %s1305, 8
        %s1307 = scalar_lea.vmem %s7, %s1306
        // Predicated region
        $region73: #{_lambda_.3} parent=47 // pred_check
          %p1308 = pneg %p210
        $region74: #{_lambda_.3} parent=47 // pred_check_branch
          %1310 = sbr.rel (%p1308) target = $region76
        $region75: #{_lambda_.3} parent=47 // pred_region
          _
        $region76: #{_lambda_.3} parent=47 // pred_fallthru
          _
      $region48: #{_lambda_.3} parent=5 // pred_fallthru
        _
      %p1311 = scmp.le.s32.totalorder 2, %s16
      // Predicated region
      $region77: #{_lambda_.3} parent=5 // pred_check
        %p1312 = pneg %p1311
      $region78: #{_lambda_.3} parent=5 // pred_check_branch
        %1314 = sbr.rel (%p1312) target = $region80
      $region79: #{_lambda_.3} parent=5 // pred_region
        %s1315 = ssub.s32 %s16, 2
        // Predicated region
        $region81: #{_lambda_.3} parent=79 // pred_check
          %p1316 = pneg %p216
        $region82: #{_lambda_.3} parent=79 // pred_check_branch
          %1318 = sbr.rel (%p1316) target = $region84
        $region83: #{_lambda_.3} parent=79 // pred_region
          %p1319 = scmp.lt.s32.totalorder %s27, 1
          %s1320 = scalar_select %p1319, %s27, 1
          %s1321 = smul.addr %s1320, 8
          %s1322 = scalar_lea.vmem %s7, %s1321
        $region84: #{_lambda_.3} parent=79 // pred_fallthru
          _
      $region80: #{_lambda_.3} parent=5 // pred_fallthru
        _
    $region6: #{_lambda_.3} parent=1 // loop_footer
      %s20 = sadd.s32 1, %s16
    $region7: #{_lambda_.3} parent=1 // loop_footer_branch
      %15 = sbr.rel target = $region3
    $region8: #{_lambda_.3} parent=1 // loop_exit
      _
    %1323 = vsyncpa [#allocation4], 1
    %s1324 = scalar_lea.sflag [#allocation4], 1
    %1325 = vsyncpa %s1324, 1
    %1326 = vsyncpa [#allocation6], 1
    %1327 = vsyncpa [#allocation9], 1

// kernel: _lambda_.5
$region0: #{_lambda_.5}
  #allocation0 [shape = 'u32[]', space=smem, size = 0x4, offset = 0x4, fixed_abs, tag = 'smem constant byte address 0x4 - core index']
  #allocation1 [shape = 'u32[144,128]{1,0:T(1,128)}', space=vmem, size = 0x12000, scoped, tag = 'internal scratch']
  #allocation2 [shape = 'f32[1,1024]{1,0:T(1,128)}', space=vmem, size = 0x1000, scoped, tag = 'scratch operand']
  %s0 = inlined_call_operand.vmem [shape: bf16[2,16,8], index: 0, kind: input, shape index: {}]
  %s1 = inlined_call_operand.vmem [shape: bf16[2,8,64], index: 1, kind: input, shape index: {}]
  %s2 = inlined_call_operand.vmem [shape: f32[1,64], index: 2, kind: input, shape index: {}]
  %s3 = inlined_call_operand.vmem [shape: bf16[64,128], index: 3, kind: input, shape index: {}]
  %s4 = inlined_call_operand.vmem [shape: f32[1,128], index: 4, kind: input, shape index: {}]
  %s5 = inlined_call_operand.vmem [shape: bf16[128,1024], index: 5, kind: input, shape index: {}]
  %s6 = inlined_call_operand.vmem [shape: f32[1,1024], index: 6, kind: input, shape index: {}]
  %s7 = inlined_call_operand.vmem [shape: f32[2,1,1024], index: 7, kind: output, shape index: {}]
  %s8 = sld [smem:[#allocation0]]
  $region69: #{_lambda_.5} parent=0
    _
  %s10 = ssub.s32 1, %s8
  %s11 = scalar_select 0, %s10, %s8
  loop: start=0, step=1, limit=4
  $region2: #{_lambda_.5} parent=0 // loop_pre_header
    _
  $region3: #{_lambda_.5} parent=0 // loop_header
    %s13 = sphi 0, %s17
    %p14 = scmp.ge.s32.totalorder %s13, 4
    %s20 = sphi 0, %s32
    %s21 = sphi 0, %s28
    %s22 = sphi 0, %s20
    %s23 = sphi 0, %s21
    %s24 = sphi 0, %s22
    %s25 = sphi 0, %s23
    %s37 = sphi 0, %s39
    %s40 = sphi 0, %s37
    %s41 = sphi 0, %s40
    %s57 = sphi 0, %s41
    %s63 = sphi 0, %s65
    %s66 = sphi 0, %s63
    %s67 = sphi 0, %s66
    %s83 = sphi 0, %s67
    %s87 = sphi 0, %s87
    %s89 = sphi 0, %s87
    %s90 = sphi 0, %s89
    %s104 = sphi 0, %s90
    %s108 = sphi 0, %s108
    %s110 = sphi 0, %s108
    %s111 = sphi 0, %s110
    %s125 = sphi 0, %s111
    %s129 = sphi 0, %s129
    %s131 = sphi 0, %s129
    %s132 = sphi 0, %s131
    %s146 = sphi 0, %s132
    %s150 = sphi 0, %s150
    %s152 = sphi 0, %s150
    %s153 = sphi 0, %s152
    %s167 = sphi 0, %s153
    %s171 = sphi 0, %s171
    %s173 = sphi 0, %s171
    %s174 = sphi 0, %s173
    %s188 = sphi 0, %s174
    %s194 = sphi 0, %s196
    %s197 = sphi 0, %s194
    %s198 = sphi 0, %s197
    %s214 = sphi 0, %s198
  $region4: #{_lambda_.5} parent=0 // loop_header_branch
    %16 = sbr.rel (%p14) target = $region8
  $region5: #{_lambda_.5} parent=0 // loop_body
    %s18 = ssub.s32 %s13, 1
    %s19 = ssub.s32 %s13, 2
    %s26 = sadd.s32 1, %s21
    %p27 = scmp.ge.s32.totalorder %s26, 1
    %s28 = scalar_select %p27, 0, %s26
    %s29 = sadd.s32 1, %s20
    %s30 = scalar_select %p27, %s29, %s20
    %p31 = scmp.ge.s32.totalorder %s30, 2
    %s32 = scalar_select %p31, 0, %s30
    %s33 = ssub.s32 %s20, %s32
    %s34 = ssub.s32 %s21, %s28
    %s35 = sor.u32 %s33, %s34
    %p36 = scmp.eq.s32.totalorder %s35, 0
    %s38 = sadd.s32 %s37, 1
    %s39 = scalar_select %p36, %s37, %s38
    %p42 = pneg %p36
    %p43 = scmp.eq.s32.totalorder %s13, 1
    %p44 = por %p42, %p43
    %p45 = scmp.ne.s32.totalorder %s37, %s40
    %p46 = scmp.eq.s32.totalorder %s13, 0
    %p47 = por %p45, %p46
    %p48 = scmp.ne.s32.totalorder %s37, %s40
    %p49 = scmp.eq.s32.totalorder %s18, 1
    %p50 = por %p48, %p49
    %p51 = scmp.ne.s32.totalorder %s40, %s41
    %p52 = scmp.eq.s32.totalorder %s18, 0
    %p53 = por %p51, %p52
    %p54 = scmp.ne.s32.totalorder %s40, %s41
    %p55 = scmp.eq.s32.totalorder %s19, 1
    %p56 = por %p54, %p55
    %p58 = scmp.ne.s32.totalorder %s41, %s57
    %p59 = scmp.eq.s32.totalorder %s19, 0
    %p60 = por %p58, %p59
    %s61 = ssub.s32 %s20, %s32
    %p62 = scmp.eq.s32.totalorder %s61, 0
    %s64 = sadd.s32 %s63, 1
    %s65 = scalar_select %p62, %s63, %s64
    %p68 = pneg %p62
    %p69 = scmp.eq.s32.totalorder %s13, 1
    %p70 = por %p68, %p69
    %p71 = scmp.ne.s32.totalorder %s63, %s66
    %p72 = scmp.eq.s32.totalorder %s13, 0
    %p73 = por %p71, %p72
    %p74 = scmp.ne.s32.totalorder %s63, %s66
    %p75 = scmp.eq.s32.totalorder %s18, 1
    %p76 = por %p74, %p75
    %p77 = scmp.ne.s32.totalorder %s66, %s67
    %p78 = scmp.eq.s32.totalorder %s18, 0
    %p79 = por %p77, %p78
    %p80 = scmp.ne.s32.totalorder %s66, %s67
    %p81 = scmp.eq.s32.totalorder %s19, 1
    %p82 = por %p80, %p81
    %p84 = scmp.ne.s32.totalorder %s67, %s83
    %p85 = scmp.eq.s32.totalorder %s19, 0
    %p86 = por %p84, %p85
    %s88 = sadd.s32 %s87, 1
    %p91 = scmp.eq.s32.totalorder %s13, 1
    %p92 = scmp.ne.s32.totalorder %s87, %s89
    %p93 = scmp.eq.s32.totalorder %s13, 0
    %p94 = por %p92, %p93
    %p95 = scmp.ne.s32.totalorder %s87, %s89
    %p96 = scmp.eq.s32.totalorder %s18, 1
    %p97 = por %p95, %p96
    %p98 = scmp.ne.s32.totalorder %s89, %s90
    %p99 = scmp.eq.s32.totalorder %s18, 0
    %p100 = por %p98, %p99
    %p101 = scmp.ne.s32.totalorder %s89, %s90
    %p102 = scmp.eq.s32.totalorder %s19, 1
    %p103 = por %p101, %p102
    %p105 = scmp.ne.s32.totalorder %s90, %s104
    %p106 = scmp.eq.s32.totalorder %s19, 0
    %p107 = por %p105, %p106
    %s109 = sadd.s32 %s108, 1
    %p112 = scmp.eq.s32.totalorder %s13, 1
    %p113 = scmp.ne.s32.totalorder %s108, %s110
    %p114 = scmp.eq.s32.totalorder %s13, 0
    %p115 = por %p113, %p114
    %p116 = scmp.ne.s32.totalorder %s108, %s110
    %p117 = scmp.eq.s32.totalorder %s18, 1
    %p118 = por %p116, %p117
    %p119 = scmp.ne.s32.totalorder %s110, %s111
    %p120 = scmp.eq.s32.totalorder %s18, 0
    %p121 = por %p119, %p120
    %p122 = scmp.ne.s32.totalorder %s110, %s111
    %p123 = scmp.eq.s32.totalorder %s19, 1
    %p124 = por %p122, %p123
    %p126 = scmp.ne.s32.totalorder %s111, %s125
    %p127 = scmp.eq.s32.totalorder %s19, 0
    %p128 = por %p126, %p127
    %s130 = sadd.s32 %s129, 1
    %p133 = scmp.eq.s32.totalorder %s13, 1
    %p134 = scmp.ne.s32.totalorder %s129, %s131
    %p135 = scmp.eq.s32.totalorder %s13, 0
    %p136 = por %p134, %p135
    %p137 = scmp.ne.s32.totalorder %s129, %s131
    %p138 = scmp.eq.s32.totalorder %s18, 1
    %p139 = por %p137, %p138
    %p140 = scmp.ne.s32.totalorder %s131, %s132
    %p141 = scmp.eq.s32.totalorder %s18, 0
    %p142 = por %p140, %p141
    %p143 = scmp.ne.s32.totalorder %s131, %s132
    %p144 = scmp.eq.s32.totalorder %s19, 1
    %p145 = por %p143, %p144
    %p147 = scmp.ne.s32.totalorder %s132, %s146
    %p148 = scmp.eq.s32.totalorder %s19, 0
    %p149 = por %p147, %p148
    %s151 = sadd.s32 %s150, 1
    %p154 = scmp.eq.s32.totalorder %s13, 1
    %p155 = scmp.ne.s32.totalorder %s150, %s152
    %p156 = scmp.eq.s32.totalorder %s13, 0
    %p157 = por %p155, %p156
    %p158 = scmp.ne.s32.totalorder %s150, %s152
    %p159 = scmp.eq.s32.totalorder %s18, 1
    %p160 = por %p158, %p159
    %p161 = scmp.ne.s32.totalorder %s152, %s153
    %p162 = scmp.eq.s32.totalorder %s18, 0
    %p163 = por %p161, %p162
    %p164 = scmp.ne.s32.totalorder %s152, %s153
    %p165 = scmp.eq.s32.totalorder %s19, 1
    %p166 = por %p164, %p165
    %p168 = scmp.ne.s32.totalorder %s153, %s167
    %p169 = scmp.eq.s32.totalorder %s19, 0
    %p170 = por %p168, %p169
    %s172 = sadd.s32 %s171, 1
    %p175 = scmp.eq.s32.totalorder %s13, 1
    %p176 = scmp.ne.s32.totalorder %s171, %s173
    %p177 = scmp.eq.s32.totalorder %s13, 0
    %p178 = por %p176, %p177
    %p179 = scmp.ne.s32.totalorder %s171, %s173
    %p180 = scmp.eq.s32.totalorder %s18, 1
    %p181 = por %p179, %p180
    %p182 = scmp.ne.s32.totalorder %s173, %s174
    %p183 = scmp.eq.s32.totalorder %s18, 0
    %p184 = por %p182, %p183
    %p185 = scmp.ne.s32.totalorder %s173, %s174
    %p186 = scmp.eq.s32.totalorder %s19, 1
    %p187 = por %p185, %p186
    %p189 = scmp.ne.s32.totalorder %s174, %s188
    %p190 = scmp.eq.s32.totalorder %s19, 0
    %p191 = por %p189, %p190
    %s192 = ssub.s32 %s20, %s32
    %p193 = scmp.eq.s32.totalorder %s192, 0
    %s195 = sadd.s32 %s194, 1
    %s196 = scalar_select %p193, %s194, %s195
    %p199 = pneg %p193
    %p200 = scmp.eq.s32.totalorder %s13, 1
    %p201 = por %p199, %p200
    %p202 = scmp.ne.s32.totalorder %s194, %s197
    %p203 = scmp.eq.s32.totalorder %s13, 0
    %p204 = por %p202, %p203
    %p205 = scmp.ne.s32.totalorder %s194, %s197
    %p206 = scmp.eq.s32.totalorder %s18, 1
    %p207 = por %p205, %p206
    %p208 = scmp.ne.s32.totalorder %s197, %s198
    %p209 = scmp.eq.s32.totalorder %s18, 0
    %p210 = por %p208, %p209
    %p211 = scmp.ne.s32.totalorder %s197, %s198
    %p212 = scmp.eq.s32.totalorder %s19, 1
    %p213 = por %p211, %p212
    %p215 = scmp.ne.s32.totalorder %s198, %s214
    %p216 = scmp.eq.s32.totalorder %s19, 0
    %p217 = por %p215, %p216
    %p218 = scmp.le.s32.totalorder 1, %s13
    %p219 = scmp.lt.s32.totalorder %s13, 3
    %p220 = pnand %p218, %p219
    %p221 = pneg %p220
    // Predicated region
    $region9: #{_lambda_.5} parent=5 // pred_check
      _
    $region10: #{_lambda_.5} parent=5 // pred_check_branch
      %223 = sbr.rel (%p220) target = $region12
    $region11: #{_lambda_.5} parent=5 // pred_region
      %s224 = ssub.s32 %s13, 1
      // Predicated region
      $region13: #{_lambda_.5} parent=11 // pred_check
        %p225 = pneg %p100
      $region14: #{_lambda_.5} parent=11 // pred_check_branch
        %227 = sbr.rel (%p225) target = $region16
      $region15: #{_lambda_.5} parent=11 // pred_region
        _
      $region16: #{_lambda_.5} parent=11 // pred_fallthru
        _
      // Predicated region
      $region17: #{_lambda_.5} parent=11 // pred_check
        %p228 = pneg %p121
      $region18: #{_lambda_.5} parent=11 // pred_check_branch
        %230 = sbr.rel (%p228) target = $region20
      $region19: #{_lambda_.5} parent=11 // pred_region
        _
      $region20: #{_lambda_.5} parent=11 // pred_fallthru
        _
      // Predicated region
      $region21: #{_lambda_.5} parent=11 // pred_check
        %p231 = pneg %p142
      $region22: #{_lambda_.5} parent=11 // pred_check_branch
        %233 = sbr.rel (%p231) target = $region24
      $region23: #{_lambda_.5} parent=11 // pred_region
        _
      $region24: #{_lambda_.5} parent=11 // pred_fallthru
        _
      // Predicated region
      $region25: #{_lambda_.5} parent=11 // pred_check
        %p234 = pneg %p163
      $region26: #{_lambda_.5} parent=11 // pred_check_branch
        %236 = sbr.rel (%p234) target = $region28
      $region27: #{_lambda_.5} parent=11 // pred_region
        _
      $region28: #{_lambda_.5} parent=11 // pred_fallthru
        _
      // Predicated region
      $region29: #{_lambda_.5} parent=11 // pred_check
        %p237 = pneg %p184
      $region30: #{_lambda_.5} parent=11 // pred_check_branch
        %239 = sbr.rel (%p237) target = $region32
      $region31: #{_lambda_.5} parent=11 // pred_region
        _
      $region32: #{_lambda_.5} parent=11 // pred_fallthru
        _
    $region12: #{_lambda_.5} parent=5 // pred_fallthru
      _
    %p240 = scmp.lt.s32.totalorder %s13, 2
    // Predicated region
    $region33: #{_lambda_.5} parent=5 // pred_check
      %p241 = pneg %p240
    $region34: #{_lambda_.5} parent=5 // pred_check_branch
      %243 = sbr.rel (%p241) target = $region36
    $region35: #{_lambda_.5} parent=5 // pred_region
      // Predicated region
      $region37: #{_lambda_.5} parent=35 // pred_check
        %p244 = pneg %p47
      $region38: #{_lambda_.5} parent=35 // pred_check_branch
        %246 = sbr.rel (%p244) target = $region40
      $region39: #{_lambda_.5} parent=35 // pred_region
        %s247 = smul.u32 2, %s21
        %p248 = scmp.lt.s32.totalorder %s20, 1
        %s249 = scalar_select %p248, %s20, 1
        %p250 = scmp.lt.s32.totalorder %s247, 1
        %s251 = scalar_select %p250, %s247, 1
        %s252 = smul.addr %s249, 2
        %s253 = sadd.s32 %s251, %s252
        %s254 = smul.addr %s253, 4
        %s255 = scalar_lea.vmem %s0, %s254
        %s256 = smul.u32 2, %s21
      $region40: #{_lambda_.5} parent=35 // pred_fallthru
        _
      // Predicated region
      $region41: #{_lambda_.5} parent=35 // pred_check
        %p257 = pneg %p73
      $region42: #{_lambda_.5} parent=35 // pred_check_branch
        %259 = sbr.rel (%p257) target = $region44
      $region43: #{_lambda_.5} parent=35 // pred_region
        %p260 = scmp.lt.s32.totalorder %s20, 1
        %s261 = scalar_select %p260, %s20, 1
        %s262 = smul.addr %s261, 4
        %s263 = scalar_lea.vmem %s1, %s262
      $region44: #{_lambda_.5} parent=35 // pred_fallthru
        _
    $region36: #{_lambda_.5} parent=5 // pred_fallthru
      _
    %p264 = scmp.le.s32.totalorder 1, %s13
    %p265 = scmp.lt.s32.totalorder %s13, 3
    %p266 = pnand %p264, %p265
    %p267 = pneg %p266
    // Predicated region
    $region45: #{_lambda_.5} parent=5 // pred_check
      _
    $region46: #{_lambda_.5} parent=5 // pred_check_branch
      %269 = sbr.rel (%p266) target = $region48
    $region47: #{_lambda_.5} parent=5 // pred_region
      %s270 = ssub.s32 %s13, 1
      %s271 = smul.u32 2, %s23
      %p272 = scmp.lt.s32.totalorder %s22, 1
      %s273 = scalar_select %p272, %s22, 1
      %p274 = scmp.lt.s32.totalorder %s271, 1
      %s275 = scalar_select %p274, %s271, 1
      %s276 = smul.addr %s273, 2
      %s277 = sadd.s32 %s275, %s276
      %s278 = smul.addr %s277, 4
      %s279 = scalar_lea.vmem %s0, %s278
      %p280 = pneg %p53
      %p281 = pneg %p50
      %p282 = scmp.lt.s32.totalorder %s22, 1
      %s283 = scalar_select %p282, %s22, 1
      %s284 = smul.addr %s283, 4
      %s285 = scalar_lea.vmem %s1, %s284
      %p286 = pneg %p79
      %p287 = pneg %p76
      %p288 = pneg %p100
      %p289 = pneg %p97
      %p290 = pneg %p121
      %p291 = pneg %p118
      %p292 = pneg %p142
      %p293 = pneg %p139
      %p294 = pneg %p163
      %p295 = pneg %p160
      %p296 = pneg %p184
      %p297 = pneg %p181
      %p298 = pneg %p210
      %p299 = pneg %p207
      %p300 = scmp.lt.s32.totalorder %s22, 1
      %s301 = scalar_select %p300, %s22, 1
      %s302 = smul.addr %s301, 8
      %s303 = scalar_lea.vmem %s7, %s302
      %s304 = smul.u32 2, %s23
      %p305 = scmp.lt.s32.totalorder %s22, 1
      %s306 = scalar_select %p305, %s22, 1
      %p307 = scmp.lt.s32.totalorder %s304, 1
      %s308 = scalar_select %p307, %s304, 1
      %s309 = smul.addr %s306, 2
      %s310 = sadd.s32 %s308, %s309
      %s311 = smul.addr %s310, 4
      %s312 = scalar_lea.vmem %s0, %s311
      %s313 = smul.u32 2, %s23
      %p314 = scmp.lt.s32.totalorder %s22, 1
      %s315 = scalar_select %p314, %s22, 1
      %s316 = smul.addr %s315, 4
      %s317 = scalar_lea.vmem %s1, %s316
      %p318 = scmp.lt.s32.totalorder %s22, 1
      %s319 = scalar_select %p318, %s22, 1
      %s320 = smul.addr %s319, 8
      %s321 = scalar_lea.vmem %s7, %s320
      %p323 = scmp.eq.s32.totalorder %s23, 0
      // Predicated region
      $region49: #{_lambda_.5} parent=47 // pred_check
        %p324 = pneg %p323
      $region50: #{_lambda_.5} parent=47 // pred_check_branch
        %326 = sbr.rel (%p324) target = $region52
      $region51: #{_lambda_.5} parent=47 // pred_region
        %327 = vst [vmem:[#allocation2] sm:$0xff] -inf
      $region52: #{_lambda_.5} parent=47 // pred_fallthru
        _
      %v328 = vld [vmem:[%s312] sm:$0xf]
      %v329 = vld [vmem:[%s312 + $0x4] sm:$0xf]
      %v330 = vld [vmem:[%s317] sm:$0xf]
      %v331 = vld [vmem:[%s2] sm:$0x1]
      %v333 = vlaneseq
      %v334 = vshrl.u32 %v333, 7
      %v335 = vsub.s32 0, %v334
      %v336 = vrot.slane %v331, %v335
      %v340 = vunpack.c.l.b16 %v328
      %v341 = vunpack.c.l.b16 %v329
      %v342 = vpack.c.b16 %v341, %v340
      %vm343 = vcmask 64512
      %v345 = vsel %vm343, %v342, 0
      %vm347 = vcmask 1043456
      %v349 = vsel %vm347, %v330, 0
      %351 = vmatprep.subr.bf16.mxu0 0
      %352 = vmatpush1.bf16.msra.mxu0 %v349
      %353 = vmatprep.subr.bf16.mxu0 0
      %354 = vmatpush1.bf16.msra.mxu0 0
      %355 = vmatprep.subr.bf16.mxu0 0
      %356 = vmatpush1.bf16.msra.mxu0 0
      %357 = vmatprep.subr.bf16.mxu0 0
      %358 = vmatpush1.bf16.msra.mxu0 0
      %359 = vmatprep.subr.bf16.mxu0 0
      %360 = vmatpush1.bf16.msra.mxu0 0
      %361 = vmatprep.subr.bf16.mxu0 0
      %362 = vmatpush1.bf16.msra.mxu0 0
      %363 = vmatprep.subr.bf16.mxu0 0
      %364 = vmatpush1.bf16.msra.mxu0 0
      %365 = vmatprep.subr.bf16.mxu0 0
      %366 = vmatpush1.bf16.msra.mxu0 0
      %367 = vmatprep.subr.bf16.mxu0 0
      %368 = vmatpush1.bf16.msra.mxu0 0
      %369 = vmatprep.subr.bf16.mxu0 0
      %370 = vmatpush1.bf16.msra.mxu0 0
      %371 = vmatprep.subr.bf16.mxu0 0
      %372 = vmatpush1.bf16.msra.mxu0 0
      %373 = vmatprep.subr.bf16.mxu0 0
      %374 = vmatpush1.bf16.msra.mxu0 0
      %375 = vmatprep.subr.bf16.mxu0 0
      %376 = vmatpush1.bf16.msra.mxu0 0
      %377 = vmatprep.subr.bf16.mxu0 0
      %378 = vmatpush1.bf16.msra.mxu0 0
      %379 = vmatprep.subr.bf16.mxu0 0
      %380 = vmatpush1.bf16.msra.mxu0 0
      %381 = vmatprep.subr.bf16.mxu0 0
      %382 = vmatpush1.bf16.msra.mxu0 0
      %383 = vmatprep.mubr.bf16.mxu0 0
      %384 = vmatmul.mubr.bf16.gmra.mrb[0].mxu0 %v345
      %v385 = vpop.f32.mrb[0].mxu0
      %v386 = vadd.f32 %v336, %v385
      %v387 = vpop.f32.mrb[0].mxu0
      %v388 = vpop.f32.mrb[0].mxu0
      %v389 = vadd.f32 %v336, %v388
      %v390 = vpop.f32.mrb[0].mxu0
      %391 = vdwg.mxu0
      %v392 = vmax.f32 %v386, 0.0
      %v393 = vmax.f32 %v389, 0.0
      %v394 = vpack.c.bf16 %v393, %v392
      %v395 = vld [vmem:[%s3] sm:$0xf]
      %v396 = vld [vmem:[%s3 + $0x4] sm:$0xf]
      %v397 = vld [vmem:[%s3 + $0x8] sm:$0xf]
      %v398 = vld [vmem:[%s3 + $0xc] sm:$0xf]
      %v399 = vld [vmem:[%s3 + $0x10] sm:$0xf]
      %v400 = vld [vmem:[%s3 + $0x14] sm:$0xf]
      %v401 = vld [vmem:[%s3 + $0x18] sm:$0xf]
      %v402 = vld [vmem:[%s3 + $0x1c] sm:$0xf]
      %v403 = vld [vmem:[%s4] sm:$0x1]
      %v405 = vlaneseq
      %v406 = vshrl.u32 %v405, 7
      %v407 = vsub.s32 0, %v406
      %v408 = vrot.slane %v403, %v407
      %v418 = vunpack.c.l.b16 %v395
      %v419 = vunpack.c.l.b16 %v396
      %v420 = vunpack.c.l.b16 %v397
      %v421 = vunpack.c.l.b16 %v398
      %v422 = vunpack.c.l.b16 %v399
      %v423 = vunpack.c.l.b16 %v400
      %v424 = vunpack.c.l.b16 %v401
      %v425 = vunpack.c.l.b16 %v402
      %v426 = vpack.c.b16 %v419, %v418
      %v427 = vpack.c.b16 %v421, %v420
      %v428 = vpack.c.b16 %v423, %v422
      %v429 = vpack.c.b16 %v425, %v424
      %vm434 = vcmask 523264
      %v436 = vsel %vm434, %v394, 0
      %438 = vmatprep.subr.bf16.mxu0 0
      %439 = vmatpush1.bf16.msra.mxu0 %v426
      %440 = vmatprep.subr.bf16.mxu0 0
      %441 = vmatpush1.bf16.msra.mxu0 %v427
      %442 = vmatprep.subr.bf16.mxu0 0
      %443 = vmatpush1.bf16.msra.mxu0 %v428
      %444 = vmatprep.subr.bf16.mxu0 0
      %445 = vmatpush1.bf16.msra.mxu0 %v429
      %446 = vmatprep.subr.bf16.mxu0 0
      %447 = vmatpush1.bf16.msra.mxu0 0
      %448 = vmatprep.subr.bf16.mxu0 0
      %449 = vmatpush1.bf16.msra.mxu0 0
      %450 = vmatprep.subr.bf16.mxu0 0
      %451 = vmatpush1.bf16.msra.mxu0 0
      %452 = vmatprep.subr.bf16.mxu0 0
      %453 = vmatpush1.bf16.msra.mxu0 0
      %454 = vmatprep.subr.bf16.mxu0 0
      %455 = vmatpush1.bf16.msra.mxu0 0
      %456 = vmatprep.subr.bf16.mxu0 0
      %457 = vmatpush1.bf16.msra.mxu0 0
      %458 = vmatprep.subr.bf16.mxu0 0
      %459 = vmatpush1.bf16.msra.mxu0 0
      %460 = vmatprep.subr.bf16.mxu0 0
      %461 = vmatpush1.bf16.msra.mxu0 0
      %462 = vmatprep.subr.bf16.mxu0 0
      %463 = vmatpush1.bf16.msra.mxu0 0
      %464 = vmatprep.subr.bf16.mxu0 0
      %465 = vmatpush1.bf16.msra.mxu0 0
      %466 = vmatprep.subr.bf16.mxu0 0
      %467 = vmatpush1.bf16.msra.mxu0 0
      %468 = vmatprep.subr.bf16.mxu0 0
      %469 = vmatpush1.bf16.msra.mxu0 0
      %470 = vmatprep.mubr.bf16.mxu0 0
      %471 = vmatmul.mubr.bf16.gmra.mrb[0].mxu0 %v436
      %v472 = vpop.f32.mrb[0].mxu0
      %v473 = vadd.f32 %v408, %v472
      %v474 = vpop.f32.mrb[0].mxu0
      %v475 = vpop.f32.mrb[0].mxu0
      %v476 = vadd.f32 %v408, %v475
      %v477 = vpop.f32.mrb[0].mxu0
      %478 = vdwg.mxu0
      %v479 = vmax.f32 %v473, 0.0
      %v480 = vmax.f32 %v476, 0.0
      %v481 = vpack.c.bf16 %v480, %v479
      %v482 = vld [vmem:[%s5] sm:$0xff]
      %v483 = vld [vmem:[%s5 + $0x20] sm:$0xff]
      %v484 = vld [vmem:[%s5 + $0x40] sm:$0xff]
      %v485 = vld [vmem:[%s5 + $0x60] sm:$0xff]
      %v486 = vld [vmem:[%s5 + $0x80] sm:$0xff]
      %v487 = vld [vmem:[%s5 + $0xa0] sm:$0xff]
      %v488 = vld [vmem:[%s5 + $0xc0] sm:$0xff]
      %v489 = vld [vmem:[%s5 + $0xe0] sm:$0xff]
      %v490 = vld [vmem:[%s5 + $0x100] sm:$0xff]
      %v491 = vld [vmem:[%s5 + $0x120] sm:$0xff]
      %v492 = vld [vmem:[%s5 + $0x140] sm:$0xff]
      %v493 = vld [vmem:[%s5 + $0x160] sm:$0xff]
      %v494 = vld [vmem:[%s5 + $0x180] sm:$0xff]
      %v495 = vld [vmem:[%s5 + $0x1a0] sm:$0xff]
      %v496 = vld [vmem:[%s5 + $0x1c0] sm:$0xff]
      %v497 = vld [vmem:[%s5 + $0x1e0] sm:$0xff]
      %v498 = vld [vmem:[%s6] sm:$0x3]
      %v500 = vlaneseq
      %v501 = vshrl.u32 %v500, 7
      %v502 = vsub.s32 0, %v501
      %v503 = vrot.slane %v498, %v502
      %v504 = vlaneseq
      %v505 = vshrl.u32 %v504, 7
      %v506 = vsub.s32 1, %v505
      %v507 = vrot.slane %v498, %v506
      %v526 = vunpack.c.l.b16 %v482
      %v527 = vunpack.c.h.b16 %v482
      %v528 = vunpack.c.l.b16 %v483
      %v529 = vunpack.c.h.b16 %v483
      %v530 = vunpack.c.l.b16 %v484
      %v531 = vunpack.c.h.b16 %v484
      %v532 = vunpack.c.l.b16 %v485
      %v533 = vunpack.c.h.b16 %v485
      %v534 = vunpack.c.l.b16 %v486
      %v535 = vunpack.c.h.b16 %v486
      %v536 = vunpack.c.l.b16 %v487
      %v537 = vunpack.c.h.b16 %v487
      %v538 = vunpack.c.l.b16 %v488
      %v539 = vunpack.c.h.b16 %v488
      %v540 = vunpack.c.l.b16 %v489
      %v541 = vunpack.c.h.b16 %v489
      %v542 = vunpack.c.l.b16 %v490
      %v543 = vunpack.c.h.b16 %v490
      %v544 = vunpack.c.l.b16 %v491
      %v545 = vunpack.c.h.b16 %v491
      %v546 = vunpack.c.l.b16 %v492
      %v547 = vunpack.c.h.b16 %v492
      %v548 = vunpack.c.l.b16 %v493
      %v549 = vunpack.c.h.b16 %v493
      %v550 = vunpack.c.l.b16 %v494
      %v551 = vunpack.c.h.b16 %v494
      %v552 = vunpack.c.l.b16 %v495
      %v553 = vunpack.c.h.b16 %v495
      %v554 = vunpack.c.l.b16 %v496
      %v555 = vunpack.c.h.b16 %v496
      %v556 = vunpack.c.l.b16 %v497
      %v557 = vunpack.c.h.b16 %v497
      %v558 = vpack.c.b16 %v528, %v526
      %v559 = vpack.c.b16 %v529, %v527
      %v560 = vpack.c.b16 %v532, %v530
      %v561 = vpack.c.b16 %v533, %v531
      %v562 = vpack.c.b16 %v536, %v534
      %v563 = vpack.c.b16 %v537, %v535
      %v564 = vpack.c.b16 %v540, %v538
      %v565 = vpack.c.b16 %v541, %v539
      %v566 = vpack.c.b16 %v544, %v542
      %v567 = vpack.c.b16 %v545, %v543
      %v568 = vpack.c.b16 %v548, %v546
      %v569 = vpack.c.b16 %v549, %v547
      %v570 = vpack.c.b16 %v552, %v550
      %v571 = vpack.c.b16 %v553, %v551
      %v572 = vpack.c.b16 %v556, %v554
      %v573 = vpack.c.b16 %v557, %v555
      %590 = vmatprep.subr.bf16.mxu0 %v559
      %591 = vmatpush1.bf16.msra.mxu0 %v558
      %592 = vmatprep.subr.bf16.mxu0 %v561
      %593 = vmatpush1.bf16.msra.mxu0 %v560
      %594 = vmatprep.subr.bf16.mxu0 %v563
      %595 = vmatpush1.bf16.msra.mxu0 %v562
      %596 = vmatprep.subr.bf16.mxu0 %v565
      %597 = vmatpush1.bf16.msra.mxu0 %v564
      %598 = vmatprep.subr.bf16.mxu0 %v567
      %599 = vmatpush1.bf16.msra.mxu0 %v566
      %600 = vmatprep.subr.bf16.mxu0 %v569
      %601 = vmatpush1.bf16.msra.mxu0 %v568
      %602 = vmatprep.subr.bf16.mxu0 %v571
      %603 = vmatpush1.bf16.msra.mxu0 %v570
      %604 = vmatprep.subr.bf16.mxu0 %v573
      %605 = vmatpush1.bf16.msra.mxu0 %v572
      %606 = vmatprep.subr.bf16.mxu0 0
      %607 = vmatpush1.bf16.msra.mxu0 0
      %608 = vmatprep.subr.bf16.mxu0 0
      %609 = vmatpush1.bf16.msra.mxu0 0
      %610 = vmatprep.subr.bf16.mxu0 0
      %611 = vmatpush1.bf16.msra.mxu0 0
      %612 = vmatprep.subr.bf16.mxu0 0
      %613 = vmatpush1.bf16.msra.mxu0 0
      %614 = vmatprep.subr.bf16.mxu0 0
      %615 = vmatpush1.bf16.msra.mxu0 0
      %616 = vmatprep.subr.bf16.mxu0 0
      %617 = vmatpush1.bf16.msra.mxu0 0
      %618 = vmatprep.subr.bf16.mxu0 0
      %619 = vmatpush1.bf16.msra.mxu0 0
      %620 = vmatprep.subr.bf16.mxu0 0
      %621 = vmatpush1.bf16.msra.mxu0 0
      %622 = vmatprep.mubr.bf16.mxu0 0
      %623 = vmatmul.mubr.bf16.gmra.mrb[0].mxu0 %v481
      %v624 = vpop.f32.mrb[0].mxu0
      %v625 = vadd.f32 %v503, %v624
      %v626 = vpop.f32.mrb[0].mxu0
      %v627 = vadd.f32 %v507, %v626
      %v628 = vpop.f32.mrb[0].mxu0
      %v629 = vadd.f32 %v503, %v628
      %v630 = vpop.f32.mrb[0].mxu0
      %v631 = vadd.f32 %v507, %v630
      %632 = vdwg.mxu0
      %v633 = vld [vmem:[#allocation2] sm:$0x3]
      %v634 = vmax.f32 %v625, %v629
      %v635 = vrot.slane %v634, 4
      %v636 = vmax.f32 %v634, %v635
      %v637 = vrot.slane %v636, 2
      %v638 = vmax.f32 %v636, %v637
      %v639 = vrot.slane %v638, 1
      %v640 = vmax.f32 %v638, %v639
      %v641 = vmax.f32 %v627, %v631
      %v642 = vrot.slane %v641, 4
      %v643 = vmax.f32 %v641, %v642
      %v644 = vrot.slane %v643, 2
      %v645 = vmax.f32 %v643, %v644
      %v646 = vrot.slane %v645, 1
      %v647 = vmax.f32 %v645, %v646
      %v650 = vcombine.low %v640, %v647
      %v652 = vunpack.c.l.s4 1966171168
      %v653 = vunpack.c.0.s8 %v652
      %v654 = vlaneseq
      %v655 = vshrl.u32 %v654, 7
      %v656 = vsub.s32 %v653, %v655
      %v657 = vrot.slane %v650, %v656
      %v659 = vunpack.c.l.s4 1966171168
      %v660 = vunpack.c.0.s8 %v659
      %v661 = vlaneseq
      %v662 = vshrl.u32 %v661, 7
      %v663 = vsub.s32 %v660, %v662
      %v664 = vrot.slane %v657, %v663
      %v666 = vmax.f32 %v633, %v664
      %v667 = vlaneseq
      %vm668 = vcmp.ge.s32.totalorder %v667, 0
      %vm669 = vcmp.lt.s32.totalorder %v667, 256
      %vm670 = vmand %vm668, %vm669
      %671 = vst.msk [vmem:[#allocation2] sm:$0x3] %vm670, %v666
      %v672 = vld [vmem:[%s5 + $0x8] sm:$0xff]
      %v673 = vld [vmem:[%s5 + $0x28] sm:$0xff]
      %v674 = vld [vmem:[%s5 + $0x48] sm:$0xff]
      %v675 = vld [vmem:[%s5 + $0x68] sm:$0xff]
      %v676 = vld [vmem:[%s5 + $0x88] sm:$0xff]
      %v677 = vld [vmem:[%s5 + $0xa8] sm:$0xff]
      %v678 = vld [vmem:[%s5 + $0xc8] sm:$0xff]
      %v679 = vld [vmem:[%s5 + $0xe8] sm:$0xff]
      %v680 = vld [vmem:[%s5 + $0x108] sm:$0xff]
      %v681 = vld [vmem:[%s5 + $0x128] sm:$0xff]
      %v682 = vld [vmem:[%s5 + $0x148] sm:$0xff]
      %v683 = vld [vmem:[%s5 + $0x168] sm:$0xff]
      %v684 = vld [vmem:[%s5 + $0x188] sm:$0xff]
      %v685 = vld [vmem:[%s5 + $0x1a8] sm:$0xff]
      %v686 = vld [vmem:[%s5 + $0x1c8] sm:$0xff]
      %v687 = vld [vmem:[%s5 + $0x1e8] sm:$0xff]
      %v688 = vld [vmem:[%s6 + $0x2] sm:$0x3]
      %v690 = vlaneseq
      %v691 = vshrl.u32 %v690, 7
      %v692 = vsub.s32 0, %v691
      %v693 = vrot.slane %v688, %v692
      %v694 = vlaneseq
      %v695 = vshrl.u32 %v694, 7
      %v696 = vsub.s32 1, %v695
      %v697 = vrot.slane %v688, %v696
      %v716 = vunpack.c.l.b16 %v672
      %v717 = vunpack.c.h.b16 %v672
      %v718 = vunpack.c.l.b16 %v673
      %v719 = vunpack.c.h.b16 %v673
      %v720 = vunpack.c.l.b16 %v674
      %v721 = vunpack.c.h.b16 %v674
      %v722 = vunpack.c.l.b16 %v675
      %v723 = vunpack.c.h.b16 %v675
      %v724 = vunpack.c.l.b16 %v676
      %v725 = vunpack.c.h.b16 %v676
      %v726 = vunpack.c.l.b16 %v677
      %v727 = vunpack.c.h.b16 %v677
      %v728 = vunpack.c.l.b16 %v678
      %v729 = vunpack.c.h.b16 %v678
      %v730 = vunpack.c.l.b16 %v679
      %v731 = vunpack.c.h.b16 %v679
      %v732 = vunpack.c.l.b16 %v680
      %v733 = vunpack.c.h.b16 %v680
      %v734 = vunpack.c.l.b16 %v681
      %v735 = vunpack.c.h.b16 %v681
      %v736 = vunpack.c.l.b16 %v682
      %v737 = vunpack.c.h.b16 %v682
      %v738 = vunpack.c.l.b16 %v683
      %v739 = vunpack.c.h.b16 %v683
      %v740 = vunpack.c.l.b16 %v684
      %v741 = vunpack.c.h.b16 %v684
      %v742 = vunpack.c.l.b16 %v685
      %v743 = vunpack.c.h.b16 %v685
      %v744 = vunpack.c.l.b16 %v686
      %v745 = vunpack.c.h.b16 %v686
      %v746 = vunpack.c.l.b16 %v687
      %v747 = vunpack.c.h.b16 %v687
      %v748 = vpack.c.b16 %v718, %v716
      %v749 = vpack.c.b16 %v719, %v717
      %v750 = vpack.c.b16 %v722, %v720
      %v751 = vpack.c.b16 %v723, %v721
      %v752 = vpack.c.b16 %v726, %v724
      %v753 = vpack.c.b16 %v727, %v725
      %v754 = vpack.c.b16 %v730, %v728
      %v755 = vpack.c.b16 %v731, %v729
      %v756 = vpack.c.b16 %v734, %v732
      %v757 = vpack.c.b16 %v735, %v733
      %v758 = vpack.c.b16 %v738, %v736
      %v759 = vpack.c.b16 %v739, %v737
      %v760 = vpack.c.b16 %v742, %v740
      %v761 = vpack.c.b16 %v743, %v741
      %v762 = vpack.c.b16 %v746, %v744
      %v763 = vpack.c.b16 %v747, %v745
      %780 = vmatprep.subr.bf16.mxu0 %v749
      %781 = vmatpush1.bf16.msra.mxu0 %v748
      %782 = vmatprep.subr.bf16.mxu0 %v751
      %783 = vmatpush1.bf16.msra.mxu0 %v750
      %784 = vmatprep.subr.bf16.mxu0 %v753
      %785 = vmatpush1.bf16.msra.mxu0 %v752
      %786 = vmatprep.subr.bf16.mxu0 %v755
      %787 = vmatpush1.bf16.msra.mxu0 %v754
      %788 = vmatprep.subr.bf16.mxu0 %v757
      %789 = vmatpush1.bf16.msra.mxu0 %v756
      %790 = vmatprep.subr.bf16.mxu0 %v759
      %791 = vmatpush1.bf16.msra.mxu0 %v758
      %792 = vmatprep.subr.bf16.mxu0 %v761
      %793 = vmatpush1.bf16.msra.mxu0 %v760
      %794 = vmatprep.subr.bf16.mxu0 %v763
      %795 = vmatpush1.bf16.msra.mxu0 %v762
      %796 = vmatprep.subr.bf16.mxu0 0
      %797 = vmatpush1.bf16.msra.mxu0 0
      %798 = vmatprep.subr.bf16.mxu0 0
      %799 = vmatpush1.bf16.msra.mxu0 0
      %800 = vmatprep.subr.bf16.mxu0 0
      %801 = vmatpush1.bf16.msra.mxu0 0
      %802 = vmatprep.subr.bf16.mxu0 0
      %803 = vmatpush1.bf16.msra.mxu0 0
      %804 = vmatprep.subr.bf16.mxu0 0
      %805 = vmatpush1.bf16.msra.mxu0 0
      %806 = vmatprep.subr.bf16.mxu0 0
      %807 = vmatpush1.bf16.msra.mxu0 0
      %808 = vmatprep.subr.bf16.mxu0 0
      %809 = vmatpush1.bf16.msra.mxu0 0
      %810 = vmatprep.subr.bf16.mxu0 0
      %811 = vmatpush1.bf16.msra.mxu0 0
      %812 = vmatprep.mubr.bf16.mxu0 0
      %813 = vmatmul.mubr.bf16.gmra.mrb[0].mxu0 %v481
      %v814 = vpop.f32.mrb[0].mxu0
      %v815 = vadd.f32 %v693, %v814
      %v816 = vpop.f32.mrb[0].mxu0
      %v817 = vadd.f32 %v697, %v816
      %v818 = vpop.f32.mrb[0].mxu0
      %v819 = vadd.f32 %v693, %v818
      %v820 = vpop.f32.mrb[0].mxu0
      %v821 = vadd.f32 %v697, %v820
      %822 = vdwg.mxu0
      %v823 = vld [vmem:[#allocation2 + $0x2] sm:$0x3]
      %v824 = vmax.f32 %v815, %v819
      %v825 = vrot.slane %v824, 4
      %v826 = vmax.f32 %v824, %v825
      %v827 = vrot.slane %v826, 2
      %v828 = vmax.f32 %v826, %v827
      %v829 = vrot.slane %v828, 1
      %v830 = vmax.f32 %v828, %v829
      %v831 = vmax.f32 %v817, %v821
      %v832 = vrot.slane %v831, 4
      %v833 = vmax.f32 %v831, %v832
      %v834 = vrot.slane %v833, 2
      %v835 = vmax.f32 %v833, %v834
      %v836 = vrot.slane %v835, 1
      %v837 = vmax.f32 %v835, %v836
      %v840 = vcombine.low %v830, %v837
      %v842 = vunpack.c.l.s4 1966171168
      %v843 = vunpack.c.0.s8 %v842
      %v844 = vlaneseq
      %v845 = vshrl.u32 %v844, 7
      %v846 = vsub.s32 %v843, %v845
      %v847 = vrot.slane %v840, %v846
      %v849 = vunpack.c.l.s4 1966171168
      %v850 = vunpack.c.0.s8 %v849
      %v851 = vlaneseq
      %v852 = vshrl.u32 %v851, 7
      %v853 = vsub.s32 %v850, %v852
      %v854 = vrot.slane %v847, %v853
      %v856 = vmax.f32 %v823, %v854
      %857 = vst.msk [vmem:[#allocation2 + $0x2] sm:$0x3] %vm670, %v856
      %v858 = vld [vmem:[%s5 + $0x10] sm:$0xff]
      %v859 = vld [vmem:[%s5 + $0x30] sm:$0xff]
      %v860 = vld [vmem:[%s5 + $0x50] sm:$0xff]
      %v861 = vld [vmem:[%s5 + $0x70] sm:$0xff]
      %v862 = vld [vmem:[%s5 + $0x90] sm:$0xff]
      %v863 = vld [vmem:[%s5 + $0xb0] sm:$0xff]
      %v864 = vld [vmem:[%s5 + $0xd0] sm:$0xff]
      %v865 = vld [vmem:[%s5 + $0xf0] sm:$0xff]
      %v866 = vld [vmem:[%s5 + $0x110] sm:$0xff]
      %v867 = vld [vmem:[%s5 + $0x130] sm:$0xff]
      %v868 = vld [vmem:[%s5 + $0x150] sm:$0xff]
      %v869 = vld [vmem:[%s5 + $0x170] sm:$0xff]
      %v870 = vld [vmem:[%s5 + $0x190] sm:$0xff]
      %v871 = vld [vmem:[%s5 + $0x1b0] sm:$0xff]
      %v872 = vld [vmem:[%s5 + $0x1d0] sm:$0xff]
      %v873 = vld [vmem:[%s5 + $0x1f0] sm:$0xff]
      %v874 = vld [vmem:[%s6 + $0x4] sm:$0x3]
      %v876 = vlaneseq
      %v877 = vshrl.u32 %v876, 7
      %v878 = vsub.s32 0, %v877
      %v879 = vrot.slane %v874, %v878
      %v880 = vlaneseq
      %v881 = vshrl.u32 %v880, 7
      %v882 = vsub.s32 1, %v881
      %v883 = vrot.slane %v874, %v882
      %v902 = vunpack.c.l.b16 %v858
      %v903 = vunpack.c.h.b16 %v858
      %v904 = vunpack.c.l.b16 %v859
      %v905 = vunpack.c.h.b16 %v859
      %v906 = vunpack.c.l.b16 %v860
      %v907 = vunpack.c.h.b16 %v860
      %v908 = vunpack.c.l.b16 %v861
      %v909 = vunpack.c.h.b16 %v861
      %v910 = vunpack.c.l.b16 %v862
      %v911 = vunpack.c.h.b16 %v862
      %v912 = vunpack.c.l.b16 %v863
      %v913 = vunpack.c.h.b16 %v863
      %v914 = vunpack.c.l.b16 %v864
      %v915 = vunpack.c.h.b16 %v864
      %v916 = vunpack.c.l.b16 %v865
      %v917 = vunpack.c.h.b16 %v865
      %v918 = vunpack.c.l.b16 %v866
      %v919 = vunpack.c.h.b16 %v866
      %v920 = vunpack.c.l.b16 %v867
      %v921 = vunpack.c.h.b16 %v867
      %v922 = vunpack.c.l.b16 %v868
      %v923 = vunpack.c.h.b16 %v868
      %v924 = vunpack.c.l.b16 %v869
      %v925 = vunpack.c.h.b16 %v869
      %v926 = vunpack.c.l.b16 %v870
      %v927 = vunpack.c.h.b16 %v870
      %v928 = vunpack.c.l.b16 %v871
      %v929 = vunpack.c.h.b16 %v871
      %v930 = vunpack.c.l.b16 %v872
      %v931 = vunpack.c.h.b16 %v872
      %v932 = vunpack.c.l.b16 %v873
      %v933 = vunpack.c.h.b16 %v873
      %v934 = vpack.c.b16 %v904, %v902
      %v935 = vpack.c.b16 %v905, %v903
      %v936 = vpack.c.b16 %v908, %v906
      %v937 = vpack.c.b16 %v909, %v907
      %v938 = vpack.c.b16 %v912, %v910
      %v939 = vpack.c.b16 %v913, %v911
      %v940 = vpack.c.b16 %v916, %v914
      %v941 = vpack.c.b16 %v917, %v915
      %v942 = vpack.c.b16 %v920, %v918
      %v943 = vpack.c.b16 %v921, %v919
      %v944 = vpack.c.b16 %v924, %v922
      %v945 = vpack.c.b16 %v925, %v923
      %v946 = vpack.c.b16 %v928, %v926
      %v947 = vpack.c.b16 %v929, %v927
      %v948 = vpack.c.b16 %v932, %v930
      %v949 = vpack.c.b16 %v933, %v931
      %966 = vmatprep.subr.bf16.mxu0 %v935
      %967 = vmatpush1.bf16.msra.mxu0 %v934
      %968 = vmatprep.subr.bf16.mxu0 %v937
      %969 = vmatpush1.bf16.msra.mxu0 %v936
      %970 = vmatprep.subr.bf16.mxu0 %v939
      %971 = vmatpush1.bf16.msra.mxu0 %v938
      %972 = vmatprep.subr.bf16.mxu0 %v941
      %973 = vmatpush1.bf16.msra.mxu0 %v940
      %974 = vmatprep.subr.bf16.mxu0 %v943
      %975 = vmatpush1.bf16.msra.mxu0 %v942
      %976 = vmatprep.subr.bf16.mxu0 %v945
      %977 = vmatpush1.bf16.msra.mxu0 %v944
      %978 = vmatprep.subr.bf16.mxu0 %v947
      %979 = vmatpush1.bf16.msra.mxu0 %v946
      %980 = vmatprep.subr.bf16.mxu0 %v949
      %981 = vmatpush1.bf16.msra.mxu0 %v948
      %982 = vmatprep.subr.bf16.mxu0 0
      %983 = vmatpush1.bf16.msra.mxu0 0
      %984 = vmatprep.subr.bf16.mxu0 0
      %985 = vmatpush1.bf16.msra.mxu0 0
      %986 = vmatprep.subr.bf16.mxu0 0
      %987 = vmatpush1.bf16.msra.mxu0 0
      %988 = vmatprep.subr.bf16.mxu0 0
      %989 = vmatpush1.bf16.msra.mxu0 0
      %990 = vmatprep.subr.bf16.mxu0 0
      %991 = vmatpush1.bf16.msra.mxu0 0
      %992 = vmatprep.subr.bf16.mxu0 0
      %993 = vmatpush1.bf16.msra.mxu0 0
      %994 = vmatprep.subr.bf16.mxu0 0
      %995 = vmatpush1.bf16.msra.mxu0 0
      %996 = vmatprep.subr.bf16.mxu0 0
      %997 = vmatpush1.bf16.msra.mxu0 0
      %998 = vmatprep.mubr.bf16.mxu0 0
      %999 = vmatmul.mubr.bf16.gmra.mrb[0].mxu0 %v481
      %v1000 = vpop.f32.mrb[0].mxu0
      %v1001 = vadd.f32 %v879, %v1000
      %v1002 = vpop.f32.mrb[0].mxu0
      %v1003 = vadd.f32 %v883, %v1002
      %v1004 = vpop.f32.mrb[0].mxu0
      %v1005 = vadd.f32 %v879, %v1004
      %v1006 = vpop.f32.mrb[0].mxu0
      %v1007 = vadd.f32 %v883, %v1006
      %1008 = vdwg.mxu0
      %v1009 = vld [vmem:[#allocation2 + $0x4] sm:$0x3]
      %v1010 = vmax.f32 %v1001, %v1005
      %v1011 = vrot.slane %v1010, 4
      %v1012 = vmax.f32 %v1010, %v1011
      %v1013 = vrot.slane %v1012, 2
      %v1014 = vmax.f32 %v1012, %v1013
      %v1015 = vrot.slane %v1014, 1
      %v1016 = vmax.f32 %v1014, %v1015
      %v1017 = vmax.f32 %v1003, %v1007
      %v1018 = vrot.slane %v1017, 4
      %v1019 = vmax.f32 %v1017, %v1018
      %v1020 = vrot.slane %v1019, 2
      %v1021 = vmax.f32 %v1019, %v1020
      %v1022 = vrot.slane %v1021, 1
      %v1023 = vmax.f32 %v1021, %v1022
      %v1026 = vcombine.low %v1016, %v1023
      %v1028 = vunpack.c.l.s4 1966171168
      %v1029 = vunpack.c.0.s8 %v1028
      %v1030 = vlaneseq
      %v1031 = vshrl.u32 %v1030, 7
      %v1032 = vsub.s32 %v1029, %v1031
      %v1033 = vrot.slane %v1026, %v1032
      %v1035 = vunpack.c.l.s4 1966171168
      %v1036 = vunpack.c.0.s8 %v1035
      %v1037 = vlaneseq
      %v1038 = vshrl.u32 %v1037, 7
      %v1039 = vsub.s32 %v1036, %v1038
      %v1040 = vrot.slane %v1033, %v1039
      %v1042 = vmax.f32 %v1009, %v1040
      %1043 = vst.msk [vmem:[#allocation2 + $0x4] sm:$0x3] %vm670, %v1042
      %v1044 = vld [vmem:[%s5 + $0x18] sm:$0xff]
      %v1045 = vld [vmem:[%s5 + $0x38] sm:$0xff]
      %v1046 = vld [vmem:[%s5 + $0x58] sm:$0xff]
      %v1047 = vld [vmem:[%s5 + $0x78] sm:$0xff]
      %v1048 = vld [vmem:[%s5 + $0x98] sm:$0xff]
      %v1049 = vld [vmem:[%s5 + $0xb8] sm:$0xff]
      %v1050 = vld [vmem:[%s5 + $0xd8] sm:$0xff]
      %v1051 = vld [vmem:[%s5 + $0xf8] sm:$0xff]
      %v1052 = vld [vmem:[%s5 + $0x118] sm:$0xff]
      %v1053 = vld [vmem:[%s5 + $0x138] sm:$0xff]
      %v1054 = vld [vmem:[%s5 + $0x158] sm:$0xff]
      %v1055 = vld [vmem:[%s5 + $0x178] sm:$0xff]
      %v1056 = vld [vmem:[%s5 + $0x198] sm:$0xff]
      %v1057 = vld [vmem:[%s5 + $0x1b8] sm:$0xff]
      %v1058 = vld [vmem:[%s5 + $0x1d8] sm:$0xff]
      %v1059 = vld [vmem:[%s5 + $0x1f8] sm:$0xff]
      %v1060 = vld [vmem:[%s6 + $0x6] sm:$0x3]
      %v1062 = vlaneseq
      %v1063 = vshrl.u32 %v1062, 7
      %v1064 = vsub.s32 0, %v1063
      %v1065 = vrot.slane %v1060, %v1064
      %v1066 = vlaneseq
      %v1067 = vshrl.u32 %v1066, 7
      %v1068 = vsub.s32 1, %v1067
      %v1069 = vrot.slane %v1060, %v1068
      %v1088 = vunpack.c.l.b16 %v1044
      %v1089 = vunpack.c.h.b16 %v1044
      %v1090 = vunpack.c.l.b16 %v1045
      %v1091 = vunpack.c.h.b16 %v1045
      %v1092 = vunpack.c.l.b16 %v1046
      %v1093 = vunpack.c.h.b16 %v1046
      %v1094 = vunpack.c.l.b16 %v1047
      %v1095 = vunpack.c.h.b16 %v1047
      %v1096 = vunpack.c.l.b16 %v1048
      %v1097 = vunpack.c.h.b16 %v1048
      %v1098 = vunpack.c.l.b16 %v1049
      %v1099 = vunpack.c.h.b16 %v1049
      %v1100 = vunpack.c.l.b16 %v1050
      %v1101 = vunpack.c.h.b16 %v1050
      %v1102 = vunpack.c.l.b16 %v1051
      %v1103 = vunpack.c.h.b16 %v1051
      %v1104 = vunpack.c.l.b16 %v1052
      %v1105 = vunpack.c.h.b16 %v1052
      %v1106 = vunpack.c.l.b16 %v1053
      %v1107 = vunpack.c.h.b16 %v1053
      %v1108 = vunpack.c.l.b16 %v1054
      %v1109 = vunpack.c.h.b16 %v1054
      %v1110 = vunpack.c.l.b16 %v1055
      %v1111 = vunpack.c.h.b16 %v1055
      %v1112 = vunpack.c.l.b16 %v1056
      %v1113 = vunpack.c.h.b16 %v1056
      %v1114 = vunpack.c.l.b16 %v1057
      %v1115 = vunpack.c.h.b16 %v1057
      %v1116 = vunpack.c.l.b16 %v1058
      %v1117 = vunpack.c.h.b16 %v1058
      %v1118 = vunpack.c.l.b16 %v1059
      %v1119 = vunpack.c.h.b16 %v1059
      %v1120 = vpack.c.b16 %v1090, %v1088
      %v1121 = vpack.c.b16 %v1091, %v1089
      %v1122 = vpack.c.b16 %v1094, %v1092
      %v1123 = vpack.c.b16 %v1095, %v1093
      %v1124 = vpack.c.b16 %v1098, %v1096
      %v1125 = vpack.c.b16 %v1099, %v1097
      %v1126 = vpack.c.b16 %v1102, %v1100
      %v1127 = vpack.c.b16 %v1103, %v1101
      %v1128 = vpack.c.b16 %v1106, %v1104
      %v1129 = vpack.c.b16 %v1107, %v1105
      %v1130 = vpack.c.b16 %v1110, %v1108
      %v1131 = vpack.c.b16 %v1111, %v1109
      %v1132 = vpack.c.b16 %v1114, %v1112
      %v1133 = vpack.c.b16 %v1115, %v1113
      %v1134 = vpack.c.b16 %v1118, %v1116
      %v1135 = vpack.c.b16 %v1119, %v1117
      %1152 = vmatprep.subr.bf16.mxu0 %v1121
      %1153 = vmatpush1.bf16.msra.mxu0 %v1120
      %1154 = vmatprep.subr.bf16.mxu0 %v1123
      %1155 = vmatpush1.bf16.msra.mxu0 %v1122
      %1156 = vmatprep.subr.bf16.mxu0 %v1125
      %1157 = vmatpush1.bf16.msra.mxu0 %v1124
      %1158 = vmatprep.subr.bf16.mxu0 %v1127
      %1159 = vmatpush1.bf16.msra.mxu0 %v1126
      %1160 = vmatprep.subr.bf16.mxu0 %v1129
      %1161 = vmatpush1.bf16.msra.mxu0 %v1128
      %1162 = vmatprep.subr.bf16.mxu0 %v1131
      %1163 = vmatpush1.bf16.msra.mxu0 %v1130
      %1164 = vmatprep.subr.bf16.mxu0 %v1133
      %1165 = vmatpush1.bf16.msra.mxu0 %v1132
      %1166 = vmatprep.subr.bf16.mxu0 %v1135
      %1167 = vmatpush1.bf16.msra.mxu0 %v1134
      %1168 = vmatprep.subr.bf16.mxu0 0
      %1169 = vmatpush1.bf16.msra.mxu0 0
      %1170 = vmatprep.subr.bf16.mxu0 0
      %1171 = vmatpush1.bf16.msra.mxu0 0
      %1172 = vmatprep.subr.bf16.mxu0 0
      %1173 = vmatpush1.bf16.msra.mxu0 0
      %1174 = vmatprep.subr.bf16.mxu0 0
      %1175 = vmatpush1.bf16.msra.mxu0 0
      %1176 = vmatprep.subr.bf16.mxu0 0
      %1177 = vmatpush1.bf16.msra.mxu0 0
      %1178 = vmatprep.subr.bf16.mxu0 0
      %1179 = vmatpush1.bf16.msra.mxu0 0
      %1180 = vmatprep.subr.bf16.mxu0 0
      %1181 = vmatpush1.bf16.msra.mxu0 0
      %1182 = vmatprep.subr.bf16.mxu0 0
      %1183 = vmatpush1.bf16.msra.mxu0 0
      %1184 = vmatprep.mubr.bf16.mxu0 0
      %1185 = vmatmul.mubr.bf16.gmra.mrb[0].mxu0 %v481
      %v1186 = vpop.f32.mrb[0].mxu0
      %v1187 = vadd.f32 %v1065, %v1186
      %v1188 = vpop.f32.mrb[0].mxu0
      %v1189 = vadd.f32 %v1069, %v1188
      %v1190 = vpop.f32.mrb[0].mxu0
      %v1191 = vadd.f32 %v1065, %v1190
      %v1192 = vpop.f32.mrb[0].mxu0
      %v1193 = vadd.f32 %v1069, %v1192
      %1194 = vdwg.mxu0
      %v1195 = vld [vmem:[#allocation2 + $0x6] sm:$0x3]
      %v1196 = vmax.f32 %v1187, %v1191
      %v1197 = vrot.slane %v1196, 4
      %v1198 = vmax.f32 %v1196, %v1197
      %v1199 = vrot.slane %v1198, 2
      %v1200 = vmax.f32 %v1198, %v1199
      %v1201 = vrot.slane %v1200, 1
      %v1202 = vmax.f32 %v1200, %v1201
      %v1203 = vmax.f32 %v1189, %v1193
      %v1204 = vrot.slane %v1203, 4
      %v1205 = vmax.f32 %v1203, %v1204
      %v1206 = vrot.slane %v1205, 2
      %v1207 = vmax.f32 %v1205, %v1206
      %v1208 = vrot.slane %v1207, 1
      %v1209 = vmax.f32 %v1207, %v1208
      %v1212 = vcombine.low %v1202, %v1209
      %v1214 = vunpack.c.l.s4 1966171168
      %v1215 = vunpack.c.0.s8 %v1214
      %v1216 = vlaneseq
      %v1217 = vshrl.u32 %v1216, 7
      %v1218 = vsub.s32 %v1215, %v1217
      %v1219 = vrot.slane %v1212, %v1218
      %v1221 = vunpack.c.l.s4 1966171168
      %v1222 = vunpack.c.0.s8 %v1221
      %v1223 = vlaneseq
      %v1224 = vshrl.u32 %v1223, 7
      %v1225 = vsub.s32 %v1222, %v1224
      %v1226 = vrot.slane %v1219, %v1225
      %v1228 = vmax.f32 %v1195, %v1226
      %1229 = vst.msk [vmem:[#allocation2 + $0x6] sm:$0x3] %vm670, %v1228
      // Predicated region
      $region53: #{_lambda_.5} parent=47 // pred_check
        %p1230 = pneg %p323
      $region54: #{_lambda_.5} parent=47 // pred_check_branch
        %1232 = sbr.rel (%p1230) target = $region56
      $region55: #{_lambda_.5} parent=47 // pred_region
        %v1233 = vld [vmem:[#allocation2] sm:$0xff]
        %1234 = vst [vmem:[%s321] sm:$0xff] %v1233
      $region56: #{_lambda_.5} parent=47 // pred_fallthru
        _
      %p1235 = scmp.lt.s32.totalorder %s22, 1
      %s1236 = scalar_select %p1235, %s22, 1
      %s1237 = smul.addr %s1236, 8
      %s1238 = scalar_lea.vmem %s7, %s1237
      // Predicated region
      $region57: #{_lambda_.5} parent=47 // pred_check
        %p1239 = pneg %p207
      $region58: #{_lambda_.5} parent=47 // pred_check_branch
        %1241 = sbr.rel (%p1239) target = $region60
      $region59: #{_lambda_.5} parent=47 // pred_region
        _
      $region60: #{_lambda_.5} parent=47 // pred_fallthru
        _
    $region48: #{_lambda_.5} parent=5 // pred_fallthru
      _
    %p1242 = scmp.le.s32.totalorder 2, %s13
    // Predicated region
    $region61: #{_lambda_.5} parent=5 // pred_check
      %p1243 = pneg %p1242
    $region62: #{_lambda_.5} parent=5 // pred_check_branch
      %1245 = sbr.rel (%p1243) target = $region64
    $region63: #{_lambda_.5} parent=5 // pred_region
      %s1246 = ssub.s32 %s13, 2
      // Predicated region
      $region65: #{_lambda_.5} parent=63 // pred_check
        %p1247 = pneg %p213
      $region66: #{_lambda_.5} parent=63 // pred_check_branch
        %1249 = sbr.rel (%p1247) target = $region68
      $region67: #{_lambda_.5} parent=63 // pred_region
        %p1250 = scmp.lt.s32.totalorder %s24, 1
        %s1251 = scalar_select %p1250, %s24, 1
        %s1252 = smul.addr %s1251, 8
        %s1253 = scalar_lea.vmem %s7, %s1252
      $region68: #{_lambda_.5} parent=63 // pred_fallthru
        _
    $region64: #{_lambda_.5} parent=5 // pred_fallthru
      _
  $region6: #{_lambda_.5} parent=0 // loop_footer
    %s17 = sadd.s32 1, %s13
  $region7: #{_lambda_.5} parent=0 // loop_footer_branch
    %12 = sbr.rel target = $region3
  $region8: #{_lambda_.5} parent=0 // loop_exit
    _

// kernel: _lambda_.4
$region0: #{_lambda_.4}
  #allocation0 [shape = 'u32[]', space=smem, size = 0x4, offset = 0x4, fixed_abs, tag = 'smem constant byte address 0x4 - core index']
  #allocation1 [shape = 'u32[144,128]{1,0:T(1,128)}', space=vmem, size = 0x12000, scoped, tag = 'internal scratch']
  %s0 = inlined_call_operand.vmem [shape: f32[2,1024], index: 0, kind: input, shape index: {}]
  %s1 = inlined_call_operand.hbm [shape: f32[1024,512], index: 1, kind: input, shape index: {}]
  %s2 = inlined_call_operand.hbm [shape: f32[1,512], index: 2, kind: input, shape index: {}]
  %s3 = inlined_call_operand.hbm [shape: f32[512,256], index: 3, kind: input, shape index: {}]
  %s4 = inlined_call_operand.hbm [shape: f32[1,256], index: 4, kind: input, shape index: {}]
  %s5 = inlined_call_operand.hbm [shape: f32[256,128], index: 5, kind: input, shape index: {}]
  %s6 = inlined_call_operand.hbm [shape: f32[1,128], index: 6, kind: input, shape index: {}]
  %s7 = inlined_call_operand.vmem [shape: f32[2,128], index: 7, kind: output, shape index: {}]
  %s8 = sld [smem:[#allocation0]]
  $region62: #{_lambda_.4} parent=0
    _
  %s10 = ssub.s32 1, %s8
  %s11 = scalar_select 0, %s10, %s8
  $region1: #{_lambda_.4} parent=0
    #allocation2 [shape = 'u8[2097152]{0}', space=vmem, size = 0x200000, scoped, tag = 'input window, operand 1, single buffered']
    #allocation3 [shape = 's32[1]{0}', space=sflag, size = 0x4, scoped, tag = 'scoped memory for _lambda_.4']
    #allocation4 [shape = 'u8[2048]{0}', space=vmem, size = 0x800, scoped, tag = 'input window, operand 2, single buffered']
    #allocation5 [shape = 's32[1]{0}', space=sflag, size = 0x4, scoped, tag = 'scoped memory for _lambda_.4']
    #allocation6 [shape = 'u8[524288]{0}', space=vmem, size = 0x80000, scoped, tag = 'input window, operand 3, single buffered']
    #allocation7 [shape = 'u8[1024]{0}', space=vmem, size = 0x400, scoped, tag = 'input window, operand 4, single buffered']
    #allocation8 [shape = 's32[1]{0}', space=sflag, size = 0x4, scoped, tag = 'scoped memory for _lambda_.4']
    #allocation9 [shape = 'u8[131072]{0}', space=vmem, size = 0x20000, scoped, tag = 'input window, operand 5, single buffered']
    #allocation10 [shape = 'u8[512]{0}', space=vmem, size = 0x400, scoped, tag = 'input window, operand 6, single buffered']
    #allocation11 [shape = 's32[1]{0}', space=sflag, size = 0x4, scoped, tag = 'scoped memory for _lambda_.4']
    %12 = vsyncpa [#allocation3], 0
    %13 = vsyncpa [#allocation5], 0
    %14 = vsyncpa [#allocation8], 0
    %15 = vsyncpa [#allocation11], 0
    // Predicated region
    $region2: #{_lambda_.4} parent=1 // pred_check
      _
    $region3: #{_lambda_.4} parent=1 // pred_check_branch
      %17 = sbr.rel (0) target = $region5
    $region4: #{_lambda_.4} parent=1 // pred_region
      _
    $region5: #{_lambda_.4} parent=1 // pred_fallthru
      _
    // Predicated region
    $region6: #{_lambda_.4} parent=1 // pred_check
      _
    $region7: #{_lambda_.4} parent=1 // pred_check_branch
      %19 = sbr.rel (0) target = $region9
    $region8: #{_lambda_.4} parent=1 // pred_region
      %s21 = ssub.s32 65536, 65536
      %22 = vsyncadd [#allocation3], %s21
      %s23 = sshll.u32 [#allocation2], 4
      %s24 = int_to_ptr.vmem [resolvable:$true] %s23
      %29 = dma.hbm_to_vmem [thread:$0]  %s1, 65536, %s24, [#allocation3], 512, 512, 32
    $region9: #{_lambda_.4} parent=1 // pred_fallthru
      _
    // Predicated region
    $region10: #{_lambda_.4} parent=1 // pred_check
      _
    $region11: #{_lambda_.4} parent=1 // pred_check_branch
      %31 = sbr.rel (0) target = $region13
    $region12: #{_lambda_.4} parent=1 // pred_region
      %s33 = ssub.s32 64, 64
      %34 = vsyncadd [#allocation5], %s33
      %s36 = sshll.u32 [#allocation4], 4
      %s37 = int_to_ptr.vmem [resolvable:$true] %s36
      %39 = dma.hbm_to_vmem [thread:$0]  %s2, 64, %s37, [#allocation5]
    $region13: #{_lambda_.4} parent=1 // pred_fallthru
      _
    // Predicated region
    $region14: #{_lambda_.4} parent=1 // pred_check
      _
    $region15: #{_lambda_.4} parent=1 // pred_check_branch
      %41 = sbr.rel (0) target = $region17
    $region16: #{_lambda_.4} parent=1 // pred_region
      %s43 = ssub.s32 16384, 16384
      %44 = vsyncadd [#allocation5], %s43
      %s45 = sshll.u32 [#allocation6], 4
      %s46 = int_to_ptr.vmem [resolvable:$true] %s45
      %51 = dma.hbm_to_vmem [thread:$0]  %s3, 16384, %s46, [#allocation5], 256, 256, 16
    $region17: #{_lambda_.4} parent=1 // pred_fallthru
      _
    // Predicated region
    $region18: #{_lambda_.4} parent=1 // pred_check
      _
    $region19: #{_lambda_.4} parent=1 // pred_check_branch
      %53 = sbr.rel (0) target = $region21
    $region20: #{_lambda_.4} parent=1 // pred_region
      %s55 = ssub.s32 32, 32
      %56 = vsyncadd [#allocation8], %s55
      %s58 = sshll.u32 [#allocation7], 4
      %s59 = int_to_ptr.vmem [resolvable:$true] %s58
      %61 = dma.hbm_to_vmem [thread:$0]  %s4, 32, %s59, [#allocation8]
    $region21: #{_lambda_.4} parent=1 // pred_fallthru
      _
    // Predicated region
    $region22: #{_lambda_.4} parent=1 // pred_check
      _
    $region23: #{_lambda_.4} parent=1 // pred_check_branch
      %63 = sbr.rel (0) target = $region25
    $region24: #{_lambda_.4} parent=1 // pred_region
      %s65 = ssub.s32 4096, 4096
      %66 = vsyncadd [#allocation8], %s65
      %s67 = sshll.u32 [#allocation9], 4
      %s68 = int_to_ptr.vmem [resolvable:$true] %s67
      %73 = dma.hbm_to_vmem [thread:$0]  %s5, 4096, %s68, [#allocation8], 128, 128, 8
    $region25: #{_lambda_.4} parent=1 // pred_fallthru
      _
    // Predicated region
    $region26: #{_lambda_.4} parent=1 // pred_check
      _
    $region27: #{_lambda_.4} parent=1 // pred_check_branch
      %75 = sbr.rel (0) target = $region29
    $region28: #{_lambda_.4} parent=1 // pred_region
      %s77 = ssub.s32 16, 16
      %78 = vsyncadd [#allocation11], %s77
      %s80 = sshll.u32 [#allocation10], 4
      %s81 = int_to_ptr.vmem [resolvable:$true] %s80
      %83 = dma.hbm_to_vmem [thread:$0]  %s6, 16, %s81, [#allocation11]
    $region29: #{_lambda_.4} parent=1 // pred_fallthru
      _
    // Predicated region
    $region30: #{_lambda_.4} parent=1 // pred_check
      _
    $region31: #{_lambda_.4} parent=1 // pred_check_branch
      %85 = sbr.rel (0) target = $region33
    $region32: #{_lambda_.4} parent=1 // pred_region
      %86 = dma.done [#allocation3], 65536
    $region33: #{_lambda_.4} parent=1 // pred_fallthru
      _
    // Predicated region
    $region34: #{_lambda_.4} parent=1 // pred_check
      _
    $region35: #{_lambda_.4} parent=1 // pred_check_branch
      %88 = sbr.rel (0) target = $region37
    $region36: #{_lambda_.4} parent=1 // pred_region
      %89 = dma.done [#allocation5], 64
    $region37: #{_lambda_.4} parent=1 // pred_fallthru
      _
    // Predicated region
    $region38: #{_lambda_.4} parent=1 // pred_check
      _
    $region39: #{_lambda_.4} parent=1 // pred_check_branch
      %91 = sbr.rel (0) target = $region41
    $region40: #{_lambda_.4} parent=1 // pred_region
      %92 = dma.done [#allocation5], 16384
    $region41: #{_lambda_.4} parent=1 // pred_fallthru
      _
    // Predicated region
    $region42: #{_lambda_.4} parent=1 // pred_check
      _
    $region43: #{_lambda_.4} parent=1 // pred_check_branch
      %94 = sbr.rel (0) target = $region45
    $region44: #{_lambda_.4} parent=1 // pred_region
      %95 = dma.done [#allocation8], 32
    $region45: #{_lambda_.4} parent=1 // pred_fallthru
      _
    // Predicated region
    $region46: #{_lambda_.4} parent=1 // pred_check
      _
    $region47: #{_lambda_.4} parent=1 // pred_check_branch
      %97 = sbr.rel (0) target = $region49
    $region48: #{_lambda_.4} parent=1 // pred_region
      %98 = dma.done [#allocation8], 4096
    $region49: #{_lambda_.4} parent=1 // pred_fallthru
      _
    // Predicated region
    $region50: #{_lambda_.4} parent=1 // pred_check
      _
    $region51: #{_lambda_.4} parent=1 // pred_check_branch
      %100 = sbr.rel (0) target = $region53
    $region52: #{_lambda_.4} parent=1 // pred_region
      %101 = dma.done [#allocation11], 16
    $region53: #{_lambda_.4} parent=1 // pred_fallthru
      _
    %v102 = vld [vmem:[%s0] sm:$0xff]
    %v103 = vld [vmem:[%s0 + $0x8] sm:$0xff]
    %v104 = vld [vmem:[#allocation2] sm:$0xff]
    %v105 = vld [vmem:[#allocation2 + $0x8] sm:$0xff]
    %v106 = vld [vmem:[#allocation2 + $0x10] sm:$0xff]
    %v107 = vld [vmem:[#allocation2 + $0x18] sm:$0xff]
    %v108 = vld [vmem:[#allocation2 + $0x20] sm:$0xff]
    %v109 = vld [vmem:[#allocation2 + $0x28] sm:$0xff]
    %v110 = vld [vmem:[#allocation2 + $0x30] sm:$0xff]
    %v111 = vld [vmem:[#allocation2 + $0x38] sm:$0xff]
    %v112 = vld [vmem:[#allocation2 + $0x40] sm:$0xff]
    %v113 = vld [vmem:[#allocation2 + $0x48] sm:$0xff]
    %v114 = vld [vmem:[#allocation2 + $0x50] sm:$0xff]
    %v115 = vld [vmem:[#allocation2 + $0x58] sm:$0xff]
    %v116 = vld [vmem:[#allocation2 + $0x60] sm:$0xff]
    %v117 = vld [vmem:[#allocation2 + $0x68] sm:$0xff]
    %v118 = vld [vmem:[#allocation2 + $0x70] sm:$0xff]
    %v119 = vld [vmem:[#allocation2 + $0x78] sm:$0xff]
    %v120 = vld [vmem:[#allocation2 + $0x80] sm:$0xff]
    %v121 = vld [vmem:[#allocation2 + $0x88] sm:$0xff]
    %v122 = vld [vmem:[#allocation2 + $0x90] sm:$0xff]
    %v123 = vld [vmem:[#allocation2 + $0x98] sm:$0xff]
    %v124 = vld [vmem:[#allocation2 + $0xa0] sm:$0xff]
    %v125 = vld [vmem:[#allocation2 + $0xa8] sm:$0xff]
    %v126 = vld [vmem:[#allocation2 + $0xb0] sm:$0xff]
    %v127 = vld [vmem:[#allocation2 + $0xb8] sm:$0xff]
    %v128 = vld [vmem:[#allocation2 + $0xc0] sm:$0xff]
    %v129 = vld [vmem:[#allocation2 + $0xc8] sm:$0xff]
    %v130 = vld [vmem:[#allocation2 + $0xd0] sm:$0xff]
    %v131 = vld [vmem:[#allocation2 + $0xd8] sm:$0xff]
    %v132 = vld [vmem:[#allocation2 + $0xe0] sm:$0xff]
    %v133 = vld [vmem:[#allocation2 + $0xe8] sm:$0xff]
    %v134 = vld [vmem:[#allocation2 + $0xf0] sm:$0xff]
    %v135 = vld [vmem:[#allocation2 + $0xf8] sm:$0xff]
    %v136 = vld [vmem:[#allocation2 + $0x100] sm:$0xff]
    %v137 = vld [vmem:[#allocation2 + $0x108] sm:$0xff]
    %v138 = vld [vmem:[#allocation2 + $0x110] sm:$0xff]
    %v139 = vld [vmem:[#allocation2 + $0x118] sm:$0xff]
    %v140 = vld [vmem:[#allocation2 + $0x120] sm:$0xff]
    %v141 = vld [vmem:[#allocation2 + $0x128] sm:$0xff]
    %v142 = vld [vmem:[#allocation2 + $0x130] sm:$0xff]
    %v143 = vld [vmem:[#allocation2 + $0x138] sm:$0xff]
    %v144 = vld [vmem:[#allocation2 + $0x140] sm:$0xff]
    %v145 = vld [vmem:[#allocation2 + $0x148] sm:$0xff]
    %v146 = vld [vmem:[#allocation2 + $0x150] sm:$0xff]
    %v147 = vld [vmem:[#allocation2 + $0x158] sm:$0xff]
    %v148 = vld [vmem:[#allocation2 + $0x160] sm:$0xff]
    %v149 = vld [vmem:[#allocation2 + $0x168] sm:$0xff]
    %v150 = vld [vmem:[#allocation2 + $0x170] sm:$0xff]
    %v151 = vld [vmem:[#allocation2 + $0x178] sm:$0xff]
    %v152 = vld [vmem:[#allocation2 + $0x180] sm:$0xff]
    %v153 = vld [vmem:[#allocation2 + $0x188] sm:$0xff]
    %v154 = vld [vmem:[#allocation2 + $0x190] sm:$0xff]
    %v155 = vld [vmem:[#allocation2 + $0x198] sm:$0xff]
    %v156 = vld [vmem:[#allocation2 + $0x1a0] sm:$0xff]
    %v157 = vld [vmem:[#allocation2 + $0x1a8] sm:$0xff]
    %v158 = vld [vmem:[#allocation2 + $0x1b0] sm:$0xff]
    %v159 = vld [vmem:[#allocation2 + $0x1b8] sm:$0xff]
    %v160 = vld [vmem:[#allocation2 + $0x1c0] sm:$0xff]
    %v161 = vld [vmem:[#allocation2 + $0x1c8] sm:$0xff]
    %v162 = vld [vmem:[#allocation2 + $0x1d0] sm:$0xff]
    %v163 = vld [vmem:[#allocation2 + $0x1d8] sm:$0xff]
    %v164 = vld [vmem:[#allocation2 + $0x1e0] sm:$0xff]
    %v165 = vld [vmem:[#allocation2 + $0x1e8] sm:$0xff]
    %v166 = vld [vmem:[#allocation2 + $0x1f0] sm:$0xff]
    %v167 = vld [vmem:[#allocation2 + $0x1f8] sm:$0xff]
    %v168 = vld [vmem:[#allocation2 + $0x200] sm:$0xff]
    %v169 = vld [vmem:[#allocation2 + $0x208] sm:$0xff]
    %v170 = vld [vmem:[#allocation2 + $0x210] sm:$0xff]
    %v171 = vld [vmem:[#allocation2 + $0x218] sm:$0xff]
    %v172 = vld [vmem:[#allocation2 + $0x220] sm:$0xff]
    %v173 = vld [vmem:[#allocation2 + $0x228] sm:$0xff]
    %v174 = vld [vmem:[#allocation2 + $0x230] sm:$0xff]
    %v175 = vld [vmem:[#allocation2 + $0x238] sm:$0xff]
    %v176 = vld [vmem:[#allocation2 + $0x240] sm:$0xff]
    %v177 = vld [vmem:[#allocation2 + $0x248] sm:$0xff]
    %v178 = vld [vmem:[#allocation2 + $0x250] sm:$0xff]
    %v179 = vld [vmem:[#allocation2 + $0x258] sm:$0xff]
    %v180 = vld [vmem:[#allocation2 + $0x260] sm:$0xff]
    %v181 = vld [vmem:[#allocation2 + $0x268] sm:$0xff]
    %v182 = vld [vmem:[#allocation2 + $0x270] sm:$0xff]
    %v183 = vld [vmem:[#allocation2 + $0x278] sm:$0xff]
    %v184 = vld [vmem:[#allocation2 + $0x280] sm:$0xff]
    %v185 = vld [vmem:[#allocation2 + $0x288] sm:$0xff]
    %v186 = vld [vmem:[#allocation2 + $0x290] sm:$0xff]
    %v187 = vld [vmem:[#allocation2 + $0x298] sm:$0xff]
    %v188 = vld [vmem:[#allocation2 + $0x2a0] sm:$0xff]
    %v189 = vld [vmem:[#allocation2 + $0x2a8] sm:$0xff]
    %v190 = vld [vmem:[#allocation2 + $0x2b0] sm:$0xff]
    %v191 = vld [vmem:[#allocation2 + $0x2b8] sm:$0xff]
    %v192 = vld [vmem:[#allocation2 + $0x2c0] sm:$0xff]
    %v193 = vld [vmem:[#allocation2 + $0x2c8] sm:$0xff]
    %v194 = vld [vmem:[#allocation2 + $0x2d0] sm:$0xff]
    %v195 = vld [vmem:[#allocation2 + $0x2d8] sm:$0xff]
    %v196 = vld [vmem:[#allocation2 + $0x2e0] sm:$0xff]
    %v197 = vld [vmem:[#allocation2 + $0x2e8] sm:$0xff]
    %v198 = vld [vmem:[#allocation2 + $0x2f0] sm:$0xff]
    %v199 = vld [vmem:[#allocation2 + $0x2f8] sm:$0xff]
    %v200 = vld [vmem:[#allocation2 + $0x300] sm:$0xff]
    %v201 = vld [vmem:[#allocation2 + $0x308] sm:$0xff]
    %v202 = vld [vmem:[#allocation2 + $0x310] sm:$0xff]
    %v203 = vld [vmem:[#allocation2 + $0x318] sm:$0xff]
    %v204 = vld [vmem:[#allocation2 + $0x320] sm:$0xff]
    %v205 = vld [vmem:[#allocation2 + $0x328] sm:$0xff]
    %v206 = vld [vmem:[#allocation2 + $0x330] sm:$0xff]
    %v207 = vld [vmem:[#allocation2 + $0x338] sm:$0xff]
    %v208 = vld [vmem:[#allocation2 + $0x340] sm:$0xff]
    %v209 = vld [vmem:[#allocation2 + $0x348] sm:$0xff]
    %v210 = vld [vmem:[#allocation2 + $0x350] sm:$0xff]
    %v211 = vld [vmem:[#allocation2 + $0x358] sm:$0xff]
    %v212 = vld [vmem:[#allocation2 + $0x360] sm:$0xff]
    %v213 = vld [vmem:[#allocation2 + $0x368] sm:$0xff]
    %v214 = vld [vmem:[#allocation2 + $0x370] sm:$0xff]
    %v215 = vld [vmem:[#allocation2 + $0x378] sm:$0xff]
    %v216 = vld [vmem:[#allocation2 + $0x380] sm:$0xff]
    %v217 = vld [vmem:[#allocation2 + $0x388] sm:$0xff]
    %v218 = vld [vmem:[#allocation2 + $0x390] sm:$0xff]
    %v219 = vld [vmem:[#allocation2 + $0x398] sm:$0xff]
    %v220 = vld [vmem:[#allocation2 + $0x3a0] sm:$0xff]
    %v221 = vld [vmem:[#allocation2 + $0x3a8] sm:$0xff]
    %v222 = vld [vmem:[#allocation2 + $0x3b0] sm:$0xff]
    %v223 = vld [vmem:[#allocation2 + $0x3b8] sm:$0xff]
    %v224 = vld [vmem:[#allocation2 + $0x3c0] sm:$0xff]
    %v225 = vld [vmem:[#allocation2 + $0x3c8] sm:$0xff]
    %v226 = vld [vmem:[#allocation2 + $0x3d0] sm:$0xff]
    %v227 = vld [vmem:[#allocation2 + $0x3d8] sm:$0xff]
    %v228 = vld [vmem:[#allocation2 + $0x3e0] sm:$0xff]
    %v229 = vld [vmem:[#allocation2 + $0x3e8] sm:$0xff]
    %v230 = vld [vmem:[#allocation2 + $0x3f0] sm:$0xff]
    %v231 = vld [vmem:[#allocation2 + $0x3f8] sm:$0xff]
    %v232 = vld [vmem:[#allocation2 + $0x400] sm:$0xff]
    %v233 = vld [vmem:[#allocation2 + $0x408] sm:$0xff]
    %v234 = vld [vmem:[#allocation2 + $0x410] sm:$0xff]
    %v235 = vld [vmem:[#allocation2 + $0x418] sm:$0xff]
    %v236 = vld [vmem:[#allocation2 + $0x420] sm:$0xff]
    %v237 = vld [vmem:[#allocation2 + $0x428] sm:$0xff]
    %v238 = vld [vmem:[#allocation2 + $0x430] sm:$0xff]
    %v239 = vld [vmem:[#allocation2 + $0x438] sm:$0xff]
    %v240 = vld [vmem:[#allocation2 + $0x440] sm:$0xff]
    %v241 = vld [vmem:[#allocation2 + $0x448] sm:$0xff]
    %v242 = vld [vmem:[#allocation2 + $0x450] sm:$0xff]
    %v243 = vld [vmem:[#allocation2 + $0x458] sm:$0xff]
    %v244 = vld [vmem:[#allocation2 + $0x460] sm:$0xff]
    %v245 = vld [vmem:[#allocation2 + $0x468] sm:$0xff]
    %v246 = vld [vmem:[#allocation2 + $0x470] sm:$0xff]
    %v247 = vld [vmem:[#allocation2 + $0x478] sm:$0xff]
    %v248 = vld [vmem:[#allocation2 + $0x480] sm:$0xff]
    %v249 = vld [vmem:[#allocation2 + $0x488] sm:$0xff]
    %v250 = vld [vmem:[#allocation2 + $0x490] sm:$0xff]
    %v251 = vld [vmem:[#allocation2 + $0x498] sm:$0xff]
    %v252 = vld [vmem:[#allocation2 + $0x4a0] sm:$0xff]
    %v253 = vld [vmem:[#allocation2 + $0x4a8] sm:$0xff]
    %v254 = vld [vmem:[#allocation2 + $0x4b0] sm:$0xff]
    %v255 = vld [vmem:[#allocation2 + $0x4b8] sm:$0xff]
    %v256 = vld [vmem:[#allocation2 + $0x4c0] sm:$0xff]
    %v257 = vld [vmem:[#allocation2 + $0x4c8] sm:$0xff]
    %v258 = vld [vmem:[#allocation2 + $0x4d0] sm:$0xff]
    %v259 = vld [vmem:[#allocation2 + $0x4d8] sm:$0xff]
    %v260 = vld [vmem:[#allocation2 + $0x4e0] sm:$0xff]
    %v261 = vld [vmem:[#allocation2 + $0x4e8] sm:$0xff]
    %v262 = vld [vmem:[#allocation2 + $0x4f0] sm:$0xff]
    %v263 = vld [vmem:[#allocation2 + $0x4f8] sm:$0xff]
    %v264 = vld [vmem:[#allocation2 + $0x500] sm:$0xff]
    %v265 = vld [vmem:[#allocation2 + $0x508] sm:$0xff]
    %v266 = vld [vmem:[#allocation2 + $0x510] sm:$0xff]
    %v267 = vld [vmem:[#allocation2 + $0x518] sm:$0xff]
    %v268 = vld [vmem:[#allocation2 + $0x520] sm:$0xff]
    %v269 = vld [vmem:[#allocation2 + $0x528] sm:$0xff]
    %v270 = vld [vmem:[#allocation2 + $0x530] sm:$0xff]
    %v271 = vld [vmem:[#allocation2 + $0x538] sm:$0xff]
    %v272 = vld [vmem:[#allocation2 + $0x540] sm:$0xff]
    %v273 = vld [vmem:[#allocation2 + $0x548] sm:$0xff]
    %v274 = vld [vmem:[#allocation2 + $0x550] sm:$0xff]
    %v275 = vld [vmem:[#allocation2 + $0x558] sm:$0xff]
    %v276 = vld [vmem:[#allocation2 + $0x560] sm:$0xff]
    %v277 = vld [vmem:[#allocation2 + $0x568] sm:$0xff]
    %v278 = vld [vmem:[#allocation2 + $0x570] sm:$0xff]
    %v279 = vld [vmem:[#allocation2 + $0x578] sm:$0xff]
    %v280 = vld [vmem:[#allocation2 + $0x580] sm:$0xff]
    %v281 = vld [vmem:[#allocation2 + $0x588] sm:$0xff]
    %v282 = vld [vmem:[#allocation2 + $0x590] sm:$0xff]
    %v283 = vld [vmem:[#allocation2 + $0x598] sm:$0xff]
    %v284 = vld [vmem:[#allocation2 + $0x5a0] sm:$0xff]
    %v285 = vld [vmem:[#allocation2 + $0x5a8] sm:$0xff]
    %v286 = vld [vmem:[#allocation2 + $0x5b0] sm:$0xff]
    %v287 = vld [vmem:[#allocation2 + $0x5b8] sm:$0xff]
    %v288 = vld [vmem:[#allocation2 + $0x5c0] sm:$0xff]
    %v289 = vld [vmem:[#allocation2 + $0x5c8] sm:$0xff]
    %v290 = vld [vmem:[#allocation2 + $0x5d0] sm:$0xff]
    %v291 = vld [vmem:[#allocation2 + $0x5d8] sm:$0xff]
    %v292 = vld [vmem:[#allocation2 + $0x5e0] sm:$0xff]
    %v293 = vld [vmem:[#allocation2 + $0x5e8] sm:$0xff]
    %v294 = vld [vmem:[#allocation2 + $0x5f0] sm:$0xff]
    %v295 = vld [vmem:[#allocation2 + $0x5f8] sm:$0xff]
    %v296 = vld [vmem:[#allocation2 + $0x600] sm:$0xff]
    %v297 = vld [vmem:[#allocation2 + $0x608] sm:$0xff]
    %v298 = vld [vmem:[#allocation2 + $0x610] sm:$0xff]
    %v299 = vld [vmem:[#allocation2 + $0x618] sm:$0xff]
    %v300 = vld [vmem:[#allocation2 + $0x620] sm:$0xff]
    %v301 = vld [vmem:[#allocation2 + $0x628] sm:$0xff]
    %v302 = vld [vmem:[#allocation2 + $0x630] sm:$0xff]
    %v303 = vld [vmem:[#allocation2 + $0x638] sm:$0xff]
    %v304 = vld [vmem:[#allocation2 + $0x640] sm:$0xff]
    %v305 = vld [vmem:[#allocation2 + $0x648] sm:$0xff]
    %v306 = vld [vmem:[#allocation2 + $0x650] sm:$0xff]
    %v307 = vld [vmem:[#allocation2 + $0x658] sm:$0xff]
    %v308 = vld [vmem:[#allocation2 + $0x660] sm:$0xff]
    %v309 = vld [vmem:[#allocation2 + $0x668] sm:$0xff]
    %v310 = vld [vmem:[#allocation2 + $0x670] sm:$0xff]
    %v311 = vld [vmem:[#allocation2 + $0x678] sm:$0xff]
    %v312 = vld [vmem:[#allocation2 + $0x680] sm:$0xff]
    %v313 = vld [vmem:[#allocation2 + $0x688] sm:$0xff]
    %v314 = vld [vmem:[#allocation2 + $0x690] sm:$0xff]
    %v315 = vld [vmem:[#allocation2 + $0x698] sm:$0xff]
    %v316 = vld [vmem:[#allocation2 + $0x6a0] sm:$0xff]
    %v317 = vld [vmem:[#allocation2 + $0x6a8] sm:$0xff]
    %v318 = vld [vmem:[#allocation2 + $0x6b0] sm:$0xff]
    %v319 = vld [vmem:[#allocation2 + $0x6b8] sm:$0xff]
    %v320 = vld [vmem:[#allocation2 + $0x6c0] sm:$0xff]
    %v321 = vld [vmem:[#allocation2 + $0x6c8] sm:$0xff]
    %v322 = vld [vmem:[#allocation2 + $0x6d0] sm:$0xff]
    %v323 = vld [vmem:[#allocation2 + $0x6d8] sm:$0xff]
    %v324 = vld [vmem:[#allocation2 + $0x6e0] sm:$0xff]
    %v325 = vld [vmem:[#allocation2 + $0x6e8] sm:$0xff]
    %v326 = vld [vmem:[#allocation2 + $0x6f0] sm:$0xff]
    %v327 = vld [vmem:[#allocation2 + $0x6f8] sm:$0xff]
    %v328 = vld [vmem:[#allocation2 + $0x700] sm:$0xff]
    %v329 = vld [vmem:[#allocation2 + $0x708] sm:$0xff]
    %v330 = vld [vmem:[#allocation2 + $0x710] sm:$0xff]
    %v331 = vld [vmem:[#allocation2 + $0x718] sm:$0xff]
    %v332 = vld [vmem:[#allocation2 + $0x720] sm:$0xff]
    %v333 = vld [vmem:[#allocation2 + $0x728] sm:$0xff]
    %v334 = vld [vmem:[#allocation2 + $0x730] sm:$0xff]
    %v335 = vld [vmem:[#allocation2 + $0x738] sm:$0xff]
    %v336 = vld [vmem:[#allocation2 + $0x740] sm:$0xff]
    %v337 = vld [vmem:[#allocation2 + $0x748] sm:$0xff]
    %v338 = vld [vmem:[#allocation2 + $0x750] sm:$0xff]
    %v339 = vld [vmem:[#allocation2 + $0x758] sm:$0xff]
    %v340 = vld [vmem:[#allocation2 + $0x760] sm:$0xff]
    %v341 = vld [vmem:[#allocation2 + $0x768] sm:$0xff]
    %v342 = vld [vmem:[#allocation2 + $0x770] sm:$0xff]
    %v343 = vld [vmem:[#allocation2 + $0x778] sm:$0xff]
    %v344 = vld [vmem:[#allocation2 + $0x780] sm:$0xff]
    %v345 = vld [vmem:[#allocation2 + $0x788] sm:$0xff]
    %v346 = vld [vmem:[#allocation2 + $0x790] sm:$0xff]
    %v347 = vld [vmem:[#allocation2 + $0x798] sm:$0xff]
    %v348 = vld [vmem:[#allocation2 + $0x7a0] sm:$0xff]
    %v349 = vld [vmem:[#allocation2 + $0x7a8] sm:$0xff]
    %v350 = vld [vmem:[#allocation2 + $0x7b0] sm:$0xff]
    %v351 = vld [vmem:[#allocation2 + $0x7b8] sm:$0xff]
    %v352 = vld [vmem:[#allocation2 + $0x7c0] sm:$0xff]
    %v353 = vld [vmem:[#allocation2 + $0x7c8] sm:$0xff]
    %v354 = vld [vmem:[#allocation2 + $0x7d0] sm:$0xff]
    %v355 = vld [vmem:[#allocation2 + $0x7d8] sm:$0xff]
    %v356 = vld [vmem:[#allocation2 + $0x7e0] sm:$0xff]
    %v357 = vld [vmem:[#allocation2 + $0x7e8] sm:$0xff]
    %v358 = vld [vmem:[#allocation2 + $0x7f0] sm:$0xff]
    %v359 = vld [vmem:[#allocation2 + $0x7f8] sm:$0xff]
    %v360 = vld [vmem:[#allocation2 + $0x800] sm:$0xff]
    %v361 = vld [vmem:[#allocation2 + $0x808] sm:$0xff]
    %v362 = vld [vmem:[#allocation2 + $0x810] sm:$0xff]
    %v363 = vld [vmem:[#allocation2 + $0x818] sm:$0xff]
    %v364 = vld [vmem:[#allocation2 + $0x820] sm:$0xff]
    %v365 = vld [vmem:[#allocation2 + $0x828] sm:$0xff]
    %v366 = vld [vmem:[#allocation2 + $0x830] sm:$0xff]
    %v367 = vld [vmem:[#allocation2 + $0x838] sm:$0xff]
    %v368 = vld [vmem:[#allocation2 + $0x840] sm:$0xff]
    %v369 = vld [vmem:[#allocation2 + $0x848] sm:$0xff]
    %v370 = vld [vmem:[#allocation2 + $0x850] sm:$0xff]
    %v371 = vld [vmem:[#allocation2 + $0x858] sm:$0xff]
    %v372 = vld [vmem:[#allocation2 + $0x860] sm:$0xff]
    %v373 = vld [vmem:[#allocation2 + $0x868] sm:$0xff]
    %v374 = vld [vmem:[#allocation2 + $0x870] sm:$0xff]
    %v375 = vld [vmem:[#allocation2 + $0x878] sm:$0xff]
    %v376 = vld [vmem:[#allocation2 + $0x880] sm:$0xff]
    %v377 = vld [vmem:[#allocation2 + $0x888] sm:$0xff]
    %v378 = vld [vmem:[#allocation2 + $0x890] sm:$0xff]
    %v379 = vld [vmem:[#allocation2 + $0x898] sm:$0xff]
    %v380 = vld [vmem:[#allocation2 + $0x8a0] sm:$0xff]
    %v381 = vld [vmem:[#allocation2 + $0x8a8] sm:$0xff]
    %v382 = vld [vmem:[#allocation2 + $0x8b0] sm:$0xff]
    %v383 = vld [vmem:[#allocation2 + $0x8b8] sm:$0xff]
    %v384 = vld [vmem:[#allocation2 + $0x8c0] sm:$0xff]
    %v385 = vld [vmem:[#allocation2 + $0x8c8] sm:$0xff]
    %v386 = vld [vmem:[#allocation2 + $0x8d0] sm:$0xff]
    %v387 = vld [vmem:[#allocation2 + $0x8d8] sm:$0xff]
    %v388 = vld [vmem:[#allocation2 + $0x8e0] sm:$0xff]
    %v389 = vld [vmem:[#allocation2 + $0x8e8] sm:$0xff]
    %v390 = vld [vmem:[#allocation2 + $0x8f0] sm:$0xff]
    %v391 = vld [vmem:[#allocation2 + $0x8f8] sm:$0xff]
    %v392 = vld [vmem:[#allocation2 + $0x900] sm:$0xff]
    %v393 = vld [vmem:[#allocation2 + $0x908] sm:$0xff]
    %v394 = vld [vmem:[#allocation2 + $0x910] sm:$0xff]
    %v395 = vld [vmem:[#allocation2 + $0x918] sm:$0xff]
    %v396 = vld [vmem:[#allocation2 + $0x920] sm:$0xff]
    %v397 = vld [vmem:[#allocation2 + $0x928] sm:$0xff]
    %v398 = vld [vmem:[#allocation2 + $0x930] sm:$0xff]
    %v399 = vld [vmem:[#allocation2 + $0x938] sm:$0xff]
    %v400 = vld [vmem:[#allocation2 + $0x940] sm:$0xff]
    %v401 = vld [vmem:[#allocation2 + $0x948] sm:$0xff]
    %v402 = vld [vmem:[#allocation2 + $0x950] sm:$0xff]
    %v403 = vld [vmem:[#allocation2 + $0x958] sm:$0xff]
    %v404 = vld [vmem:[#allocation2 + $0x960] sm:$0xff]
    %v405 = vld [vmem:[#allocation2 + $0x968] sm:$0xff]
    %v406 = vld [vmem:[#allocation2 + $0x970] sm:$0xff]
    %v407 = vld [vmem:[#allocation2 + $0x978] sm:$0xff]
    %v408 = vld [vmem:[#allocation2 + $0x980] sm:$0xff]
    %v409 = vld [vmem:[#allocation2 + $0x988] sm:$0xff]
    %v410 = vld [vmem:[#allocation2 + $0x990] sm:$0xff]
    %v411 = vld [vmem:[#allocation2 + $0x998] sm:$0xff]
    %v412 = vld [vmem:[#allocation2 + $0x9a0] sm:$0xff]
    %v413 = vld [vmem:[#allocation2 + $0x9a8] sm:$0xff]
    %v414 = vld [vmem:[#allocation2 + $0x9b0] sm:$0xff]
    %v415 = vld [vmem:[#allocation2 + $0x9b8] sm:$0xff]
    %v416 = vld [vmem:[#allocation2 + $0x9c0] sm:$0xff]
    %v417 = vld [vmem:[#allocation2 + $0x9c8] sm:$0xff]
    %v418 = vld [vmem:[#allocation2 + $0x9d0] sm:$0xff]
    %v419 = vld [vmem:[#allocation2 + $0x9d8] sm:$0xff]
    %v420 = vld [vmem:[#allocation2 + $0x9e0] sm:$0xff]
    %v421 = vld [vmem:[#allocation2 + $0x9e8] sm:$0xff]
    %v422 = vld [vmem:[#allocation2 + $0x9f0] sm:$0xff]
    %v423 = vld [vmem:[#allocation2 + $0x9f8] sm:$0xff]
    %v424 = vld [vmem:[#allocation2 + $0xa00] sm:$0xff]
    %v425 = vld [vmem:[#allocation2 + $0xa08] sm:$0xff]
    %v426 = vld [vmem:[#allocation2 + $0xa10] sm:$0xff]
    %v427 = vld [vmem:[#allocation2 + $0xa18] sm:$0xff]
    %v428 = vld [vmem:[#allocation2 + $0xa20] sm:$0xff]
    %v429 = vld [vmem:[#allocation2 + $0xa28] sm:$0xff]
    %v430 = vld [vmem:[#allocation2 + $0xa30] sm:$0xff]
    %v431 = vld [vmem:[#allocation2 + $0xa38] sm:$0xff]
    %v432 = vld [vmem:[#allocation2 + $0xa40] sm:$0xff]
    %v433 = vld [vmem:[#allocation2 + $0xa48] sm:$0xff]
    %v434 = vld [vmem:[#allocation2 + $0xa50] sm:$0xff]
    %v435 = vld [vmem:[#allocation2 + $0xa58] sm:$0xff]
    %v436 = vld [vmem:[#allocation2 + $0xa60] sm:$0xff]
    %v437 = vld [vmem:[#allocation2 + $0xa68] sm:$0xff]
    %v438 = vld [vmem:[#allocation2 + $0xa70] sm:$0xff]
    %v439 = vld [vmem:[#allocation2 + $0xa78] sm:$0xff]
    %v440 = vld [vmem:[#allocation2 + $0xa80] sm:$0xff]
    %v441 = vld [vmem:[#allocation2 + $0xa88] sm:$0xff]
    %v442 = vld [vmem:[#allocation2 + $0xa90] sm:$0xff]
    %v443 = vld [vmem:[#allocation2 + $0xa98] sm:$0xff]
    %v444 = vld [vmem:[#allocation2 + $0xaa0] sm:$0xff]
    %v445 = vld [vmem:[#allocation2 + $0xaa8] sm:$0xff]
    %v446 = vld [vmem:[#allocation2 + $0xab0] sm:$0xff]
    %v447 = vld [vmem:[#allocation2 + $0xab8] sm:$0xff]
    %v448 = vld [vmem:[#allocation2 + $0xac0] sm:$0xff]
    %v449 = vld [vmem:[#allocation2 + $0xac8] sm:$0xff]
    %v450 = vld [vmem:[#allocation2 + $0xad0] sm:$0xff]
    %v451 = vld [vmem:[#allocation2 + $0xad8] sm:$0xff]
    %v452 = vld [vmem:[#allocation2 + $0xae0] sm:$0xff]
    %v453 = vld [vmem:[#allocation2 + $0xae8] sm:$0xff]
    %v454 = vld [vmem:[#allocation2 + $0xaf0] sm:$0xff]
    %v455 = vld [vmem:[#allocation2 + $0xaf8] sm:$0xff]
    %v456 = vld [vmem:[#allocation2 + $0xb00] sm:$0xff]
    %v457 = vld [vmem:[#allocation2 + $0xb08] sm:$0xff]
    %v458 = vld [vmem:[#allocation2 + $0xb10] sm:$0xff]
    %v459 = vld [vmem:[#allocation2 + $0xb18] sm:$0xff]
    %v460 = vld [vmem:[#allocation2 + $0xb20] sm:$0xff]
    %v461 = vld [vmem:[#allocation2 + $0xb28] sm:$0xff]
    %v462 = vld [vmem:[#allocation2 + $0xb30] sm:$0xff]
    %v463 = vld [vmem:[#allocation2 + $0xb38] sm:$0xff]
    %v464 = vld [vmem:[#allocation2 + $0xb40] sm:$0xff]
    %v465 = vld [vmem:[#allocation2 + $0xb48] sm:$0xff]
    %v466 = vld [vmem:[#allocation2 + $0xb50] sm:$0xff]
    %v467 = vld [vmem:[#allocation2 + $0xb58] sm:$0xff]
    %v468 = vld [vmem:[#allocation2 + $0xb60] sm:$0xff]
    %v469 = vld [vmem:[#allocation2 + $0xb68] sm:$0xff]
    %v470 = vld [vmem:[#allocation2 + $0xb70] sm:$0xff]
    %v471 = vld [vmem:[#allocation2 + $0xb78] sm:$0xff]
    %v472 = vld [vmem:[#allocation2 + $0xb80] sm:$0xff]
    %v473 = vld [vmem:[#allocation2 + $0xb88] sm:$0xff]
    %v474 = vld [vmem:[#allocation2 + $0xb90] sm:$0xff]
    %v475 = vld [vmem:[#allocation2 + $0xb98] sm:$0xff]
    %v476 = vld [vmem:[#allocation2 + $0xba0] sm:$0xff]
    %v477 = vld [vmem:[#allocation2 + $0xba8] sm:$0xff]
    %v478 = vld [vmem:[#allocation2 + $0xbb0] sm:$0xff]
    %v479 = vld [vmem:[#allocation2 + $0xbb8] sm:$0xff]
    %v480 = vld [vmem:[#allocation2 + $0xbc0] sm:$0xff]
    %v481 = vld [vmem:[#allocation2 + $0xbc8] sm:$0xff]
    %v482 = vld [vmem:[#allocation2 + $0xbd0] sm:$0xff]
    %v483 = vld [vmem:[#allocation2 + $0xbd8] sm:$0xff]
    %v484 = vld [vmem:[#allocation2 + $0xbe0] sm:$0xff]
    %v485 = vld [vmem:[#allocation2 + $0xbe8] sm:$0xff]
    %v486 = vld [vmem:[#allocation2 + $0xbf0] sm:$0xff]
    %v487 = vld [vmem:[#allocation2 + $0xbf8] sm:$0xff]
    %v488 = vld [vmem:[#allocation2 + $0xc00] sm:$0xff]
    %v489 = vld [vmem:[#allocation2 + $0xc08] sm:$0xff]
    %v490 = vld [vmem:[#allocation2 + $0xc10] sm:$0xff]
    %v491 = vld [vmem:[#allocation2 + $0xc18] sm:$0xff]
    %v492 = vld [vmem:[#allocation2 + $0xc20] sm:$0xff]
    %v493 = vld [vmem:[#allocation2 + $0xc28] sm:$0xff]
    %v494 = vld [vmem:[#allocation2 + $0xc30] sm:$0xff]
    %v495 = vld [vmem:[#allocation2 + $0xc38] sm:$0xff]
    %v496 = vld [vmem:[#allocation2 + $0xc40] sm:$0xff]
    %v497 = vld [vmem:[#allocation2 + $0xc48] sm:$0xff]
    %v498 = vld [vmem:[#allocation2 + $0xc50] sm:$0xff]
    %v499 = vld [vmem:[#allocation2 + $0xc58] sm:$0xff]
    %v500 = vld [vmem:[#allocation2 + $0xc60] sm:$0xff]
    %v501 = vld [vmem:[#allocation2 + $0xc68] sm:$0xff]
    %v502 = vld [vmem:[#allocation2 + $0xc70] sm:$0xff]
    %v503 = vld [vmem:[#allocation2 + $0xc78] sm:$0xff]
    %v504 = vld [vmem:[#allocation2 + $0xc80] sm:$0xff]
    %v505 = vld [vmem:[#allocation2 + $0xc88] sm:$0xff]
    %v506 = vld [vmem:[#allocation2 + $0xc90] sm:$0xff]
    %v507 = vld [vmem:[#allocation2 + $0xc98] sm:$0xff]
    %v508 = vld [vmem:[#allocation2 + $0xca0] sm:$0xff]
    %v509 = vld [vmem:[#allocation2 + $0xca8] sm:$0xff]
    %v510 = vld [vmem:[#allocation2 + $0xcb0] sm:$0xff]
    %v511 = vld [vmem:[#allocation2 + $0xcb8] sm:$0xff]
    %v512 = vld [vmem:[#allocation2 + $0xcc0] sm:$0xff]
    %v513 = vld [vmem:[#allocation2 + $0xcc8] sm:$0xff]
    %v514 = vld [vmem:[#allocation2 + $0xcd0] sm:$0xff]
    %v515 = vld [vmem:[#allocation2 + $0xcd8] sm:$0xff]
    %v516 = vld [vmem:[#allocation2 + $0xce0] sm:$0xff]
    %v517 = vld [vmem:[#allocation2 + $0xce8] sm:$0xff]
    %v518 = vld [vmem:[#allocation2 + $0xcf0] sm:$0xff]
    %v519 = vld [vmem:[#allocation2 + $0xcf8] sm:$0xff]
    %v520 = vld [vmem:[#allocation2 + $0xd00] sm:$0xff]
    %v521 = vld [vmem:[#allocation2 + $0xd08] sm:$0xff]
    %v522 = vld [vmem:[#allocation2 + $0xd10] sm:$0xff]
    %v523 = vld [vmem:[#allocation2 + $0xd18] sm:$0xff]
    %v524 = vld [vmem:[#allocation2 + $0xd20] sm:$0xff]
    %v525 = vld [vmem:[#allocation2 + $0xd28] sm:$0xff]
    %v526 = vld [vmem:[#allocation2 + $0xd30] sm:$0xff]
    %v527 = vld [vmem:[#allocation2 + $0xd38] sm:$0xff]
    %v528 = vld [vmem:[#allocation2 + $0xd40] sm:$0xff]
    %v529 = vld [vmem:[#allocation2 + $0xd48] sm:$0xff]
    %v530 = vld [vmem:[#allocation2 + $0xd50] sm:$0xff]
    %v531 = vld [vmem:[#allocation2 + $0xd58] sm:$0xff]
    %v532 = vld [vmem:[#allocation2 + $0xd60] sm:$0xff]
    %v533 = vld [vmem:[#allocation2 + $0xd68] sm:$0xff]
    %v534 = vld [vmem:[#allocation2 + $0xd70] sm:$0xff]
    %v535 = vld [vmem:[#allocation2 + $0xd78] sm:$0xff]
    %v536 = vld [vmem:[#allocation2 + $0xd80] sm:$0xff]
    %v537 = vld [vmem:[#allocation2 + $0xd88] sm:$0xff]
    %v538 = vld [vmem:[#allocation2 + $0xd90] sm:$0xff]
    %v539 = vld [vmem:[#allocation2 + $0xd98] sm:$0xff]
    %v540 = vld [vmem:[#allocation2 + $0xda0] sm:$0xff]
    %v541 = vld [vmem:[#allocation2 + $0xda8] sm:$0xff]
    %v542 = vld [vmem:[#allocation2 + $0xdb0] sm:$0xff]
    %v543 = vld [vmem:[#allocation2 + $0xdb8] sm:$0xff]
    %v544 = vld [vmem:[#allocation2 + $0xdc0] sm:$0xff]
    %v545 = vld [vmem:[#allocation2 + $0xdc8] sm:$0xff]
    %v546 = vld [vmem:[#allocation2 + $0xdd0] sm:$0xff]
    %v547 = vld [vmem:[#allocation2 + $0xdd8] sm:$0xff]
    %v548 = vld [vmem:[#allocation2 + $0xde0] sm:$0xff]
    %v549 = vld [vmem:[#allocation2 + $0xde8] sm:$0xff]
    %v550 = vld [vmem:[#allocation2 + $0xdf0] sm:$0xff]
    %v551 = vld [vmem:[#allocation2 + $0xdf8] sm:$0xff]
    %v552 = vld [vmem:[#allocation2 + $0xe00] sm:$0xff]
    %v553 = vld [vmem:[#allocation2 + $0xe08] sm:$0xff]
    %v554 = vld [vmem:[#allocation2 + $0xe10] sm:$0xff]
    %v555 = vld [vmem:[#allocation2 + $0xe18] sm:$0xff]
    %v556 = vld [vmem:[#allocation2 + $0xe20] sm:$0xff]
    %v557 = vld [vmem:[#allocation2 + $0xe28] sm:$0xff]
    %v558 = vld [vmem:[#allocation2 + $0xe30] sm:$0xff]
    %v559 = vld [vmem:[#allocation2 + $0xe38] sm:$0xff]
    %v560 = vld [vmem:[#allocation2 + $0xe40] sm:$0xff]
    %v561 = vld [vmem:[#allocation2 + $0xe48] sm:$0xff]
    %v562 = vld [vmem:[#allocation2 + $0xe50] sm:$0xff]
    %v563 = vld [vmem:[#allocation2 + $0xe58] sm:$0xff]
    %v564 = vld [vmem:[#allocation2 + $0xe60] sm:$0xff]
    %v565 = vld [vmem:[#allocation2 + $0xe68] sm:$0xff]
    %v566 = vld [vmem:[#allocation2 + $0xe70] sm:$0xff]
    %v567 = vld [vmem:[#allocation2 + $0xe78] sm:$0xff]
    %v568 = vld [vmem:[#allocation2 + $0xe80] sm:$0xff]
    %v569 = vld [vmem:[#allocation2 + $0xe88] sm:$0xff]
    %v570 = vld [vmem:[#allocation2 + $0xe90] sm:$0xff]
    %v571 = vld [vmem:[#allocation2 + $0xe98] sm:$0xff]
    %v572 = vld [vmem:[#allocation2 + $0xea0] sm:$0xff]
    %v573 = vld [vmem:[#allocation2 + $0xea8] sm:$0xff]
    %v574 = vld [vmem:[#allocation2 + $0xeb0] sm:$0xff]
    %v575 = vld [vmem:[#allocation2 + $0xeb8] sm:$0xff]
    %v576 = vld [vmem:[#allocation2 + $0xec0] sm:$0xff]
    %v577 = vld [vmem:[#allocation2 + $0xec8] sm:$0xff]
    %v578 = vld [vmem:[#allocation2 + $0xed0] sm:$0xff]
    %v579 = vld [vmem:[#allocation2 + $0xed8] sm:$0xff]
    %v580 = vld [vmem:[#allocation2 + $0xee0] sm:$0xff]
    %v581 = vld [vmem:[#allocation2 + $0xee8] sm:$0xff]
    %v582 = vld [vmem:[#allocation2 + $0xef0] sm:$0xff]
    %v583 = vld [vmem:[#allocation2 + $0xef8] sm:$0xff]
    %v584 = vld [vmem:[#allocation2 + $0xf00] sm:$0xff]
    %v585 = vld [vmem:[#allocation2 + $0xf08] sm:$0xff]
    %v586 = vld [vmem:[#allocation2 + $0xf10] sm:$0xff]
    %v587 = vld [vmem:[#allocation2 + $0xf18] sm:$0xff]
    %v588 = vld [vmem:[#allocation2 + $0xf20] sm:$0xff]
    %v589 = vld [vmem:[#allocation2 + $0xf28] sm:$0xff]
    %v590 = vld [vmem:[#allocation2 + $0xf30] sm:$0xff]
    %v591 = vld [vmem:[#allocation2 + $0xf38] sm:$0xff]
    %v592 = vld [vmem:[#allocation2 + $0xf40] sm:$0xff]
    %v593 = vld [vmem:[#allocation2 + $0xf48] sm:$0xff]
    %v594 = vld [vmem:[#allocation2 + $0xf50] sm:$0xff]
    %v595 = vld [vmem:[#allocation2 + $0xf58] sm:$0xff]
    %v596 = vld [vmem:[#allocation2 + $0xf60] sm:$0xff]
    %v597 = vld [vmem:[#allocation2 + $0xf68] sm:$0xff]
    %v598 = vld [vmem:[#allocation2 + $0xf70] sm:$0xff]
    %v599 = vld [vmem:[#allocation2 + $0xf78] sm:$0xff]
    %v600 = vld [vmem:[#allocation2 + $0xf80] sm:$0xff]
    %v601 = vld [vmem:[#allocation2 + $0xf88] sm:$0xff]
    %v602 = vld [vmem:[#allocation2 + $0xf90] sm:$0xff]
    %v603 = vld [vmem:[#allocation2 + $0xf98] sm:$0xff]
    %v604 = vld [vmem:[#allocation2 + $0xfa0] sm:$0xff]
    %v605 = vld [vmem:[#allocation2 + $0xfa8] sm:$0xff]
    %v606 = vld [vmem:[#allocation2 + $0xfb0] sm:$0xff]
    %v607 = vld [vmem:[#allocation2 + $0xfb8] sm:$0xff]
    %v608 = vld [vmem:[#allocation2 + $0xfc0] sm:$0xff]
    %v609 = vld [vmem:[#allocation2 + $0xfc8] sm:$0xff]
    %v610 = vld [vmem:[#allocation2 + $0xfd0] sm:$0xff]
    %v611 = vld [vmem:[#allocation2 + $0xfd8] sm:$0xff]
    %v612 = vld [vmem:[#allocation2 + $0xfe0] sm:$0xff]
    %v613 = vld [vmem:[#allocation2 + $0xfe8] sm:$0xff]
    %v614 = vld [vmem:[#allocation2 + $0xff0] sm:$0xff]
    %v615 = vld [vmem:[#allocation2 + $0xff8] sm:$0xff]
    %v616 = vld [vmem:[#allocation4] sm:$0xf]
    %v618 = vlaneseq
    %v619 = vshrl.u32 %v618, 7
    %v620 = vsub.s32 0, %v619
    %v621 = vrot.slane %v616, %v620
    %v622 = vlaneseq
    %v623 = vshrl.u32 %v622, 7
    %v624 = vsub.s32 1, %v623
    %v625 = vrot.slane %v616, %v624
    %v626 = vlaneseq
    %v627 = vshrl.u32 %v626, 7
    %v628 = vsub.s32 2, %v627
    %v629 = vrot.slane %v616, %v628
    %v630 = vlaneseq
    %v631 = vshrl.u32 %v630, 7
    %v632 = vsub.s32 3, %v631
    %v633 = vrot.slane %v616, %v632
    %v640 = vcombine.high %v102, %v102
    %v642 = vunpack.c.l.s4 1983009808
    %v643 = vunpack.c.0.s8 %v642
    %v644 = vlaneseq
    %v645 = vshrl.u32 %v644, 7
    %v646 = vsub.s32 %v643, %v645
    %v647 = vrot.slane %v102, %v646
    %v649 = vunpack.c.l.s4 1983009808
    %v650 = vunpack.c.0.s8 %v649
    %v651 = vlaneseq
    %v652 = vshrl.u32 %v651, 7
    %v653 = vsub.s32 %v650, %v652
    %v654 = vrot.slane %v640, %v653
    %v655 = vcombine.high %v647, %v647
    %v656 = vcombine.high %v654, %v654
    %v657 = vcombine.high %v103, %v103
    %v659 = vunpack.c.l.s4 1983009808
    %v660 = vunpack.c.0.s8 %v659
    %v661 = vlaneseq
    %v662 = vshrl.u32 %v661, 7
    %v663 = vsub.s32 %v660, %v662
    %v664 = vrot.slane %v103, %v663
    %v666 = vunpack.c.l.s4 1983009808
    %v667 = vunpack.c.0.s8 %v666
    %v668 = vlaneseq
    %v669 = vshrl.u32 %v668, 7
    %v670 = vsub.s32 %v667, %v669
    %v671 = vrot.slane %v657, %v670
    %v672 = vcombine.high %v664, %v664
    %v673 = vcombine.high %v671, %v671
    %682 = vmatprep.subr.mxu0 %v105
    %683 = vmatpush1.msra.mxu0 %v104
    %684 = vmatprep.subr.mxu0 %v109
    %685 = vmatpush1.msra.mxu0 %v108
    %686 = vmatprep.subr.mxu0 %v113
    %687 = vmatpush1.msra.mxu0 %v112
    %688 = vmatprep.subr.mxu0 %v117
    %689 = vmatpush1.msra.mxu0 %v116
    %690 = vmatprep.subr.mxu0 %v121
    %691 = vmatpush1.msra.mxu0 %v120
    %692 = vmatprep.subr.mxu0 %v125
    %693 = vmatpush1.msra.mxu0 %v124
    %694 = vmatprep.subr.mxu0 %v129
    %695 = vmatpush1.msra.mxu0 %v128
    %696 = vmatprep.subr.mxu0 %v133
    %697 = vmatpush1.msra.mxu0 %v132
    %698 = vmatprep.subr.mxu0 %v137
    %699 = vmatpush1.msra.mxu0 %v136
    %700 = vmatprep.subr.mxu0 %v141
    %701 = vmatpush1.msra.mxu0 %v140
    %702 = vmatprep.subr.mxu0 %v145
    %703 = vmatpush1.msra.mxu0 %v144
    %704 = vmatprep.subr.mxu0 %v149
    %705 = vmatpush1.msra.mxu0 %v148
    %706 = vmatprep.subr.mxu0 %v153
    %707 = vmatpush1.msra.mxu0 %v152
    %708 = vmatprep.subr.mxu0 %v157
    %709 = vmatpush1.msra.mxu0 %v156
    %710 = vmatprep.subr.mxu0 %v161
    %711 = vmatpush1.msra.mxu0 %v160
    %712 = vmatprep.subr.mxu0 %v165
    %713 = vmatpush1.msra.mxu0 %v164
    %714 = vmatprep.subr.mxu0 %v169
    %715 = vmatpush1.msra.mxu0 %v168
    %716 = vmatprep.subr.mxu0 %v173
    %717 = vmatpush1.msra.mxu0 %v172
    %718 = vmatprep.subr.mxu0 %v177
    %719 = vmatpush1.msra.mxu0 %v176
    %720 = vmatprep.subr.mxu0 %v181
    %721 = vmatpush1.msra.mxu0 %v180
    %722 = vmatprep.subr.mxu0 %v185
    %723 = vmatpush1.msra.mxu0 %v184
    %724 = vmatprep.subr.mxu0 %v189
    %725 = vmatpush1.msra.mxu0 %v188
    %726 = vmatprep.subr.mxu0 %v193
    %727 = vmatpush1.msra.mxu0 %v192
    %728 = vmatprep.subr.mxu0 %v197
    %729 = vmatpush1.msra.mxu0 %v196
    %730 = vmatprep.subr.mxu0 %v201
    %731 = vmatpush1.msra.mxu0 %v200
    %732 = vmatprep.subr.mxu0 %v205
    %733 = vmatpush1.msra.mxu0 %v204
    %734 = vmatprep.subr.mxu0 %v209
    %735 = vmatpush1.msra.mxu0 %v208
    %736 = vmatprep.subr.mxu0 %v213
    %737 = vmatpush1.msra.mxu0 %v212
    %738 = vmatprep.subr.mxu0 %v217
    %739 = vmatpush1.msra.mxu0 %v216
    %740 = vmatprep.subr.mxu0 %v221
    %741 = vmatpush1.msra.mxu0 %v220
    %742 = vmatprep.subr.mxu0 %v225
    %743 = vmatpush1.msra.mxu0 %v224
    %744 = vmatprep.subr.mxu0 %v229
    %745 = vmatpush1.msra.mxu0 %v228
    %746 = vmatprep.mubr.f32.mxu0 %v655
    %747 = vmatmul.mubr.f32.gmra.mrb[0].mxu0 %v647
    %v748 = vpop.f32.mrb[0].mxu0
    %v749 = vadd.f32 %v621, %v748
    %v750 = vpop.f32.mrb[0].mxu0
    %v751 = vadd.f32 %v625, %v750
    %752 = vdwg.mxu0
    %753 = vmatprep.subr.mxu0 %v233
    %754 = vmatpush1.msra.mxu0 %v232
    %755 = vmatprep.subr.mxu0 %v237
    %756 = vmatpush1.msra.mxu0 %v236
    %757 = vmatprep.subr.mxu0 %v241
    %758 = vmatpush1.msra.mxu0 %v240
    %759 = vmatprep.subr.mxu0 %v245
    %760 = vmatpush1.msra.mxu0 %v244
    %761 = vmatprep.subr.mxu0 %v249
    %762 = vmatpush1.msra.mxu0 %v248
    %763 = vmatprep.subr.mxu0 %v253
    %764 = vmatpush1.msra.mxu0 %v252
    %765 = vmatprep.subr.mxu0 %v257
    %766 = vmatpush1.msra.mxu0 %v256
    %767 = vmatprep.subr.mxu0 %v261
    %768 = vmatpush1.msra.mxu0 %v260
    %769 = vmatprep.subr.mxu0 %v265
    %770 = vmatpush1.msra.mxu0 %v264
    %771 = vmatprep.subr.mxu0 %v269
    %772 = vmatpush1.msra.mxu0 %v268
    %773 = vmatprep.subr.mxu0 %v273
    %774 = vmatpush1.msra.mxu0 %v272
    %775 = vmatprep.subr.mxu0 %v277
    %776 = vmatpush1.msra.mxu0 %v276
    %777 = vmatprep.subr.mxu0 %v281
    %778 = vmatpush1.msra.mxu0 %v280
    %779 = vmatprep.subr.mxu0 %v285
    %780 = vmatpush1.msra.mxu0 %v284
    %781 = vmatprep.subr.mxu0 %v289
    %782 = vmatpush1.msra.mxu0 %v288
    %783 = vmatprep.subr.mxu0 %v293
    %784 = vmatpush1.msra.mxu0 %v292
    %785 = vmatprep.subr.mxu0 %v297
    %786 = vmatpush1.msra.mxu0 %v296
    %787 = vmatprep.subr.mxu0 %v301
    %788 = vmatpush1.msra.mxu0 %v300
    %789 = vmatprep.subr.mxu0 %v305
    %790 = vmatpush1.msra.mxu0 %v304
    %791 = vmatprep.subr.mxu0 %v309
    %792 = vmatpush1.msra.mxu0 %v308
    %793 = vmatprep.subr.mxu0 %v313
    %794 = vmatpush1.msra.mxu0 %v312
    %795 = vmatprep.subr.mxu0 %v317
    %796 = vmatpush1.msra.mxu0 %v316
    %797 = vmatprep.subr.mxu0 %v321
    %798 = vmatpush1.msra.mxu0 %v320
    %799 = vmatprep.subr.mxu0 %v325
    %800 = vmatpush1.msra.mxu0 %v324
    %801 = vmatprep.subr.mxu0 %v329
    %802 = vmatpush1.msra.mxu0 %v328
    %803 = vmatprep.subr.mxu0 %v333
    %804 = vmatpush1.msra.mxu0 %v332
    %805 = vmatprep.subr.mxu0 %v337
    %806 = vmatpush1.msra.mxu0 %v336
    %807 = vmatprep.subr.mxu0 %v341
    %808 = vmatpush1.msra.mxu0 %v340
    %809 = vmatprep.subr.mxu0 %v345
    %810 = vmatpush1.msra.mxu0 %v344
    %811 = vmatprep.subr.mxu0 %v349
    %812 = vmatpush1.msra.mxu0 %v348
    %813 = vmatprep.subr.mxu0 %v353
    %814 = vmatpush1.msra.mxu0 %v352
    %815 = vmatprep.subr.mxu0 %v357
    %816 = vmatpush1.msra.mxu0 %v356
    %817 = vmatprep.mubr.f32.mxu0 %v656
    %818 = vmatmul.mubr.f32.gmra.mrb[0].mxu0 %v654
    %v819 = vpop.f32.mrb[0].mxu0
    %v820 = vadd.f32 %v749, %v819
    %v821 = vpop.f32.mrb[0].mxu0
    %v822 = vadd.f32 %v751, %v821
    %823 = vdwg.mxu0
    %824 = vmatprep.subr.mxu0 %v361
    %825 = vmatpush1.msra.mxu0 %v360
    %826 = vmatprep.subr.mxu0 %v365
    %827 = vmatpush1.msra.mxu0 %v364
    %828 = vmatprep.subr.mxu0 %v369
    %829 = vmatpush1.msra.mxu0 %v368
    %830 = vmatprep.subr.mxu0 %v373
    %831 = vmatpush1.msra.mxu0 %v372
    %832 = vmatprep.subr.mxu0 %v377
    %833 = vmatpush1.msra.mxu0 %v376
    %834 = vmatprep.subr.mxu0 %v381
    %835 = vmatpush1.msra.mxu0 %v380
    %836 = vmatprep.subr.mxu0 %v385
    %837 = vmatpush1.msra.mxu0 %v384
    %838 = vmatprep.subr.mxu0 %v389
    %839 = vmatpush1.msra.mxu0 %v388
    %840 = vmatprep.subr.mxu0 %v393
    %841 = vmatpush1.msra.mxu0 %v392
    %842 = vmatprep.subr.mxu0 %v397
    %843 = vmatpush1.msra.mxu0 %v396
    %844 = vmatprep.subr.mxu0 %v401
    %845 = vmatpush1.msra.mxu0 %v400
    %846 = vmatprep.subr.mxu0 %v405
    %847 = vmatpush1.msra.mxu0 %v404
    %848 = vmatprep.subr.mxu0 %v409
    %849 = vmatpush1.msra.mxu0 %v408
    %850 = vmatprep.subr.mxu0 %v413
    %851 = vmatpush1.msra.mxu0 %v412
    %852 = vmatprep.subr.mxu0 %v417
    %853 = vmatpush1.msra.mxu0 %v416
    %854 = vmatprep.subr.mxu0 %v421
    %855 = vmatpush1.msra.mxu0 %v420
    %856 = vmatprep.subr.mxu0 %v425
    %857 = vmatpush1.msra.mxu0 %v424
    %858 = vmatprep.subr.mxu0 %v429
    %859 = vmatpush1.msra.mxu0 %v428
    %860 = vmatprep.subr.mxu0 %v433
    %861 = vmatpush1.msra.mxu0 %v432
    %862 = vmatprep.subr.mxu0 %v437
    %863 = vmatpush1.msra.mxu0 %v436
    %864 = vmatprep.subr.mxu0 %v441
    %865 = vmatpush1.msra.mxu0 %v440
    %866 = vmatprep.subr.mxu0 %v445
    %867 = vmatpush1.msra.mxu0 %v444
    %868 = vmatprep.subr.mxu0 %v449
    %869 = vmatpush1.msra.mxu0 %v448
    %870 = vmatprep.subr.mxu0 %v453
    %871 = vmatpush1.msra.mxu0 %v452
    %872 = vmatprep.subr.mxu0 %v457
    %873 = vmatpush1.msra.mxu0 %v456
    %874 = vmatprep.subr.mxu0 %v461
    %875 = vmatpush1.msra.mxu0 %v460
    %876 = vmatprep.subr.mxu0 %v465
    %877 = vmatpush1.msra.mxu0 %v464
    %878 = vmatprep.subr.mxu0 %v469
    %879 = vmatpush1.msra.mxu0 %v468
    %880 = vmatprep.subr.mxu0 %v473
    %881 = vmatpush1.msra.mxu0 %v472
    %882 = vmatprep.subr.mxu0 %v477
    %883 = vmatpush1.msra.mxu0 %v476
    %884 = vmatprep.subr.mxu0 %v481
    %885 = vmatpush1.msra.mxu0 %v480
    %886 = vmatprep.subr.mxu0 %v485
    %887 = vmatpush1.msra.mxu0 %v484
    %888 = vmatprep.mubr.f32.mxu0 %v672
    %889 = vmatmul.mubr.f32.gmra.mrb[0].mxu0 %v664
    %v890 = vpop.f32.mrb[0].mxu0
    %v891 = vadd.f32 %v820, %v890
    %v892 = vpop.f32.mrb[0].mxu0
    %v893 = vadd.f32 %v822, %v892
    %894 = vdwg.mxu0
    %895 = vmatprep.subr.mxu0 %v489
    %896 = vmatpush1.msra.mxu0 %v488
    %897 = vmatprep.subr.mxu0 %v493
    %898 = vmatpush1.msra.mxu0 %v492
    %899 = vmatprep.subr.mxu0 %v497
    %900 = vmatpush1.msra.mxu0 %v496
    %901 = vmatprep.subr.mxu0 %v501
    %902 = vmatpush1.msra.mxu0 %v500
    %903 = vmatprep.subr.mxu0 %v505
    %904 = vmatpush1.msra.mxu0 %v504
    %905 = vmatprep.subr.mxu0 %v509
    %906 = vmatpush1.msra.mxu0 %v508
    %907 = vmatprep.subr.mxu0 %v513
    %908 = vmatpush1.msra.mxu0 %v512
    %909 = vmatprep.subr.mxu0 %v517
    %910 = vmatpush1.msra.mxu0 %v516
    %911 = vmatprep.subr.mxu0 %v521
    %912 = vmatpush1.msra.mxu0 %v520
    %913 = vmatprep.subr.mxu0 %v525
    %914 = vmatpush1.msra.mxu0 %v524
    %915 = vmatprep.subr.mxu0 %v529
    %916 = vmatpush1.msra.mxu0 %v528
    %917 = vmatprep.subr.mxu0 %v533
    %918 = vmatpush1.msra.mxu0 %v532
    %919 = vmatprep.subr.mxu0 %v537
    %920 = vmatpush1.msra.mxu0 %v536
    %921 = vmatprep.subr.mxu0 %v541
    %922 = vmatpush1.msra.mxu0 %v540
    %923 = vmatprep.subr.mxu0 %v545
    %924 = vmatpush1.msra.mxu0 %v544
    %925 = vmatprep.subr.mxu0 %v549
    %926 = vmatpush1.msra.mxu0 %v548
    %927 = vmatprep.subr.mxu0 %v553
    %928 = vmatpush1.msra.mxu0 %v552
    %929 = vmatprep.subr.mxu0 %v557
    %930 = vmatpush1.msra.mxu0 %v556
    %931 = vmatprep.subr.mxu0 %v561
    %932 = vmatpush1.msra.mxu0 %v560
    %933 = vmatprep.subr.mxu0 %v565
    %934 = vmatpush1.msra.mxu0 %v564
    %935 = vmatprep.subr.mxu0 %v569
    %936 = vmatpush1.msra.mxu0 %v568
    %937 = vmatprep.subr.mxu0 %v573
    %938 = vmatpush1.msra.mxu0 %v572
    %939 = vmatprep.subr.mxu0 %v577
    %940 = vmatpush1.msra.mxu0 %v576
    %941 = vmatprep.subr.mxu0 %v581
    %942 = vmatpush1.msra.mxu0 %v580
    %943 = vmatprep.subr.mxu0 %v585
    %944 = vmatpush1.msra.mxu0 %v584
    %945 = vmatprep.subr.mxu0 %v589
    %946 = vmatpush1.msra.mxu0 %v588
    %947 = vmatprep.subr.mxu0 %v593
    %948 = vmatpush1.msra.mxu0 %v592
    %949 = vmatprep.subr.mxu0 %v597
    %950 = vmatpush1.msra.mxu0 %v596
    %951 = vmatprep.subr.mxu0 %v601
    %952 = vmatpush1.msra.mxu0 %v600
    %953 = vmatprep.subr.mxu0 %v605
    %954 = vmatpush1.msra.mxu0 %v604
    %955 = vmatprep.subr.mxu0 %v609
    %956 = vmatpush1.msra.mxu0 %v608
    %957 = vmatprep.subr.mxu0 %v613
    %958 = vmatpush1.msra.mxu0 %v612
    %959 = vmatprep.mubr.f32.mxu0 %v673
    %960 = vmatmul.mubr.f32.gmra.mrb[0].mxu0 %v671
    %v961 = vpop.f32.mrb[0].mxu0
    %v962 = vadd.f32 %v891, %v961
    %v963 = vpop.f32.mrb[0].mxu0
    %v964 = vadd.f32 %v893, %v963
    %965 = vdwg.mxu0
    %966 = vmatprep.subr.mxu0 %v107
    %967 = vmatpush1.msra.mxu0 %v106
    %968 = vmatprep.subr.mxu0 %v111
    %969 = vmatpush1.msra.mxu0 %v110
    %970 = vmatprep.subr.mxu0 %v115
    %971 = vmatpush1.msra.mxu0 %v114
    %972 = vmatprep.subr.mxu0 %v119
    %973 = vmatpush1.msra.mxu0 %v118
    %974 = vmatprep.subr.mxu0 %v123
    %975 = vmatpush1.msra.mxu0 %v122
    %976 = vmatprep.subr.mxu0 %v127
    %977 = vmatpush1.msra.mxu0 %v126
    %978 = vmatprep.subr.mxu0 %v131
    %979 = vmatpush1.msra.mxu0 %v130
    %980 = vmatprep.subr.mxu0 %v135
    %981 = vmatpush1.msra.mxu0 %v134
    %982 = vmatprep.subr.mxu0 %v139
    %983 = vmatpush1.msra.mxu0 %v138
    %984 = vmatprep.subr.mxu0 %v143
    %985 = vmatpush1.msra.mxu0 %v142
    %986 = vmatprep.subr.mxu0 %v147
    %987 = vmatpush1.msra.mxu0 %v146
    %988 = vmatprep.subr.mxu0 %v151
    %989 = vmatpush1.msra.mxu0 %v150
    %990 = vmatprep.subr.mxu0 %v155
    %991 = vmatpush1.msra.mxu0 %v154
    %992 = vmatprep.subr.mxu0 %v159
    %993 = vmatpush1.msra.mxu0 %v158
    %994 = vmatprep.subr.mxu0 %v163
    %995 = vmatpush1.msra.mxu0 %v162
    %996 = vmatprep.subr.mxu0 %v167
    %997 = vmatpush1.msra.mxu0 %v166
    %998 = vmatprep.subr.mxu0 %v171
    %999 = vmatpush1.msra.mxu0 %v170
    %1000 = vmatprep.subr.mxu0 %v175
    %1001 = vmatpush1.msra.mxu0 %v174
    %1002 = vmatprep.subr.mxu0 %v179
    %1003 = vmatpush1.msra.mxu0 %v178
    %1004 = vmatprep.subr.mxu0 %v183
    %1005 = vmatpush1.msra.mxu0 %v182
    %1006 = vmatprep.subr.mxu0 %v187
    %1007 = vmatpush1.msra.mxu0 %v186
    %1008 = vmatprep.subr.mxu0 %v191
    %1009 = vmatpush1.msra.mxu0 %v190
    %1010 = vmatprep.subr.mxu0 %v195
    %1011 = vmatpush1.msra.mxu0 %v194
    %1012 = vmatprep.subr.mxu0 %v199
    %1013 = vmatpush1.msra.mxu0 %v198
    %1014 = vmatprep.subr.mxu0 %v203
    %1015 = vmatpush1.msra.mxu0 %v202
    %1016 = vmatprep.subr.mxu0 %v207
    %1017 = vmatpush1.msra.mxu0 %v206
    %1018 = vmatprep.subr.mxu0 %v211
    %1019 = vmatpush1.msra.mxu0 %v210
    %1020 = vmatprep.subr.mxu0 %v215
    %1021 = vmatpush1.msra.mxu0 %v214
    %1022 = vmatprep.subr.mxu0 %v219
    %1023 = vmatpush1.msra.mxu0 %v218
    %1024 = vmatprep.subr.mxu0 %v223
    %1025 = vmatpush1.msra.mxu0 %v222
    %1026 = vmatprep.subr.mxu0 %v227
    %1027 = vmatpush1.msra.mxu0 %v226
    %1028 = vmatprep.subr.mxu0 %v231
    %1029 = vmatpush1.msra.mxu0 %v230
    %1030 = vmatprep.mubr.f32.mxu0 %v655
    %1031 = vmatmul.mubr.f32.gmra.mrb[0].mxu0 %v647
    %v1032 = vpop.f32.mrb[0].mxu0
    %v1033 = vadd.f32 %v629, %v1032
    %v1034 = vpop.f32.mrb[0].mxu0
    %v1035 = vadd.f32 %v633, %v1034
    %1036 = vdwg.mxu0
    %1037 = vmatprep.subr.mxu0 %v235
    %1038 = vmatpush1.msra.mxu0 %v234
    %1039 = vmatprep.subr.mxu0 %v239
    %1040 = vmatpush1.msra.mxu0 %v238
    %1041 = vmatprep.subr.mxu0 %v243
    %1042 = vmatpush1.msra.mxu0 %v242
    %1043 = vmatprep.subr.mxu0 %v247
    %1044 = vmatpush1.msra.mxu0 %v246
    %1045 = vmatprep.subr.mxu0 %v251
    %1046 = vmatpush1.msra.mxu0 %v250
    %1047 = vmatprep.subr.mxu0 %v255
    %1048 = vmatpush1.msra.mxu0 %v254
    %1049 = vmatprep.subr.mxu0 %v259
    %1050 = vmatpush1.msra.mxu0 %v258
    %1051 = vmatprep.subr.mxu0 %v263
    %1052 = vmatpush1.msra.mxu0 %v262
    %1053 = vmatprep.subr.mxu0 %v267
    %1054 = vmatpush1.msra.mxu0 %v266
    %1055 = vmatprep.subr.mxu0 %v271
    %1056 = vmatpush1.msra.mxu0 %v270
    %1057 = vmatprep.subr.mxu0 %v275
    %1058 = vmatpush1.msra.mxu0 %v274
    %1059 = vmatprep.subr.mxu0 %v279
    %1060 = vmatpush1.msra.mxu0 %v278
    %1061 = vmatprep.subr.mxu0 %v283
    %1062 = vmatpush1.msra.mxu0 %v282
    %1063 = vmatprep.subr.mxu0 %v287
    %1064 = vmatpush1.msra.mxu0 %v286
    %1065 = vmatprep.subr.mxu0 %v291
    %1066 = vmatpush1.msra.mxu0 %v290
    %1067 = vmatprep.subr.mxu0 %v295
    %1068 = vmatpush1.msra.mxu0 %v294
    %1069 = vmatprep.subr.mxu0 %v299
    %1070 = vmatpush1.msra.mxu0 %v298
    %1071 = vmatprep.subr.mxu0 %v303
    %1072 = vmatpush1.msra.mxu0 %v302
    %1073 = vmatprep.subr.mxu0 %v307
    %1074 = vmatpush1.msra.mxu0 %v306
    %1075 = vmatprep.subr.mxu0 %v311
    %1076 = vmatpush1.msra.mxu0 %v310
    %1077 = vmatprep.subr.mxu0 %v315
    %1078 = vmatpush1.msra.mxu0 %v314
    %1079 = vmatprep.subr.mxu0 %v319
    %1080 = vmatpush1.msra.mxu0 %v318
    %1081 = vmatprep.subr.mxu0 %v323
    %1082 = vmatpush1.msra.mxu0 %v322
    %1083 = vmatprep.subr.mxu0 %v327
    %1084 = vmatpush1.msra.mxu0 %v326
    %1085 = vmatprep.subr.mxu0 %v331
    %1086 = vmatpush1.msra.mxu0 %v330
    %1087 = vmatprep.subr.mxu0 %v335
    %1088 = vmatpush1.msra.mxu0 %v334
    %1089 = vmatprep.subr.mxu0 %v339
    %1090 = vmatpush1.msra.mxu0 %v338
    %1091 = vmatprep.subr.mxu0 %v343
    %1092 = vmatpush1.msra.mxu0 %v342
    %1093 = vmatprep.subr.mxu0 %v347
    %1094 = vmatpush1.msra.mxu0 %v346
    %1095 = vmatprep.subr.mxu0 %v351
    %1096 = vmatpush1.msra.mxu0 %v350
    %1097 = vmatprep.subr.mxu0 %v355
    %1098 = vmatpush1.msra.mxu0 %v354
    %1099 = vmatprep.subr.mxu0 %v359
    %1100 = vmatpush1.msra.mxu0 %v358
    %1101 = vmatprep.mubr.f32.mxu0 %v656
    %1102 = vmatmul.mubr.f32.gmra.mrb[0].mxu0 %v654
    %v1103 = vpop.f32.mrb[0].mxu0
    %v1104 = vadd.f32 %v1033, %v1103
    %v1105 = vpop.f32.mrb[0].mxu0
    %v1106 = vadd.f32 %v1035, %v1105
    %1107 = vdwg.mxu0
    %1108 = vmatprep.subr.mxu0 %v363
    %1109 = vmatpush1.msra.mxu0 %v362
    %1110 = vmatprep.subr.mxu0 %v367
    %1111 = vmatpush1.msra.mxu0 %v366
    %1112 = vmatprep.subr.mxu0 %v371
    %1113 = vmatpush1.msra.mxu0 %v370
    %1114 = vmatprep.subr.mxu0 %v375
    %1115 = vmatpush1.msra.mxu0 %v374
    %1116 = vmatprep.subr.mxu0 %v379
    %1117 = vmatpush1.msra.mxu0 %v378
    %1118 = vmatprep.subr.mxu0 %v383
    %1119 = vmatpush1.msra.mxu0 %v382
    %1120 = vmatprep.subr.mxu0 %v387
    %1121 = vmatpush1.msra.mxu0 %v386
    %1122 = vmatprep.subr.mxu0 %v391
    %1123 = vmatpush1.msra.mxu0 %v390
    %1124 = vmatprep.subr.mxu0 %v395
    %1125 = vmatpush1.msra.mxu0 %v394
    %1126 = vmatprep.subr.mxu0 %v399
    %1127 = vmatpush1.msra.mxu0 %v398
    %1128 = vmatprep.subr.mxu0 %v403
    %1129 = vmatpush1.msra.mxu0 %v402
    %1130 = vmatprep.subr.mxu0 %v407
    %1131 = vmatpush1.msra.mxu0 %v406
    %1132 = vmatprep.subr.mxu0 %v411
    %1133 = vmatpush1.msra.mxu0 %v410
    %1134 = vmatprep.subr.mxu0 %v415
    %1135 = vmatpush1.msra.mxu0 %v414
    %1136 = vmatprep.subr.mxu0 %v419
    %1137 = vmatpush1.msra.mxu0 %v418
    %1138 = vmatprep.subr.mxu0 %v423
    %1139 = vmatpush1.msra.mxu0 %v422
    %1140 = vmatprep.subr.mxu0 %v427
    %1141 = vmatpush1.msra.mxu0 %v426
    %1142 = vmatprep.subr.mxu0 %v431
    %1143 = vmatpush1.msra.mxu0 %v430
    %1144 = vmatprep.subr.mxu0 %v435
    %1145 = vmatpush1.msra.mxu0 %v434
    %1146 = vmatprep.subr.mxu0 %v439
    %1147 = vmatpush1.msra.mxu0 %v438
    %1148 = vmatprep.subr.mxu0 %v443
    %1149 = vmatpush1.msra.mxu0 %v442
    %1150 = vmatprep.subr.mxu0 %v447
    %1151 = vmatpush1.msra.mxu0 %v446
    %1152 = vmatprep.subr.mxu0 %v451
    %1153 = vmatpush1.msra.mxu0 %v450
    %1154 = vmatprep.subr.mxu0 %v455
    %1155 = vmatpush1.msra.mxu0 %v454
    %1156 = vmatprep.subr.mxu0 %v459
    %1157 = vmatpush1.msra.mxu0 %v458
    %1158 = vmatprep.subr.mxu0 %v463
    %1159 = vmatpush1.msra.mxu0 %v462
    %1160 = vmatprep.subr.mxu0 %v467
    %1161 = vmatpush1.msra.mxu0 %v466
    %1162 = vmatprep.subr.mxu0 %v471
    %1163 = vmatpush1.msra.mxu0 %v470
    %1164 = vmatprep.subr.mxu0 %v475
    %1165 = vmatpush1.msra.mxu0 %v474
    %1166 = vmatprep.subr.mxu0 %v479
    %1167 = vmatpush1.msra.mxu0 %v478
    %1168 = vmatprep.subr.mxu0 %v483
    %1169 = vmatpush1.msra.mxu0 %v482
    %1170 = vmatprep.subr.mxu0 %v487
    %1171 = vmatpush1.msra.mxu0 %v486
    %1172 = vmatprep.mubr.f32.mxu0 %v672
    %1173 = vmatmul.mubr.f32.gmra.mrb[0].mxu0 %v664
    %v1174 = vpop.f32.mrb[0].mxu0
    %v1175 = vadd.f32 %v1104, %v1174
    %v1176 = vpop.f32.mrb[0].mxu0
    %v1177 = vadd.f32 %v1106, %v1176
    %1178 = vdwg.mxu0
    %1179 = vmatprep.subr.mxu0 %v491
    %1180 = vmatpush1.msra.mxu0 %v490
    %1181 = vmatprep.subr.mxu0 %v495
    %1182 = vmatpush1.msra.mxu0 %v494
    %1183 = vmatprep.subr.mxu0 %v499
    %1184 = vmatpush1.msra.mxu0 %v498
    %1185 = vmatprep.subr.mxu0 %v503
    %1186 = vmatpush1.msra.mxu0 %v502
    %1187 = vmatprep.subr.mxu0 %v507
    %1188 = vmatpush1.msra.mxu0 %v506
    %1189 = vmatprep.subr.mxu0 %v511
    %1190 = vmatpush1.msra.mxu0 %v510
    %1191 = vmatprep.subr.mxu0 %v515
    %1192 = vmatpush1.msra.mxu0 %v514
    %1193 = vmatprep.subr.mxu0 %v519
    %1194 = vmatpush1.msra.mxu0 %v518
    %1195 = vmatprep.subr.mxu0 %v523
    %1196 = vmatpush1.msra.mxu0 %v522
    %1197 = vmatprep.subr.mxu0 %v527
    %1198 = vmatpush1.msra.mxu0 %v526
    %1199 = vmatprep.subr.mxu0 %v531
    %1200 = vmatpush1.msra.mxu0 %v530
    %1201 = vmatprep.subr.mxu0 %v535
    %1202 = vmatpush1.msra.mxu0 %v534
    %1203 = vmatprep.subr.mxu0 %v539
    %1204 = vmatpush1.msra.mxu0 %v538
    %1205 = vmatprep.subr.mxu0 %v543
    %1206 = vmatpush1.msra.mxu0 %v542
    %1207 = vmatprep.subr.mxu0 %v547
    %1208 = vmatpush1.msra.mxu0 %v546
    %1209 = vmatprep.subr.mxu0 %v551
    %1210 = vmatpush1.msra.mxu0 %v550
    %1211 = vmatprep.subr.mxu0 %v555
    %1212 = vmatpush1.msra.mxu0 %v554
    %1213 = vmatprep.subr.mxu0 %v559
    %1214 = vmatpush1.msra.mxu0 %v558
    %1215 = vmatprep.subr.mxu0 %v563
    %1216 = vmatpush1.msra.mxu0 %v562
    %1217 = vmatprep.subr.mxu0 %v567
    %1218 = vmatpush1.msra.mxu0 %v566
    %1219 = vmatprep.subr.mxu0 %v571
    %1220 = vmatpush1.msra.mxu0 %v570
    %1221 = vmatprep.subr.mxu0 %v575
    %1222 = vmatpush1.msra.mxu0 %v574
    %1223 = vmatprep.subr.mxu0 %v579
    %1224 = vmatpush1.msra.mxu0 %v578
    %1225 = vmatprep.subr.mxu0 %v583
    %1226 = vmatpush1.msra.mxu0 %v582
    %1227 = vmatprep.subr.mxu0 %v587
    %1228 = vmatpush1.msra.mxu0 %v586
    %1229 = vmatprep.subr.mxu0 %v591
    %1230 = vmatpush1.msra.mxu0 %v590
    %1231 = vmatprep.subr.mxu0 %v595
    %1232 = vmatpush1.msra.mxu0 %v594
    %1233 = vmatprep.subr.mxu0 %v599
    %1234 = vmatpush1.msra.mxu0 %v598
    %1235 = vmatprep.subr.mxu0 %v603
    %1236 = vmatpush1.msra.mxu0 %v602
    %1237 = vmatprep.subr.mxu0 %v607
    %1238 = vmatpush1.msra.mxu0 %v606
    %1239 = vmatprep.subr.mxu0 %v611
    %1240 = vmatpush1.msra.mxu0 %v610
    %1241 = vmatprep.subr.mxu0 %v615
    %1242 = vmatpush1.msra.mxu0 %v614
    %1243 = vmatprep.mubr.f32.mxu0 %v673
    %1244 = vmatmul.mubr.f32.gmra.mrb[0].mxu0 %v671
    %v1245 = vpop.f32.mrb[0].mxu0
    %v1246 = vadd.f32 %v1175, %v1245
    %v1247 = vpop.f32.mrb[0].mxu0
    %v1248 = vadd.f32 %v1177, %v1247
    %1249 = vdwg.mxu0
    %v1250 = vmax.f32 %v962, 0.0
    %v1251 = vmax.f32 %v964, 0.0
    %v1252 = vmax.f32 %v1246, 0.0
    %v1253 = vmax.f32 %v1248, 0.0
    %v1254 = vld [vmem:[#allocation6] sm:$0xff]
    %v1255 = vld [vmem:[#allocation6 + $0x8] sm:$0xff]
    %v1256 = vld [vmem:[#allocation6 + $0x10] sm:$0xff]
    %v1257 = vld [vmem:[#allocation6 + $0x18] sm:$0xff]
    %v1258 = vld [vmem:[#allocation6 + $0x20] sm:$0xff]
    %v1259 = vld [vmem:[#allocation6 + $0x28] sm:$0xff]
    %v1260 = vld [vmem:[#allocation6 + $0x30] sm:$0xff]
    %v1261 = vld [vmem:[#allocation6 + $0x38] sm:$0xff]
    %v1262 = vld [vmem:[#allocation6 + $0x40] sm:$0xff]
    %v1263 = vld [vmem:[#allocation6 + $0x48] sm:$0xff]
    %v1264 = vld [vmem:[#allocation6 + $0x50] sm:$0xff]
    %v1265 = vld [vmem:[#allocation6 + $0x58] sm:$0xff]
    %v1266 = vld [vmem:[#allocation6 + $0x60] sm:$0xff]
    %v1267 = vld [vmem:[#allocation6 + $0x68] sm:$0xff]
    %v1268 = vld [vmem:[#allocation6 + $0x70] sm:$0xff]
    %v1269 = vld [vmem:[#allocation6 + $0x78] sm:$0xff]
    %v1270 = vld [vmem:[#allocation6 + $0x80] sm:$0xff]
    %v1271 = vld [vmem:[#allocation6 + $0x88] sm:$0xff]
    %v1272 = vld [vmem:[#allocation6 + $0x90] sm:$0xff]
    %v1273 = vld [vmem:[#allocation6 + $0x98] sm:$0xff]
    %v1274 = vld [vmem:[#allocation6 + $0xa0] sm:$0xff]
    %v1275 = vld [vmem:[#allocation6 + $0xa8] sm:$0xff]
    %v1276 = vld [vmem:[#allocation6 + $0xb0] sm:$0xff]
    %v1277 = vld [vmem:[#allocation6 + $0xb8] sm:$0xff]
    %v1278 = vld [vmem:[#allocation6 + $0xc0] sm:$0xff]
    %v1279 = vld [vmem:[#allocation6 + $0xc8] sm:$0xff]
    %v1280 = vld [vmem:[#allocation6 + $0xd0] sm:$0xff]
    %v1281 = vld [vmem:[#allocation6 + $0xd8] sm:$0xff]
    %v1282 = vld [vmem:[#allocation6 + $0xe0] sm:$0xff]
    %v1283 = vld [vmem:[#allocation6 + $0xe8] sm:$0xff]
    %v1284 = vld [vmem:[#allocation6 + $0xf0] sm:$0xff]
    %v1285 = vld [vmem:[#allocation6 + $0xf8] sm:$0xff]
    %v1286 = vld [vmem:[#allocation6 + $0x100] sm:$0xff]
    %v1287 = vld [vmem:[#allocation6 + $0x108] sm:$0xff]
    %v1288 = vld [vmem:[#allocation6 + $0x110] sm:$0xff]
    %v1289 = vld [vmem:[#allocation6 + $0x118] sm:$0xff]
    %v1290 = vld [vmem:[#allocation6 + $0x120] sm:$0xff]
    %v1291 = vld [vmem:[#allocation6 + $0x128] sm:$0xff]
    %v1292 = vld [vmem:[#allocation6 + $0x130] sm:$0xff]
    %v1293 = vld [vmem:[#allocation6 + $0x138] sm:$0xff]
    %v1294 = vld [vmem:[#allocation6 + $0x140] sm:$0xff]
    %v1295 = vld [vmem:[#allocation6 + $0x148] sm:$0xff]
    %v1296 = vld [vmem:[#allocation6 + $0x150] sm:$0xff]
    %v1297 = vld [vmem:[#allocation6 + $0x158] sm:$0xff]
    %v1298 = vld [vmem:[#allocation6 + $0x160] sm:$0xff]
    %v1299 = vld [vmem:[#allocation6 + $0x168] sm:$0xff]
    %v1300 = vld [vmem:[#allocation6 + $0x170] sm:$0xff]
    %v1301 = vld [vmem:[#allocation6 + $0x178] sm:$0xff]
    %v1302 = vld [vmem:[#allocation6 + $0x180] sm:$0xff]
    %v1303 = vld [vmem:[#allocation6 + $0x188] sm:$0xff]
    %v1304 = vld [vmem:[#allocation6 + $0x190] sm:$0xff]
    %v1305 = vld [vmem:[#allocation6 + $0x198] sm:$0xff]
    %v1306 = vld [vmem:[#allocation6 + $0x1a0] sm:$0xff]
    %v1307 = vld [vmem:[#allocation6 + $0x1a8] sm:$0xff]
    %v1308 = vld [vmem:[#allocation6 + $0x1b0] sm:$0xff]
    %v1309 = vld [vmem:[#allocation6 + $0x1b8] sm:$0xff]
    %v1310 = vld [vmem:[#allocation6 + $0x1c0] sm:$0xff]
    %v1311 = vld [vmem:[#allocation6 + $0x1c8] sm:$0xff]
    %v1312 = vld [vmem:[#allocation6 + $0x1d0] sm:$0xff]
    %v1313 = vld [vmem:[#allocation6 + $0x1d8] sm:$0xff]
    %v1314 = vld [vmem:[#allocation6 + $0x1e0] sm:$0xff]
    %v1315 = vld [vmem:[#allocation6 + $0x1e8] sm:$0xff]
    %v1316 = vld [vmem:[#allocation6 + $0x1f0] sm:$0xff]
    %v1317 = vld [vmem:[#allocation6 + $0x1f8] sm:$0xff]
    %v1318 = vld [vmem:[#allocation6 + $0x200] sm:$0xff]
    %v1319 = vld [vmem:[#allocation6 + $0x208] sm:$0xff]
    %v1320 = vld [vmem:[#allocation6 + $0x210] sm:$0xff]
    %v1321 = vld [vmem:[#allocation6 + $0x218] sm:$0xff]
    %v1322 = vld [vmem:[#allocation6 + $0x220] sm:$0xff]
    %v1323 = vld [vmem:[#allocation6 + $0x228] sm:$0xff]
    %v1324 = vld [vmem:[#allocation6 + $0x230] sm:$0xff]
    %v1325 = vld [vmem:[#allocation6 + $0x238] sm:$0xff]
    %v1326 = vld [vmem:[#allocation6 + $0x240] sm:$0xff]
    %v1327 = vld [vmem:[#allocation6 + $0x248] sm:$0xff]
    %v1328 = vld [vmem:[#allocation6 + $0x250] sm:$0xff]
    %v1329 = vld [vmem:[#allocation6 + $0x258] sm:$0xff]
    %v1330 = vld [vmem:[#allocation6 + $0x260] sm:$0xff]
    %v1331 = vld [vmem:[#allocation6 + $0x268] sm:$0xff]
    %v1332 = vld [vmem:[#allocation6 + $0x270] sm:$0xff]
    %v1333 = vld [vmem:[#allocation6 + $0x278] sm:$0xff]
    %v1334 = vld [vmem:[#allocation6 + $0x280] sm:$0xff]
    %v1335 = vld [vmem:[#allocation6 + $0x288] sm:$0xff]
    %v1336 = vld [vmem:[#allocation6 + $0x290] sm:$0xff]
    %v1337 = vld [vmem:[#allocation6 + $0x298] sm:$0xff]
    %v1338 = vld [vmem:[#allocation6 + $0x2a0] sm:$0xff]
    %v1339 = vld [vmem:[#allocation6 + $0x2a8] sm:$0xff]
    %v1340 = vld [vmem:[#allocation6 + $0x2b0] sm:$0xff]
    %v1341 = vld [vmem:[#allocation6 + $0x2b8] sm:$0xff]
    %v1342 = vld [vmem:[#allocation6 + $0x2c0] sm:$0xff]
    %v1343 = vld [vmem:[#allocation6 + $0x2c8] sm:$0xff]
    %v1344 = vld [vmem:[#allocation6 + $0x2d0] sm:$0xff]
    %v1345 = vld [vmem:[#allocation6 + $0x2d8] sm:$0xff]
    %v1346 = vld [vmem:[#allocation6 + $0x2e0] sm:$0xff]
    %v1347 = vld [vmem:[#allocation6 + $0x2e8] sm:$0xff]
    %v1348 = vld [vmem:[#allocation6 + $0x2f0] sm:$0xff]
    %v1349 = vld [vmem:[#allocation6 + $0x2f8] sm:$0xff]
    %v1350 = vld [vmem:[#allocation6 + $0x300] sm:$0xff]
    %v1351 = vld [vmem:[#allocation6 + $0x308] sm:$0xff]
    %v1352 = vld [vmem:[#allocation6 + $0x310] sm:$0xff]
    %v1353 = vld [vmem:[#allocation6 + $0x318] sm:$0xff]
    %v1354 = vld [vmem:[#allocation6 + $0x320] sm:$0xff]
    %v1355 = vld [vmem:[#allocation6 + $0x328] sm:$0xff]
    %v1356 = vld [vmem:[#allocation6 + $0x330] sm:$0xff]
    %v1357 = vld [vmem:[#allocation6 + $0x338] sm:$0xff]
    %v1358 = vld [vmem:[#allocation6 + $0x340] sm:$0xff]
    %v1359 = vld [vmem:[#allocation6 + $0x348] sm:$0xff]
    %v1360 = vld [vmem:[#allocation6 + $0x350] sm:$0xff]
    %v1361 = vld [vmem:[#allocation6 + $0x358] sm:$0xff]
    %v1362 = vld [vmem:[#allocation6 + $0x360] sm:$0xff]
    %v1363 = vld [vmem:[#allocation6 + $0x368] sm:$0xff]
    %v1364 = vld [vmem:[#allocation6 + $0x370] sm:$0xff]
    %v1365 = vld [vmem:[#allocation6 + $0x378] sm:$0xff]
    %v1366 = vld [vmem:[#allocation6 + $0x380] sm:$0xff]
    %v1367 = vld [vmem:[#allocation6 + $0x388] sm:$0xff]
    %v1368 = vld [vmem:[#allocation6 + $0x390] sm:$0xff]
    %v1369 = vld [vmem:[#allocation6 + $0x398] sm:$0xff]
    %v1370 = vld [vmem:[#allocation6 + $0x3a0] sm:$0xff]
    %v1371 = vld [vmem:[#allocation6 + $0x3a8] sm:$0xff]
    %v1372 = vld [vmem:[#allocation6 + $0x3b0] sm:$0xff]
    %v1373 = vld [vmem:[#allocation6 + $0x3b8] sm:$0xff]
    %v1374 = vld [vmem:[#allocation6 + $0x3c0] sm:$0xff]
    %v1375 = vld [vmem:[#allocation6 + $0x3c8] sm:$0xff]
    %v1376 = vld [vmem:[#allocation6 + $0x3d0] sm:$0xff]
    %v1377 = vld [vmem:[#allocation6 + $0x3d8] sm:$0xff]
    %v1378 = vld [vmem:[#allocation6 + $0x3e0] sm:$0xff]
    %v1379 = vld [vmem:[#allocation6 + $0x3e8] sm:$0xff]
    %v1380 = vld [vmem:[#allocation6 + $0x3f0] sm:$0xff]
    %v1381 = vld [vmem:[#allocation6 + $0x3f8] sm:$0xff]
    %v1382 = vld [vmem:[#allocation7] sm:$0x3]
    %v1384 = vlaneseq
    %v1385 = vshrl.u32 %v1384, 7
    %v1386 = vsub.s32 0, %v1385
    %v1387 = vrot.slane %v1382, %v1386
    %v1388 = vlaneseq
    %v1389 = vshrl.u32 %v1388, 7
    %v1390 = vsub.s32 1, %v1389
    %v1391 = vrot.slane %v1382, %v1390
    %1394 = vmatprep.subr.mxu0 %v1255
    %1395 = vmatpush1.msra.mxu0 %v1254
    %1396 = vmatprep.subr.mxu0 %v1257
    %1397 = vmatpush1.msra.mxu0 %v1256
    %1398 = vmatprep.subr.mxu0 %v1259
    %1399 = vmatpush1.msra.mxu0 %v1258
    %1400 = vmatprep.subr.mxu0 %v1261
    %1401 = vmatpush1.msra.mxu0 %v1260
    %1402 = vmatprep.subr.mxu0 %v1263
    %1403 = vmatpush1.msra.mxu0 %v1262
    %1404 = vmatprep.subr.mxu0 %v1265
    %1405 = vmatpush1.msra.mxu0 %v1264
    %1406 = vmatprep.subr.mxu0 %v1267
    %1407 = vmatpush1.msra.mxu0 %v1266
    %1408 = vmatprep.subr.mxu0 %v1269
    %1409 = vmatpush1.msra.mxu0 %v1268
    %1410 = vmatprep.subr.mxu0 %v1271
    %1411 = vmatpush1.msra.mxu0 %v1270
    %1412 = vmatprep.subr.mxu0 %v1273
    %1413 = vmatpush1.msra.mxu0 %v1272
    %1414 = vmatprep.subr.mxu0 %v1275
    %1415 = vmatpush1.msra.mxu0 %v1274
    %1416 = vmatprep.subr.mxu0 %v1277
    %1417 = vmatpush1.msra.mxu0 %v1276
    %1418 = vmatprep.subr.mxu0 %v1279
    %1419 = vmatpush1.msra.mxu0 %v1278
    %1420 = vmatprep.subr.mxu0 %v1281
    %1421 = vmatpush1.msra.mxu0 %v1280
    %1422 = vmatprep.subr.mxu0 %v1283
    %1423 = vmatpush1.msra.mxu0 %v1282
    %1424 = vmatprep.subr.mxu0 %v1285
    %1425 = vmatpush1.msra.mxu0 %v1284
    %1426 = vmatprep.subr.mxu0 %v1287
    %1427 = vmatpush1.msra.mxu0 %v1286
    %1428 = vmatprep.subr.mxu0 %v1289
    %1429 = vmatpush1.msra.mxu0 %v1288
    %1430 = vmatprep.subr.mxu0 %v1291
    %1431 = vmatpush1.msra.mxu0 %v1290
    %1432 = vmatprep.subr.mxu0 %v1293
    %1433 = vmatpush1.msra.mxu0 %v1292
    %1434 = vmatprep.subr.mxu0 %v1295
    %1435 = vmatpush1.msra.mxu0 %v1294
    %1436 = vmatprep.subr.mxu0 %v1297
    %1437 = vmatpush1.msra.mxu0 %v1296
    %1438 = vmatprep.subr.mxu0 %v1299
    %1439 = vmatpush1.msra.mxu0 %v1298
    %1440 = vmatprep.subr.mxu0 %v1301
    %1441 = vmatpush1.msra.mxu0 %v1300
    %1442 = vmatprep.subr.mxu0 %v1303
    %1443 = vmatpush1.msra.mxu0 %v1302
    %1444 = vmatprep.subr.mxu0 %v1305
    %1445 = vmatpush1.msra.mxu0 %v1304
    %1446 = vmatprep.subr.mxu0 %v1307
    %1447 = vmatpush1.msra.mxu0 %v1306
    %1448 = vmatprep.subr.mxu0 %v1309
    %1449 = vmatpush1.msra.mxu0 %v1308
    %1450 = vmatprep.subr.mxu0 %v1311
    %1451 = vmatpush1.msra.mxu0 %v1310
    %1452 = vmatprep.subr.mxu0 %v1313
    %1453 = vmatpush1.msra.mxu0 %v1312
    %1454 = vmatprep.subr.mxu0 %v1315
    %1455 = vmatpush1.msra.mxu0 %v1314
    %1456 = vmatprep.subr.mxu0 %v1317
    %1457 = vmatpush1.msra.mxu0 %v1316
    %1458 = vmatprep.mubr.f32.mxu0 %v1251
    %1459 = vmatmul.mubr.f32.gmra.mrb[0].mxu0 %v1250
    %v1460 = vpop.f32.mrb[0].mxu0
    %v1461 = vadd.f32 %v1387, %v1460
    %v1462 = vpop.f32.mrb[0].mxu0
    %v1463 = vadd.f32 %v1391, %v1462
    %1464 = vdwg.mxu0
    %1465 = vmatprep.subr.mxu0 %v1319
    %1466 = vmatpush1.msra.mxu0 %v1318
    %1467 = vmatprep.subr.mxu0 %v1321
    %1468 = vmatpush1.msra.mxu0 %v1320
    %1469 = vmatprep.subr.mxu0 %v1323
    %1470 = vmatpush1.msra.mxu0 %v1322
    %1471 = vmatprep.subr.mxu0 %v1325
    %1472 = vmatpush1.msra.mxu0 %v1324
    %1473 = vmatprep.subr.mxu0 %v1327
    %1474 = vmatpush1.msra.mxu0 %v1326
    %1475 = vmatprep.subr.mxu0 %v1329
    %1476 = vmatpush1.msra.mxu0 %v1328
    %1477 = vmatprep.subr.mxu0 %v1331
    %1478 = vmatpush1.msra.mxu0 %v1330
    %1479 = vmatprep.subr.mxu0 %v1333
    %1480 = vmatpush1.msra.mxu0 %v1332
    %1481 = vmatprep.subr.mxu0 %v1335
    %1482 = vmatpush1.msra.mxu0 %v1334
    %1483 = vmatprep.subr.mxu0 %v1337
    %1484 = vmatpush1.msra.mxu0 %v1336
    %1485 = vmatprep.subr.mxu0 %v1339
    %1486 = vmatpush1.msra.mxu0 %v1338
    %1487 = vmatprep.subr.mxu0 %v1341
    %1488 = vmatpush1.msra.mxu0 %v1340
    %1489 = vmatprep.subr.mxu0 %v1343
    %1490 = vmatpush1.msra.mxu0 %v1342
    %1491 = vmatprep.subr.mxu0 %v1345
    %1492 = vmatpush1.msra.mxu0 %v1344
    %1493 = vmatprep.subr.mxu0 %v1347
    %1494 = vmatpush1.msra.mxu0 %v1346
    %1495 = vmatprep.subr.mxu0 %v1349
    %1496 = vmatpush1.msra.mxu0 %v1348
    %1497 = vmatprep.subr.mxu0 %v1351
    %1498 = vmatpush1.msra.mxu0 %v1350
    %1499 = vmatprep.subr.mxu0 %v1353
    %1500 = vmatpush1.msra.mxu0 %v1352
    %1501 = vmatprep.subr.mxu0 %v1355
    %1502 = vmatpush1.msra.mxu0 %v1354
    %1503 = vmatprep.subr.mxu0 %v1357
    %1504 = vmatpush1.msra.mxu0 %v1356
    %1505 = vmatprep.subr.mxu0 %v1359
    %1506 = vmatpush1.msra.mxu0 %v1358
    %1507 = vmatprep.subr.mxu0 %v1361
    %1508 = vmatpush1.msra.mxu0 %v1360
    %1509 = vmatprep.subr.mxu0 %v1363
    %1510 = vmatpush1.msra.mxu0 %v1362
    %1511 = vmatprep.subr.mxu0 %v1365
    %1512 = vmatpush1.msra.mxu0 %v1364
    %1513 = vmatprep.subr.mxu0 %v1367
    %1514 = vmatpush1.msra.mxu0 %v1366
    %1515 = vmatprep.subr.mxu0 %v1369
    %1516 = vmatpush1.msra.mxu0 %v1368
    %1517 = vmatprep.subr.mxu0 %v1371
    %1518 = vmatpush1.msra.mxu0 %v1370
    %1519 = vmatprep.subr.mxu0 %v1373
    %1520 = vmatpush1.msra.mxu0 %v1372
    %1521 = vmatprep.subr.mxu0 %v1375
    %1522 = vmatpush1.msra.mxu0 %v1374
    %1523 = vmatprep.subr.mxu0 %v1377
    %1524 = vmatpush1.msra.mxu0 %v1376
    %1525 = vmatprep.subr.mxu0 %v1379
    %1526 = vmatpush1.msra.mxu0 %v1378
    %1527 = vmatprep.subr.mxu0 %v1381
    %1528 = vmatpush1.msra.mxu0 %v1380
    %1529 = vmatprep.mubr.f32.mxu0 %v1253
    %1530 = vmatmul.mubr.f32.gmra.mrb[0].mxu0 %v1252
    %v1531 = vpop.f32.mrb[0].mxu0
    %v1532 = vadd.f32 %v1461, %v1531
    %v1533 = vpop.f32.mrb[0].mxu0
    %v1534 = vadd.f32 %v1463, %v1533
    %1535 = vdwg.mxu0
    %v1536 = vmax.f32 %v1532, 0.0
    %v1537 = vmax.f32 %v1534, 0.0
    %v1538 = vld [vmem:[#allocation9] sm:$0xff]
    %v1539 = vld [vmem:[#allocation9 + $0x8] sm:$0xff]
    %v1540 = vld [vmem:[#allocation9 + $0x10] sm:$0xff]
    %v1541 = vld [vmem:[#allocation9 + $0x18] sm:$0xff]
    %v1542 = vld [vmem:[#allocation9 + $0x20] sm:$0xff]
    %v1543 = vld [vmem:[#allocation9 + $0x28] sm:$0xff]
    %v1544 = vld [vmem:[#allocation9 + $0x30] sm:$0xff]
    %v1545 = vld [vmem:[#allocation9 + $0x38] sm:$0xff]
    %v1546 = vld [vmem:[#allocation9 + $0x40] sm:$0xff]
    %v1547 = vld [vmem:[#allocation9 + $0x48] sm:$0xff]
    %v1548 = vld [vmem:[#allocation9 + $0x50] sm:$0xff]
    %v1549 = vld [vmem:[#allocation9 + $0x58] sm:$0xff]
    %v1550 = vld [vmem:[#allocation9 + $0x60] sm:$0xff]
    %v1551 = vld [vmem:[#allocation9 + $0x68] sm:$0xff]
    %v1552 = vld [vmem:[#allocation9 + $0x70] sm:$0xff]
    %v1553 = vld [vmem:[#allocation9 + $0x78] sm:$0xff]
    %v1554 = vld [vmem:[#allocation9 + $0x80] sm:$0xff]
    %v1555 = vld [vmem:[#allocation9 + $0x88] sm:$0xff]
    %v1556 = vld [vmem:[#allocation9 + $0x90] sm:$0xff]
    %v1557 = vld [vmem:[#allocation9 + $0x98] sm:$0xff]
    %v1558 = vld [vmem:[#allocation9 + $0xa0] sm:$0xff]
    %v1559 = vld [vmem:[#allocation9 + $0xa8] sm:$0xff]
    %v1560 = vld [vmem:[#allocation9 + $0xb0] sm:$0xff]
    %v1561 = vld [vmem:[#allocation9 + $0xb8] sm:$0xff]
    %v1562 = vld [vmem:[#allocation9 + $0xc0] sm:$0xff]
    %v1563 = vld [vmem:[#allocation9 + $0xc8] sm:$0xff]
    %v1564 = vld [vmem:[#allocation9 + $0xd0] sm:$0xff]
    %v1565 = vld [vmem:[#allocation9 + $0xd8] sm:$0xff]
    %v1566 = vld [vmem:[#allocation9 + $0xe0] sm:$0xff]
    %v1567 = vld [vmem:[#allocation9 + $0xe8] sm:$0xff]
    %v1568 = vld [vmem:[#allocation9 + $0xf0] sm:$0xff]
    %v1569 = vld [vmem:[#allocation9 + $0xf8] sm:$0xff]
    %v1570 = vld [vmem:[#allocation10] sm:$0x1]
    %v1572 = vlaneseq
    %v1573 = vshrl.u32 %v1572, 7
    %v1574 = vsub.s32 0, %v1573
    %v1575 = vrot.slane %v1570, %v1574
    %1577 = vmatprep.subr.mxu0 0.0
    %1578 = vmatpush1.msra.mxu0 %v1538
    %1579 = vmatprep.subr.mxu0 0.0
    %1580 = vmatpush1.msra.mxu0 %v1539
    %1581 = vmatprep.subr.mxu0 0.0
    %1582 = vmatpush1.msra.mxu0 %v1540
    %1583 = vmatprep.subr.mxu0 0.0
    %1584 = vmatpush1.msra.mxu0 %v1541
    %1585 = vmatprep.subr.mxu0 0.0
    %1586 = vmatpush1.msra.mxu0 %v1542
    %1587 = vmatprep.subr.mxu0 0.0
    %1588 = vmatpush1.msra.mxu0 %v1543
    %1589 = vmatprep.subr.mxu0 0.0
    %1590 = vmatpush1.msra.mxu0 %v1544
    %1591 = vmatprep.subr.mxu0 0.0
    %1592 = vmatpush1.msra.mxu0 %v1545
    %1593 = vmatprep.subr.mxu0 0.0
    %1594 = vmatpush1.msra.mxu0 %v1546
    %1595 = vmatprep.subr.mxu0 0.0
    %1596 = vmatpush1.msra.mxu0 %v1547
    %1597 = vmatprep.subr.mxu0 0.0
    %1598 = vmatpush1.msra.mxu0 %v1548
    %1599 = vmatprep.subr.mxu0 0.0
    %1600 = vmatpush1.msra.mxu0 %v1549
    %1601 = vmatprep.subr.mxu0 0.0
    %1602 = vmatpush1.msra.mxu0 %v1550
    %1603 = vmatprep.subr.mxu0 0.0
    %1604 = vmatpush1.msra.mxu0 %v1551
    %1605 = vmatprep.subr.mxu0 0.0
    %1606 = vmatpush1.msra.mxu0 %v1552
    %1607 = vmatprep.subr.mxu0 0.0
    %1608 = vmatpush1.msra.mxu0 %v1553
    %1609 = vmatprep.subr.mxu0 0.0
    %1610 = vmatpush1.msra.mxu0 %v1554
    %1611 = vmatprep.subr.mxu0 0.0
    %1612 = vmatpush1.msra.mxu0 %v1555
    %1613 = vmatprep.subr.mxu0 0.0
    %1614 = vmatpush1.msra.mxu0 %v1556
    %1615 = vmatprep.subr.mxu0 0.0
    %1616 = vmatpush1.msra.mxu0 %v1557
    %1617 = vmatprep.subr.mxu0 0.0
    %1618 = vmatpush1.msra.mxu0 %v1558
    %1619 = vmatprep.subr.mxu0 0.0
    %1620 = vmatpush1.msra.mxu0 %v1559
    %1621 = vmatprep.subr.mxu0 0.0
    %1622 = vmatpush1.msra.mxu0 %v1560
    %1623 = vmatprep.subr.mxu0 0.0
    %1624 = vmatpush1.msra.mxu0 %v1561
    %1625 = vmatprep.subr.mxu0 0.0
    %1626 = vmatpush1.msra.mxu0 %v1562
    %1627 = vmatprep.subr.mxu0 0.0
    %1628 = vmatpush1.msra.mxu0 %v1563
    %1629 = vmatprep.subr.mxu0 0.0
    %1630 = vmatpush1.msra.mxu0 %v1564
    %1631 = vmatprep.subr.mxu0 0.0
    %1632 = vmatpush1.msra.mxu0 %v1565
    %1633 = vmatprep.subr.mxu0 0.0
    %1634 = vmatpush1.msra.mxu0 %v1566
    %1635 = vmatprep.subr.mxu0 0.0
    %1636 = vmatpush1.msra.mxu0 %v1567
    %1637 = vmatprep.subr.mxu0 0.0
    %1638 = vmatpush1.msra.mxu0 %v1568
    %1639 = vmatprep.subr.mxu0 0.0
    %1640 = vmatpush1.msra.mxu0 %v1569
    %1641 = vmatprep.mubr.f32.mxu0 %v1537
    %1642 = vmatmul.mubr.f32.gmra.mrb[0].mxu0 %v1536
    %v1643 = vpop.f32.mrb[0].mxu0
    %v1644 = vadd.f32 %v1575, %v1643
    %v1645 = vpop.f32.mrb[0].mxu0
    %1646 = vdwg.mxu0
    %1647 = vst [vmem:[%s7] sm:$0x3] %v1644
    // Predicated region
    $region54: #{_lambda_.4} parent=1 // pred_check
      _
    $region55: #{_lambda_.4} parent=1 // pred_check_branch
      %1649 = sbr.rel (0) target = $region57
    $region56: #{_lambda_.4} parent=1 // pred_region
      _
    $region57: #{_lambda_.4} parent=1 // pred_fallthru
      _
    // Predicated region
    $region58: #{_lambda_.4} parent=1 // pred_check
      _
    $region59: #{_lambda_.4} parent=1 // pred_check_branch
      %1651 = sbr.rel (0) target = $region61
    $region60: #{_lambda_.4} parent=1 // pred_region
      _
    $region61: #{_lambda_.4} parent=1 // pred_fallthru
      _
    %1652 = vsyncpa [#allocation3], 1
    %1653 = vsyncpa [#allocation5], 1
    %1654 = vsyncpa [#allocation8], 1
    %1655 = vsyncpa [#allocation11], 1

</llo_original>
